<compile_context>
chip_gen: v7x
topology: tpu7x:2x2x1
jax: 0.10.0
libtpu: 0.0.40
codegen_flags: <defaults>
</compile_context>

<pallas_src>
import functools

import numpy as np
import jax
import jax.numpy as jnp
from jax import lax
from jax.experimental import pallas as pl
from jax.experimental.pallas import tpu as pltpu


def _output_block_kernel(x1_ref, x2_ref, mask_ref, w1a_ref, w1b_ref, b1_ref,
                         w2_ref, b2_ref, w3_ref, b3_ref, o_ref, *, H, W):
    # x1_ref, x2_ref: (N, Cin, S)      activations, channels on sublanes,
    #                                  flattened spatial S = H*W on lanes.
    # mask_ref:       (9, 1, S)        f32 border-validity mask per 3x3 tap.
    # w1a_ref:        (9, Cmid, Cin)   tap-major conv1 weights for x2 (first
    #                                  half of torch.cat([x2, x1], dim=1)).
    # w1b_ref:        (9, Cmid, Cin)   tap-major conv1 weights for x1.
    # w2_ref:         (9, Cmid, Cmid)  tap-major conv2 weights.
    # w3_ref:         (Cout, Cmid)     1x1 output-conv weights.
    # b*_ref:         (C, 1)           biases, broadcast along lanes.
    # o_ref:          (N, Cout, S)     lane-dense output.
    N = x1_ref.shape[0]
    S = H * W

    # Static 3x3 tap table: tap index t = kh*3 + kw, flattened lane offset.
    taps = [(kh * 3 + kw, (kh - 1) * W + (kw - 1))
            for kh in range(3) for kw in range(3)]

    def tap_input(x, t, off):
        # x[c, p + off] with zeros wherever the 3x3 window leaves the image
        # (this reproduces padding=1).  Lane rotate on the XLU + VPU mask mul;
        # no padded scratch, no reshapes, no strided slices.
        if off == 0:
            return x                                   # centre tap: identity
        return pltpu.roll(x, (-off) % S, axis=1) * mask_ref[t]

    def conv3x3_relu(pairs, b_ref):
        # pairs: list of (tap-major weight ref (9, Co, Ci), activation (Ci, S)).
        co = pairs[0][0].shape[1]
        acc = jnp.zeros((co, S), jnp.float32)          # lane-dense accumulator
        for t, off in taps:
            for w_ref, x in pairs:
                acc = acc + jnp.dot(w_ref[t], tap_input(x, t, off),
                                    preferred_element_type=jnp.float32)
        return jnp.maximum(acc + b_ref[...], 0.0)      # bias + ReLU

    for n in range(N):                                 # small static batch, unrolled
        x1n = x1_ref[n]                                # (Cin, S)
        x2n = x2_ref[n]                                # (Cin, S)
        # torch.cat([x2, x1], dim=1) handled by splitting conv1's weights:
        # conv(cat([x2,x1]), W1) == conv(x2, W1[:, :Cin]) + conv(x1, W1[:, Cin:])
        h1 = conv3x3_relu([(w1a_ref, x2n), (w1b_ref, x1n)], b1_ref)   # (Cmid, S)
        h2 = conv3x3_relu([(w2_ref, h1)], b2_ref)                     # (Cmid, S)
        out = jnp.dot(w3_ref[...], h2,
                      preferred_element_type=jnp.float32) + b3_ref[...]
        o_ref[n] = out.astype(o_ref.dtype)             # lane-dense store (Cout, S)


@jax.jit
def output_block(x1_nchw, x2_nchw, w1_oihw, b1, w2_oihw, b2, w3_oihw, b3):
    """Pallas OutputBlock.forward.  x1, x2: NCHW (N, Cin, H, W); returns NCHW."""
    N, Cin, H, W = x1_nchw.shape
    Cmid = w1_oihw.shape[0]        # DoubleConvBlock(in*2, in) -> Cmid == in_channels
    Cout = w3_oihw.shape[0]
    S = H * W

    # Free reshapes only: NCHW -> (N, C, H*W).  No transposes, pads or concats.
    x1r = x1_nchw.reshape(N, Cin, S).astype(jnp.float32)
    x2r = x2_nchw.reshape(N, Cin, S).astype(jnp.float32)

    # Tap-major weights: w[t, co, ci] = w_oihw[co, ci, kh, kw], t = kh*3 + kw.
    # conv1 is split into the halves acting on x2 (first) and x1 (second),
    # matching torch.cat([x2, x1], dim=1).
    w1a = jnp.transpose(w1_oihw[:, :Cin], (2, 3, 0, 1)).reshape(9, Cmid, Cin)
    w1b = jnp.transpose(w1_oihw[:, Cin:], (2, 3, 0, 1)).reshape(9, Cmid, Cin)
    w2t = jnp.transpose(w2_oihw, (2, 3, 0, 1)).reshape(9, Cmid, Cmid)
    w3m = w3_oihw.reshape(Cout, Cmid)
    b1r = b1.reshape(Cmid, 1)
    b2r = b2.reshape(Cmid, 1)
    b3r = b3.reshape(Cout, 1)

    # Border-validity masks per 3x3 tap (numpy -> folded constants), shape (9,1,S).
    hh, ww = np.arange(S) // W, np.arange(S) % W
    masks_np = np.stack([((hh + dh >= 0) & (hh + dh < H) &
                          (ww + dw >= 0) & (ww + dw < W))
                         for dh in (-1, 0, 1) for dw in (-1, 0, 1)])
    masks = jnp.asarray(masks_np.astype(np.float32).reshape(9, 1, S))

    kernel = functools.partial(_output_block_kernel, H=H, W=W)
    out = pl.pallas_call(
        kernel,
        out_shape=jax.ShapeDtypeStruct((N, Cout, S), jnp.float32),
        grid=(1,),                              # whole (tiny) batch in one step
        in_specs=[
            pl.BlockSpec((N, Cin, S), lambda i: (0, 0, 0)),
            pl.BlockSpec((N, Cin, S), lambda i: (0, 0, 0)),
            pl.BlockSpec((9, 1, S), lambda i: (0, 0, 0)),
            pl.BlockSpec((9, Cmid, Cin), lambda i: (0, 0, 0)),
            pl.BlockSpec((9, Cmid, Cin), lambda i: (0, 0, 0)),
            pl.BlockSpec((Cmid, 1), lambda i: (0, 0)),
            pl.BlockSpec((9, Cmid, Cmid), lambda i: (0, 0, 0)),
            pl.BlockSpec((Cmid, 1), lambda i: (0, 0)),
            pl.BlockSpec((Cout, Cmid), lambda i: (0, 0)),
            pl.BlockSpec((Cout, 1), lambda i: (0, 0)),
        ],
        out_specs=pl.BlockSpec((N, Cout, S), lambda i: (0, 0, 0)),
        compiler_params=pltpu.CompilerParams(
            dimension_semantics=("arbitrary",)),
    )(x1r, x2r, masks,
      w1a.astype(jnp.float32), w1b.astype(jnp.float32), b1r.astype(jnp.float32),
      w2t.astype(jnp.float32), b2r.astype(jnp.float32),
      w3m.astype(jnp.float32), b3r.astype(jnp.float32))

    return out.reshape(N, Cout, H, W)                  # free reshape back to NCHW


def _reference(x1, x2, w1, b1, w2, b2, w3, b3):
    """Pure-JAX NCHW reference matching the PyTorch OutputBlock."""
    x = jnp.concatenate([x2, x1], axis=1)

    def conv(x, w, b, pad):
        y = lax.conv_general_dilated(
            x, w, window_strides=(1, 1), padding=((pad, pad), (pad, pad)),
            dimension_numbers=("NCHW", "OIHW", "NCHW"),
            precision=lax.Precision.HIGHEST)
        return y + b[None, :, None, None]

    h = jnp.maximum(conv(x, w1, b1, 1), 0.0)
    h = jnp.maximum(conv(h, w2, b2, 1), 0.0)
    return conv(h, w3, b3, 0)


if __name__ == "__main__":
    # OutputBlock(in_channels=4, out_channels=2); x1, x2: (N, 4, 16, 16).
    N, Cin, Cout, H, W = 2, 4, 2, 16, 16
    Cmid, Ccat = Cin, 2 * Cin

    key = jax.random.PRNGKey(0)
    kx1, kx2, kw1, kb1, kw2, kb2, kw3, kb3 = jax.random.split(key, 8)

    x1 = jax.random.normal(kx1, (N, Cin, H, W), jnp.float32)
    x2 = jax.random.normal(kx2, (N, Cin, H, W), jnp.float32)

    # Deterministic PyTorch-style uniform init, OIHW layout.
    bound1 = 1.0 / (Ccat * 9) ** 0.5
    w1 = jax.random.uniform(kw1, (Cmid, Ccat, 3, 3), jnp.float32, -bound1, bound1)
    b1 = jax.random.uniform(kb1, (Cmid,), jnp.float32, -bound1, bound1)
    bound2 = 1.0 / (Cmid * 9) ** 0.5
    w2 = jax.random.uniform(kw2, (Cmid, Cmid, 3, 3), jnp.float32, -bound2, bound2)
    b2 = jax.random.uniform(kb2, (Cmid,), jnp.float32, -bound2, bound2)
    bound3 = 1.0 / (Cmid * 1) ** 0.5
    w3 = jax.random.uniform(kw3, (Cout, Cmid, 1, 1), jnp.float32, -bound3, bound3)
    b3 = jax.random.uniform(kb3, (Cout,), jnp.float32, -bound3, bound3)

    out = output_block(x1, x2, w1, b1, w2, b2, w3, b3)
    out = jax.block_until_ready(out)

    ref = _reference(x1, x2, w1, b1, w2, b2, w3, b3)
    assert out.shape == (N, Cout, H, W), out.shape
    max_err = float(jnp.max(jnp.abs(out - ref)))
    assert jnp.allclose(out, ref, rtol=1e-4, atol=1e-4), max_err

    print("KERNEL_OK")
</pallas_src>

<mosaic_0001>
module attributes {stable_mosaic.version = 11 : i64} {
  func.func @_output_block_kernel(%arg0: i32, %arg1: memref<2x4x256xf32, #tpu.memory_space<vmem>>, %arg2: memref<2x4x256xf32, #tpu.memory_space<vmem>>, %arg3: memref<9x1x256xf32, #tpu.memory_space<vmem>>, %arg4: memref<9x4x4xf32, #tpu.memory_space<vmem>>, %arg5: memref<9x4x4xf32, #tpu.memory_space<vmem>>, %arg6: memref<4x1xf32, #tpu.memory_space<vmem>>, %arg7: memref<9x4x4xf32, #tpu.memory_space<vmem>>, %arg8: memref<4x1xf32, #tpu.memory_space<vmem>>, %arg9: memref<2x4xf32, #tpu.memory_space<vmem>>, %arg10: memref<2x1xf32, #tpu.memory_space<vmem>>, %arg11: memref<2x2x256xf32, #tpu.memory_space<vmem>>) attributes {dimension_semantics = [#tpu.dimension_semantics<arbitrary>], iteration_bounds = array<i64: 1>, scalar_prefetch = 0 : i64, scratch_operands = 0 : i64, tpu.core_type = #tpu.core_type<tc>, window_params = [{pipeline_mode = #tpu.pipeline_mode<synchronous>, transform_indices = @transform_0, window_bounds = array<i64: 2, 4, 256>}, {pipeline_mode = #tpu.pipeline_mode<synchronous>, transform_indices = @transform_1, window_bounds = array<i64: 2, 4, 256>}, {pipeline_mode = #tpu.pipeline_mode<synchronous>, transform_indices = @transform_2, window_bounds = array<i64: 9, 1, 256>}, {pipeline_mode = #tpu.pipeline_mode<synchronous>, transform_indices = @transform_3, window_bounds = array<i64: 9, 4, 4>}, {pipeline_mode = #tpu.pipeline_mode<synchronous>, transform_indices = @transform_4, window_bounds = array<i64: 9, 4, 4>}, {pipeline_mode = #tpu.pipeline_mode<synchronous>, transform_indices = @transform_5, window_bounds = array<i64: 4, 1>}, {pipeline_mode = #tpu.pipeline_mode<synchronous>, transform_indices = @transform_6, window_bounds = array<i64: 9, 4, 4>}, {pipeline_mode = #tpu.pipeline_mode<synchronous>, transform_indices = @transform_7, window_bounds = array<i64: 4, 1>}, {pipeline_mode = #tpu.pipeline_mode<synchronous>, transform_indices = @transform_8, window_bounds = array<i64: 2, 4>}, {pipeline_mode = #tpu.pipeline_mode<synchronous>, transform_indices = @transform_9, window_bounds = array<i64: 2, 1>}, {pipeline_mode = #tpu.pipeline_mode<synchronous>, transform_indices = @transform_10, window_bounds = array<i64: 2, 2, 256>}]} {
    %c0 = arith.constant 0 : index
    %c0_0 = arith.constant 0 : index
    %c0_1 = arith.constant 0 : index
    %0 = vector.load %arg1[%c0, %c0_0, %c0_1] : memref<2x4x256xf32, #tpu.memory_space<vmem>>, vector<1x4x256xf32>
    %1 = vector.shape_cast %0 : vector<1x4x256xf32> to vector<4x256xf32>
    %c0_2 = arith.constant 0 : index
    %c0_3 = arith.constant 0 : index
    %c0_4 = arith.constant 0 : index
    %2 = vector.load %arg2[%c0_2, %c0_3, %c0_4] : memref<2x4x256xf32, #tpu.memory_space<vmem>>, vector<1x4x256xf32>
    %3 = vector.shape_cast %2 : vector<1x4x256xf32> to vector<4x256xf32>
    %cst = arith.constant 0.000000e+00 : f32
    %4 = vector.broadcast %cst : f32 to vector<4x256xf32>
    %c0_5 = arith.constant 0 : index
    %c0_6 = arith.constant 0 : index
    %c0_7 = arith.constant 0 : index
    %5 = vector.load %arg4[%c0_5, %c0_6, %c0_7] : memref<9x4x4xf32, #tpu.memory_space<vmem>>, vector<1x4x4xf32>
    %6 = vector.shape_cast %5 : vector<1x4x4xf32> to vector<4x4xf32>
    %c17_i32 = arith.constant 17 : i32
    %7 = tpu.dynamic_rotate %3 by %c17_i32 dim 1 : vector<4x256xf32>, i32 -> vector<4x256xf32>
    %c0_8 = arith.constant 0 : index
    %c0_9 = arith.constant 0 : index
    %c0_10 = arith.constant 0 : index
    %8 = vector.load %arg3[%c0_8, %c0_9, %c0_10] : memref<9x1x256xf32, #tpu.memory_space<vmem>>, vector<1x1x256xf32>
    %9 = vector.shape_cast %8 : vector<1x1x256xf32> to vector<1x256xf32>
    %10 = vector.broadcast %9 : vector<1x256xf32> to vector<4x256xf32>
    %11 = arith.mulf %7, %10 : vector<4x256xf32>
    %cst_11 = arith.constant dense<0.000000e+00> : vector<4x256xf32>
    %12 = tpu.matmul %6, %11, %cst_11 {dimension_numbers = #tpu.dot_dimension_numbers<[1], [0], [0], [1], [0, 0, 1, 1], [], []>} : vector<4x4xf32>, vector<4x256xf32>, vector<4x256xf32> -> vector<4x256xf32>
    %13 = arith.addf %4, %12 : vector<4x256xf32>
    %c0_12 = arith.constant 0 : index
    %c0_13 = arith.constant 0 : index
    %c0_14 = arith.constant 0 : index
    %14 = vector.load %arg5[%c0_12, %c0_13, %c0_14] : memref<9x4x4xf32, #tpu.memory_space<vmem>>, vector<1x4x4xf32>
    %15 = vector.shape_cast %14 : vector<1x4x4xf32> to vector<4x4xf32>
    %c17_i32_15 = arith.constant 17 : i32
    %16 = tpu.dynamic_rotate %1 by %c17_i32_15 dim 1 : vector<4x256xf32>, i32 -> vector<4x256xf32>
    %c0_16 = arith.constant 0 : index
    %c0_17 = arith.constant 0 : index
    %c0_18 = arith.constant 0 : index
    %17 = vector.load %arg3[%c0_16, %c0_17, %c0_18] : memref<9x1x256xf32, #tpu.memory_space<vmem>>, vector<1x1x256xf32>
    %18 = vector.shape_cast %17 : vector<1x1x256xf32> to vector<1x256xf32>
    %19 = vector.broadcast %18 : vector<1x256xf32> to vector<4x256xf32>
    %20 = arith.mulf %16, %19 : vector<4x256xf32>
    %cst_19 = arith.constant dense<0.000000e+00> : vector<4x256xf32>
    %21 = tpu.matmul %15, %20, %cst_19 {dimension_numbers = #tpu.dot_dimension_numbers<[1], [0], [0], [1], [0, 0, 1, 1], [], []>} : vector<4x4xf32>, vector<4x256xf32>, vector<4x256xf32> -> vector<4x256xf32>
    %22 = arith.addf %13, %21 : vector<4x256xf32>
    %c1 = arith.constant 1 : index
    %c0_20 = arith.constant 0 : index
    %c0_21 = arith.constant 0 : index
    %23 = vector.load %arg4[%c1, %c0_20, %c0_21] : memref<9x4x4xf32, #tpu.memory_space<vmem>>, vector<1x4x4xf32>
    %24 = vector.shape_cast %23 : vector<1x4x4xf32> to vector<4x4xf32>
    %c16_i32 = arith.constant 16 : i32
    %25 = tpu.dynamic_rotate %3 by %c16_i32 dim 1 : vector<4x256xf32>, i32 -> vector<4x256xf32>
    %c1_22 = arith.constant 1 : index
    %c0_23 = arith.constant 0 : index
    %c0_24 = arith.constant 0 : index
    %26 = vector.load %arg3[%c1_22, %c0_23, %c0_24] : memref<9x1x256xf32, #tpu.memory_space<vmem>>, vector<1x1x256xf32>
    %27 = vector.shape_cast %26 : vector<1x1x256xf32> to vector<1x256xf32>
    %28 = vector.broadcast %27 : vector<1x256xf32> to vector<4x256xf32>
    %29 = arith.mulf %25, %28 : vector<4x256xf32>
    %cst_25 = arith.constant dense<0.000000e+00> : vector<4x256xf32>
    %30 = tpu.matmul %24, %29, %cst_25 {dimension_numbers = #tpu.dot_dimension_numbers<[1], [0], [0], [1], [0, 0, 1, 1], [], []>} : vector<4x4xf32>, vector<4x256xf32>, vector<4x256xf32> -> vector<4x256xf32>
    %31 = arith.addf %22, %30 : vector<4x256xf32>
    %c1_26 = arith.constant 1 : index
    %c0_27 = arith.constant 0 : index
    %c0_28 = arith.constant 0 : index
    %32 = vector.load %arg5[%c1_26, %c0_27, %c0_28] : memref<9x4x4xf32, #tpu.memory_space<vmem>>, vector<1x4x4xf32>
    %33 = vector.shape_cast %32 : vector<1x4x4xf32> to vector<4x4xf32>
    %c16_i32_29 = arith.constant 16 : i32
    %34 = tpu.dynamic_rotate %1 by %c16_i32_29 dim 1 : vector<4x256xf32>, i32 -> vector<4x256xf32>
    %c1_30 = arith.constant 1 : index
    %c0_31 = arith.constant 0 : index
    %c0_32 = arith.constant 0 : index
    %35 = vector.load %arg3[%c1_30, %c0_31, %c0_32] : memref<9x1x256xf32, #tpu.memory_space<vmem>>, vector<1x1x256xf32>
    %36 = vector.shape_cast %35 : vector<1x1x256xf32> to vector<1x256xf32>
    %37 = vector.broadcast %36 : vector<1x256xf32> to vector<4x256xf32>
    %38 = arith.mulf %34, %37 : vector<4x256xf32>
    %cst_33 = arith.constant dense<0.000000e+00> : vector<4x256xf32>
    %39 = tpu.matmul %33, %38, %cst_33 {dimension_numbers = #tpu.dot_dimension_numbers<[1], [0], [0], [1], [0, 0, 1, 1], [], []>} : vector<4x4xf32>, vector<4x256xf32>, vector<4x256xf32> -> vector<4x256xf32>
    %40 = arith.addf %31, %39 : vector<4x256xf32>
    %c2 = arith.constant 2 : index
    %c0_34 = arith.constant 0 : index
    %c0_35 = arith.constant 0 : index
    %41 = vector.load %arg4[%c2, %c0_34, %c0_35] : memref<9x4x4xf32, #tpu.memory_space<vmem>>, vector<1x4x4xf32>
    %42 = vector.shape_cast %41 : vector<1x4x4xf32> to vector<4x4xf32>
    %c15_i32 = arith.constant 15 : i32
    %43 = tpu.dynamic_rotate %3 by %c15_i32 dim 1 : vector<4x256xf32>, i32 -> vector<4x256xf32>
    %c2_36 = arith.constant 2 : index
    %c0_37 = arith.constant 0 : index
    %c0_38 = arith.constant 0 : index
    %44 = vector.load %arg3[%c2_36, %c0_37, %c0_38] : memref<9x1x256xf32, #tpu.memory_space<vmem>>, vector<1x1x256xf32>
    %45 = vector.shape_cast %44 : vector<1x1x256xf32> to vector<1x256xf32>
    %46 = vector.broadcast %45 : vector<1x256xf32> to vector<4x256xf32>
    %47 = arith.mulf %43, %46 : vector<4x256xf32>
    %cst_39 = arith.constant dense<0.000000e+00> : vector<4x256xf32>
    %48 = tpu.matmul %42, %47, %cst_39 {dimension_numbers = #tpu.dot_dimension_numbers<[1], [0], [0], [1], [0, 0, 1, 1], [], []>} : vector<4x4xf32>, vector<4x256xf32>, vector<4x256xf32> -> vector<4x256xf32>
    %49 = arith.addf %40, %48 : vector<4x256xf32>
    %c2_40 = arith.constant 2 : index
    %c0_41 = arith.constant 0 : index
    %c0_42 = arith.constant 0 : index
    %50 = vector.load %arg5[%c2_40, %c0_41, %c0_42] : memref<9x4x4xf32, #tpu.memory_space<vmem>>, vector<1x4x4xf32>
    %51 = vector.shape_cast %50 : vector<1x4x4xf32> to vector<4x4xf32>
    %c15_i32_43 = arith.constant 15 : i32
    %52 = tpu.dynamic_rotate %1 by %c15_i32_43 dim 1 : vector<4x256xf32>, i32 -> vector<4x256xf32>
    %c2_44 = arith.constant 2 : index
    %c0_45 = arith.constant 0 : index
    %c0_46 = arith.constant 0 : index
    %53 = vector.load %arg3[%c2_44, %c0_45, %c0_46] : memref<9x1x256xf32, #tpu.memory_space<vmem>>, vector<1x1x256xf32>
    %54 = vector.shape_cast %53 : vector<1x1x256xf32> to vector<1x256xf32>
    %55 = vector.broadcast %54 : vector<1x256xf32> to vector<4x256xf32>
    %56 = arith.mulf %52, %55 : vector<4x256xf32>
    %cst_47 = arith.constant dense<0.000000e+00> : vector<4x256xf32>
    %57 = tpu.matmul %51, %56, %cst_47 {dimension_numbers = #tpu.dot_dimension_numbers<[1], [0], [0], [1], [0, 0, 1, 1], [], []>} : vector<4x4xf32>, vector<4x256xf32>, vector<4x256xf32> -> vector<4x256xf32>
    %58 = arith.addf %49, %57 : vector<4x256xf32>
    %c3 = arith.constant 3 : index
    %c0_48 = arith.constant 0 : index
    %c0_49 = arith.constant 0 : index
    %59 = vector.load %arg4[%c3, %c0_48, %c0_49] : memref<9x4x4xf32, #tpu.memory_space<vmem>>, vector<1x4x4xf32>
    %60 = vector.shape_cast %59 : vector<1x4x4xf32> to vector<4x4xf32>
    %c1_i32 = arith.constant 1 : i32
    %61 = tpu.dynamic_rotate %3 by %c1_i32 dim 1 : vector<4x256xf32>, i32 -> vector<4x256xf32>
    %c3_50 = arith.constant 3 : index
    %c0_51 = arith.constant 0 : index
    %c0_52 = arith.constant 0 : index
    %62 = vector.load %arg3[%c3_50, %c0_51, %c0_52] : memref<9x1x256xf32, #tpu.memory_space<vmem>>, vector<1x1x256xf32>
    %63 = vector.shape_cast %62 : vector<1x1x256xf32> to vector<1x256xf32>
    %64 = vector.broadcast %63 : vector<1x256xf32> to vector<4x256xf32>
    %65 = arith.mulf %61, %64 : vector<4x256xf32>
    %cst_53 = arith.constant dense<0.000000e+00> : vector<4x256xf32>
    %66 = tpu.matmul %60, %65, %cst_53 {dimension_numbers = #tpu.dot_dimension_numbers<[1], [0], [0], [1], [0, 0, 1, 1], [], []>} : vector<4x4xf32>, vector<4x256xf32>, vector<4x256xf32> -> vector<4x256xf32>
    %67 = arith.addf %58, %66 : vector<4x256xf32>
    %c3_54 = arith.constant 3 : index
    %c0_55 = arith.constant 0 : index
    %c0_56 = arith.constant 0 : index
    %68 = vector.load %arg5[%c3_54, %c0_55, %c0_56] : memref<9x4x4xf32, #tpu.memory_space<vmem>>, vector<1x4x4xf32>
    %69 = vector.shape_cast %68 : vector<1x4x4xf32> to vector<4x4xf32>
    %c1_i32_57 = arith.constant 1 : i32
    %70 = tpu.dynamic_rotate %1 by %c1_i32_57 dim 1 : vector<4x256xf32>, i32 -> vector<4x256xf32>
    %c3_58 = arith.constant 3 : index
    %c0_59 = arith.constant 0 : index
    %c0_60 = arith.constant 0 : index
    %71 = vector.load %arg3[%c3_58, %c0_59, %c0_60] : memref<9x1x256xf32, #tpu.memory_space<vmem>>, vector<1x1x256xf32>
    %72 = vector.shape_cast %71 : vector<1x1x256xf32> to vector<1x256xf32>
    %73 = vector.broadcast %72 : vector<1x256xf32> to vector<4x256xf32>
    %74 = arith.mulf %70, %73 : vector<4x256xf32>
    %cst_61 = arith.constant dense<0.000000e+00> : vector<4x256xf32>
    %75 = tpu.matmul %69, %74, %cst_61 {dimension_numbers = #tpu.dot_dimension_numbers<[1], [0], [0], [1], [0, 0, 1, 1], [], []>} : vector<4x4xf32>, vector<4x256xf32>, vector<4x256xf32> -> vector<4x256xf32>
    %76 = arith.addf %67, %75 : vector<4x256xf32>
    %c4 = arith.constant 4 : index
    %c0_62 = arith.constant 0 : index
    %c0_63 = arith.constant 0 : index
    %77 = vector.load %arg4[%c4, %c0_62, %c0_63] : memref<9x4x4xf32, #tpu.memory_space<vmem>>, vector<1x4x4xf32>
    %78 = vector.shape_cast %77 : vector<1x4x4xf32> to vector<4x4xf32>
    %cst_64 = arith.constant dense<0.000000e+00> : vector<4x256xf32>
    %79 = tpu.matmul %78, %3, %cst_64 {dimension_numbers = #tpu.dot_dimension_numbers<[1], [0], [0], [1], [0, 0, 1, 1], [], []>} : vector<4x4xf32>, vector<4x256xf32>, vector<4x256xf32> -> vector<4x256xf32>
    %80 = arith.addf %76, %79 : vector<4x256xf32>
    %c4_65 = arith.constant 4 : index
    %c0_66 = arith.constant 0 : index
    %c0_67 = arith.constant 0 : index
    %81 = vector.load %arg5[%c4_65, %c0_66, %c0_67] : memref<9x4x4xf32, #tpu.memory_space<vmem>>, vector<1x4x4xf32>
    %82 = vector.shape_cast %81 : vector<1x4x4xf32> to vector<4x4xf32>
    %cst_68 = arith.constant dense<0.000000e+00> : vector<4x256xf32>
    %83 = tpu.matmul %82, %1, %cst_68 {dimension_numbers = #tpu.dot_dimension_numbers<[1], [0], [0], [1], [0, 0, 1, 1], [], []>} : vector<4x4xf32>, vector<4x256xf32>, vector<4x256xf32> -> vector<4x256xf32>
    %84 = arith.addf %80, %83 : vector<4x256xf32>
    %c5 = arith.constant 5 : index
    %c0_69 = arith.constant 0 : index
    %c0_70 = arith.constant 0 : index
    %85 = vector.load %arg4[%c5, %c0_69, %c0_70] : memref<9x4x4xf32, #tpu.memory_space<vmem>>, vector<1x4x4xf32>
    %86 = vector.shape_cast %85 : vector<1x4x4xf32> to vector<4x4xf32>
    %c255_i32 = arith.constant 255 : i32
    %87 = tpu.dynamic_rotate %3 by %c255_i32 dim 1 : vector<4x256xf32>, i32 -> vector<4x256xf32>
    %c5_71 = arith.constant 5 : index
    %c0_72 = arith.constant 0 : index
    %c0_73 = arith.constant 0 : index
    %88 = vector.load %arg3[%c5_71, %c0_72, %c0_73] : memref<9x1x256xf32, #tpu.memory_space<vmem>>, vector<1x1x256xf32>
    %89 = vector.shape_cast %88 : vector<1x1x256xf32> to vector<1x256xf32>
    %90 = vector.broadcast %89 : vector<1x256xf32> to vector<4x256xf32>
    %91 = arith.mulf %87, %90 : vector<4x256xf32>
    %cst_74 = arith.constant dense<0.000000e+00> : vector<4x256xf32>
    %92 = tpu.matmul %86, %91, %cst_74 {dimension_numbers = #tpu.dot_dimension_numbers<[1], [0], [0], [1], [0, 0, 1, 1], [], []>} : vector<4x4xf32>, vector<4x256xf32>, vector<4x256xf32> -> vector<4x256xf32>
    %93 = arith.addf %84, %92 : vector<4x256xf32>
    %c5_75 = arith.constant 5 : index
    %c0_76 = arith.constant 0 : index
    %c0_77 = arith.constant 0 : index
    %94 = vector.load %arg5[%c5_75, %c0_76, %c0_77] : memref<9x4x4xf32, #tpu.memory_space<vmem>>, vector<1x4x4xf32>
    %95 = vector.shape_cast %94 : vector<1x4x4xf32> to vector<4x4xf32>
    %c255_i32_78 = arith.constant 255 : i32
    %96 = tpu.dynamic_rotate %1 by %c255_i32_78 dim 1 : vector<4x256xf32>, i32 -> vector<4x256xf32>
    %c5_79 = arith.constant 5 : index
    %c0_80 = arith.constant 0 : index
    %c0_81 = arith.constant 0 : index
    %97 = vector.load %arg3[%c5_79, %c0_80, %c0_81] : memref<9x1x256xf32, #tpu.memory_space<vmem>>, vector<1x1x256xf32>
    %98 = vector.shape_cast %97 : vector<1x1x256xf32> to vector<1x256xf32>
    %99 = vector.broadcast %98 : vector<1x256xf32> to vector<4x256xf32>
    %100 = arith.mulf %96, %99 : vector<4x256xf32>
    %cst_82 = arith.constant dense<0.000000e+00> : vector<4x256xf32>
    %101 = tpu.matmul %95, %100, %cst_82 {dimension_numbers = #tpu.dot_dimension_numbers<[1], [0], [0], [1], [0, 0, 1, 1], [], []>} : vector<4x4xf32>, vector<4x256xf32>, vector<4x256xf32> -> vector<4x256xf32>
    %102 = arith.addf %93, %101 : vector<4x256xf32>
    %c6 = arith.constant 6 : index
    %c0_83 = arith.constant 0 : index
    %c0_84 = arith.constant 0 : index
    %103 = vector.load %arg4[%c6, %c0_83, %c0_84] : memref<9x4x4xf32, #tpu.memory_space<vmem>>, vector<1x4x4xf32>
    %104 = vector.shape_cast %103 : vector<1x4x4xf32> to vector<4x4xf32>
    %c241_i32 = arith.constant 241 : i32
    %105 = tpu.dynamic_rotate %3 by %c241_i32 dim 1 : vector<4x256xf32>, i32 -> vector<4x256xf32>
    %c6_85 = arith.constant 6 : index
    %c0_86 = arith.constant 0 : index
    %c0_87 = arith.constant 0 : index
    %106 = vector.load %arg3[%c6_85, %c0_86, %c0_87] : memref<9x1x256xf32, #tpu.memory_space<vmem>>, vector<1x1x256xf32>
    %107 = vector.shape_cast %106 : vector<1x1x256xf32> to vector<1x256xf32>
    %108 = vector.broadcast %107 : vector<1x256xf32> to vector<4x256xf32>
    %109 = arith.mulf %105, %108 : vector<4x256xf32>
    %cst_88 = arith.constant dense<0.000000e+00> : vector<4x256xf32>
    %110 = tpu.matmul %104, %109, %cst_88 {dimension_numbers = #tpu.dot_dimension_numbers<[1], [0], [0], [1], [0, 0, 1, 1], [], []>} : vector<4x4xf32>, vector<4x256xf32>, vector<4x256xf32> -> vector<4x256xf32>
    %111 = arith.addf %102, %110 : vector<4x256xf32>
    %c6_89 = arith.constant 6 : index
    %c0_90 = arith.constant 0 : index
    %c0_91 = arith.constant 0 : index
    %112 = vector.load %arg5[%c6_89, %c0_90, %c0_91] : memref<9x4x4xf32, #tpu.memory_space<vmem>>, vector<1x4x4xf32>
    %113 = vector.shape_cast %112 : vector<1x4x4xf32> to vector<4x4xf32>
    %c241_i32_92 = arith.constant 241 : i32
    %114 = tpu.dynamic_rotate %1 by %c241_i32_92 dim 1 : vector<4x256xf32>, i32 -> vector<4x256xf32>
    %c6_93 = arith.constant 6 : index
    %c0_94 = arith.constant 0 : index
    %c0_95 = arith.constant 0 : index
    %115 = vector.load %arg3[%c6_93, %c0_94, %c0_95] : memref<9x1x256xf32, #tpu.memory_space<vmem>>, vector<1x1x256xf32>
    %116 = vector.shape_cast %115 : vector<1x1x256xf32> to vector<1x256xf32>
    %117 = vector.broadcast %116 : vector<1x256xf32> to vector<4x256xf32>
    %118 = arith.mulf %114, %117 : vector<4x256xf32>
    %cst_96 = arith.constant dense<0.000000e+00> : vector<4x256xf32>
    %119 = tpu.matmul %113, %118, %cst_96 {dimension_numbers = #tpu.dot_dimension_numbers<[1], [0], [0], [1], [0, 0, 1, 1], [], []>} : vector<4x4xf32>, vector<4x256xf32>, vector<4x256xf32> -> vector<4x256xf32>
    %120 = arith.addf %111, %119 : vector<4x256xf32>
    %c7 = arith.constant 7 : index
    %c0_97 = arith.constant 0 : index
    %c0_98 = arith.constant 0 : index
    %121 = vector.load %arg4[%c7, %c0_97, %c0_98] : memref<9x4x4xf32, #tpu.memory_space<vmem>>, vector<1x4x4xf32>
    %122 = vector.shape_cast %121 : vector<1x4x4xf32> to vector<4x4xf32>
    %c240_i32 = arith.constant 240 : i32
    %123 = tpu.dynamic_rotate %3 by %c240_i32 dim 1 : vector<4x256xf32>, i32 -> vector<4x256xf32>
    %c7_99 = arith.constant 7 : index
    %c0_100 = arith.constant 0 : index
    %c0_101 = arith.constant 0 : index
    %124 = vector.load %arg3[%c7_99, %c0_100, %c0_101] : memref<9x1x256xf32, #tpu.memory_space<vmem>>, vector<1x1x256xf32>
    %125 = vector.shape_cast %124 : vector<1x1x256xf32> to vector<1x256xf32>
    %126 = vector.broadcast %125 : vector<1x256xf32> to vector<4x256xf32>
    %127 = arith.mulf %123, %126 : vector<4x256xf32>
    %cst_102 = arith.constant dense<0.000000e+00> : vector<4x256xf32>
    %128 = tpu.matmul %122, %127, %cst_102 {dimension_numbers = #tpu.dot_dimension_numbers<[1], [0], [0], [1], [0, 0, 1, 1], [], []>} : vector<4x4xf32>, vector<4x256xf32>, vector<4x256xf32> -> vector<4x256xf32>
    %129 = arith.addf %120, %128 : vector<4x256xf32>
    %c7_103 = arith.constant 7 : index
    %c0_104 = arith.constant 0 : index
    %c0_105 = arith.constant 0 : index
    %130 = vector.load %arg5[%c7_103, %c0_104, %c0_105] : memref<9x4x4xf32, #tpu.memory_space<vmem>>, vector<1x4x4xf32>
    %131 = vector.shape_cast %130 : vector<1x4x4xf32> to vector<4x4xf32>
    %c240_i32_106 = arith.constant 240 : i32
    %132 = tpu.dynamic_rotate %1 by %c240_i32_106 dim 1 : vector<4x256xf32>, i32 -> vector<4x256xf32>
    %c7_107 = arith.constant 7 : index
    %c0_108 = arith.constant 0 : index
    %c0_109 = arith.constant 0 : index
    %133 = vector.load %arg3[%c7_107, %c0_108, %c0_109] : memref<9x1x256xf32, #tpu.memory_space<vmem>>, vector<1x1x256xf32>
    %134 = vector.shape_cast %133 : vector<1x1x256xf32> to vector<1x256xf32>
    %135 = vector.broadcast %134 : vector<1x256xf32> to vector<4x256xf32>
    %136 = arith.mulf %132, %135 : vector<4x256xf32>
    %cst_110 = arith.constant dense<0.000000e+00> : vector<4x256xf32>
    %137 = tpu.matmul %131, %136, %cst_110 {dimension_numbers = #tpu.dot_dimension_numbers<[1], [0], [0], [1], [0, 0, 1, 1], [], []>} : vector<4x4xf32>, vector<4x256xf32>, vector<4x256xf32> -> vector<4x256xf32>
    %138 = arith.addf %129, %137 : vector<4x256xf32>
    %c8 = arith.constant 8 : index
    %c0_111 = arith.constant 0 : index
    %c0_112 = arith.constant 0 : index
    %139 = vector.load %arg4[%c8, %c0_111, %c0_112] : memref<9x4x4xf32, #tpu.memory_space<vmem>>, vector<1x4x4xf32>
    %140 = vector.shape_cast %139 : vector<1x4x4xf32> to vector<4x4xf32>
    %c239_i32 = arith.constant 239 : i32
    %141 = tpu.dynamic_rotate %3 by %c239_i32 dim 1 : vector<4x256xf32>, i32 -> vector<4x256xf32>
    %c8_113 = arith.constant 8 : index
    %c0_114 = arith.constant 0 : index
    %c0_115 = arith.constant 0 : index
    %142 = vector.load %arg3[%c8_113, %c0_114, %c0_115] : memref<9x1x256xf32, #tpu.memory_space<vmem>>, vector<1x1x256xf32>
    %143 = vector.shape_cast %142 : vector<1x1x256xf32> to vector<1x256xf32>
    %144 = vector.broadcast %143 : vector<1x256xf32> to vector<4x256xf32>
    %145 = arith.mulf %141, %144 : vector<4x256xf32>
    %cst_116 = arith.constant dense<0.000000e+00> : vector<4x256xf32>
    %146 = tpu.matmul %140, %145, %cst_116 {dimension_numbers = #tpu.dot_dimension_numbers<[1], [0], [0], [1], [0, 0, 1, 1], [], []>} : vector<4x4xf32>, vector<4x256xf32>, vector<4x256xf32> -> vector<4x256xf32>
    %147 = arith.addf %138, %146 : vector<4x256xf32>
    %c8_117 = arith.constant 8 : index
    %c0_118 = arith.constant 0 : index
    %c0_119 = arith.constant 0 : index
    %148 = vector.load %arg5[%c8_117, %c0_118, %c0_119] : memref<9x4x4xf32, #tpu.memory_space<vmem>>, vector<1x4x4xf32>
    %149 = vector.shape_cast %148 : vector<1x4x4xf32> to vector<4x4xf32>
    %c239_i32_120 = arith.constant 239 : i32
    %150 = tpu.dynamic_rotate %1 by %c239_i32_120 dim 1 : vector<4x256xf32>, i32 -> vector<4x256xf32>
    %c8_121 = arith.constant 8 : index
    %c0_122 = arith.constant 0 : index
    %c0_123 = arith.constant 0 : index
    %151 = vector.load %arg3[%c8_121, %c0_122, %c0_123] : memref<9x1x256xf32, #tpu.memory_space<vmem>>, vector<1x1x256xf32>
    %152 = vector.shape_cast %151 : vector<1x1x256xf32> to vector<1x256xf32>
    %153 = vector.broadcast %152 : vector<1x256xf32> to vector<4x256xf32>
    %154 = arith.mulf %150, %153 : vector<4x256xf32>
    %cst_124 = arith.constant dense<0.000000e+00> : vector<4x256xf32>
    %155 = tpu.matmul %149, %154, %cst_124 {dimension_numbers = #tpu.dot_dimension_numbers<[1], [0], [0], [1], [0, 0, 1, 1], [], []>} : vector<4x4xf32>, vector<4x256xf32>, vector<4x256xf32> -> vector<4x256xf32>
    %156 = arith.addf %147, %155 : vector<4x256xf32>
    %c0_125 = arith.constant 0 : index
    %c0_126 = arith.constant 0 : index
    %157 = vector.load %arg6[%c0_125, %c0_126] : memref<4x1xf32, #tpu.memory_space<vmem>>, vector<4x1xf32>
    %158 = vector.broadcast %157 : vector<4x1xf32> to vector<4x256xf32>
    %159 = arith.addf %156, %158 : vector<4x256xf32>
    %cst_127 = arith.constant 0.000000e+00 : f32
    %160 = vector.broadcast %cst_127 : f32 to vector<4x256xf32>
    %161 = arith.maximumf %159, %160 : vector<4x256xf32>
    %cst_128 = arith.constant 0.000000e+00 : f32
    %162 = vector.broadcast %cst_128 : f32 to vector<4x256xf32>
    %c0_129 = arith.constant 0 : index
    %c0_130 = arith.constant 0 : index
    %c0_131 = arith.constant 0 : index
    %163 = vector.load %arg7[%c0_129, %c0_130, %c0_131] : memref<9x4x4xf32, #tpu.memory_space<vmem>>, vector<1x4x4xf32>
    %164 = vector.shape_cast %163 : vector<1x4x4xf32> to vector<4x4xf32>
    %c17_i32_132 = arith.constant 17 : i32
    %165 = tpu.dynamic_rotate %161 by %c17_i32_132 dim 1 : vector<4x256xf32>, i32 -> vector<4x256xf32>
    %c0_133 = arith.constant 0 : index
    %c0_134 = arith.constant 0 : index
    %c0_135 = arith.constant 0 : index
    %166 = vector.load %arg3[%c0_133, %c0_134, %c0_135] : memref<9x1x256xf32, #tpu.memory_space<vmem>>, vector<1x1x256xf32>
    %167 = vector.shape_cast %166 : vector<1x1x256xf32> to vector<1x256xf32>
    %168 = vector.broadcast %167 : vector<1x256xf32> to vector<4x256xf32>
    %169 = arith.mulf %165, %168 : vector<4x256xf32>
    %cst_136 = arith.constant dense<0.000000e+00> : vector<4x256xf32>
    %170 = tpu.matmul %164, %169, %cst_136 {dimension_numbers = #tpu.dot_dimension_numbers<[1], [0], [0], [1], [0, 0, 1, 1], [], []>} : vector<4x4xf32>, vector<4x256xf32>, vector<4x256xf32> -> vector<4x256xf32>
    %171 = arith.addf %162, %170 : vector<4x256xf32>
    %c1_137 = arith.constant 1 : index
    %c0_138 = arith.constant 0 : index
    %c0_139 = arith.constant 0 : index
    %172 = vector.load %arg7[%c1_137, %c0_138, %c0_139] : memref<9x4x4xf32, #tpu.memory_space<vmem>>, vector<1x4x4xf32>
    %173 = vector.shape_cast %172 : vector<1x4x4xf32> to vector<4x4xf32>
    %c16_i32_140 = arith.constant 16 : i32
    %174 = tpu.dynamic_rotate %161 by %c16_i32_140 dim 1 : vector<4x256xf32>, i32 -> vector<4x256xf32>
    %c1_141 = arith.constant 1 : index
    %c0_142 = arith.constant 0 : index
    %c0_143 = arith.constant 0 : index
    %175 = vector.load %arg3[%c1_141, %c0_142, %c0_143] : memref<9x1x256xf32, #tpu.memory_space<vmem>>, vector<1x1x256xf32>
    %176 = vector.shape_cast %175 : vector<1x1x256xf32> to vector<1x256xf32>
    %177 = vector.broadcast %176 : vector<1x256xf32> to vector<4x256xf32>
    %178 = arith.mulf %174, %177 : vector<4x256xf32>
    %cst_144 = arith.constant dense<0.000000e+00> : vector<4x256xf32>
    %179 = tpu.matmul %173, %178, %cst_144 {dimension_numbers = #tpu.dot_dimension_numbers<[1], [0], [0], [1], [0, 0, 1, 1], [], []>} : vector<4x4xf32>, vector<4x256xf32>, vector<4x256xf32> -> vector<4x256xf32>
    %180 = arith.addf %171, %179 : vector<4x256xf32>
    %c2_145 = arith.constant 2 : index
    %c0_146 = arith.constant 0 : index
    %c0_147 = arith.constant 0 : index
    %181 = vector.load %arg7[%c2_145, %c0_146, %c0_147] : memref<9x4x4xf32, #tpu.memory_space<vmem>>, vector<1x4x4xf32>
    %182 = vector.shape_cast %181 : vector<1x4x4xf32> to vector<4x4xf32>
    %c15_i32_148 = arith.constant 15 : i32
    %183 = tpu.dynamic_rotate %161 by %c15_i32_148 dim 1 : vector<4x256xf32>, i32 -> vector<4x256xf32>
    %c2_149 = arith.constant 2 : index
    %c0_150 = arith.constant 0 : index
    %c0_151 = arith.constant 0 : index
    %184 = vector.load %arg3[%c2_149, %c0_150, %c0_151] : memref<9x1x256xf32, #tpu.memory_space<vmem>>, vector<1x1x256xf32>
    %185 = vector.shape_cast %184 : vector<1x1x256xf32> to vector<1x256xf32>
    %186 = vector.broadcast %185 : vector<1x256xf32> to vector<4x256xf32>
    %187 = arith.mulf %183, %186 : vector<4x256xf32>
    %cst_152 = arith.constant dense<0.000000e+00> : vector<4x256xf32>
    %188 = tpu.matmul %182, %187, %cst_152 {dimension_numbers = #tpu.dot_dimension_numbers<[1], [0], [0], [1], [0, 0, 1, 1], [], []>} : vector<4x4xf32>, vector<4x256xf32>, vector<4x256xf32> -> vector<4x256xf32>
    %189 = arith.addf %180, %188 : vector<4x256xf32>
    %c3_153 = arith.constant 3 : index
    %c0_154 = arith.constant 0 : index
    %c0_155 = arith.constant 0 : index
    %190 = vector.load %arg7[%c3_153, %c0_154, %c0_155] : memref<9x4x4xf32, #tpu.memory_space<vmem>>, vector<1x4x4xf32>
    %191 = vector.shape_cast %190 : vector<1x4x4xf32> to vector<4x4xf32>
    %c1_i32_156 = arith.constant 1 : i32
    %192 = tpu.dynamic_rotate %161 by %c1_i32_156 dim 1 : vector<4x256xf32>, i32 -> vector<4x256xf32>
    %c3_157 = arith.constant 3 : index
    %c0_158 = arith.constant 0 : index
    %c0_159 = arith.constant 0 : index
    %193 = vector.load %arg3[%c3_157, %c0_158, %c0_159] : memref<9x1x256xf32, #tpu.memory_space<vmem>>, vector<1x1x256xf32>
    %194 = vector.shape_cast %193 : vector<1x1x256xf32> to vector<1x256xf32>
    %195 = vector.broadcast %194 : vector<1x256xf32> to vector<4x256xf32>
    %196 = arith.mulf %192, %195 : vector<4x256xf32>
    %cst_160 = arith.constant dense<0.000000e+00> : vector<4x256xf32>
    %197 = tpu.matmul %191, %196, %cst_160 {dimension_numbers = #tpu.dot_dimension_numbers<[1], [0], [0], [1], [0, 0, 1, 1], [], []>} : vector<4x4xf32>, vector<4x256xf32>, vector<4x256xf32> -> vector<4x256xf32>
    %198 = arith.addf %189, %197 : vector<4x256xf32>
    %c4_161 = arith.constant 4 : index
    %c0_162 = arith.constant 0 : index
    %c0_163 = arith.constant 0 : index
    %199 = vector.load %arg7[%c4_161, %c0_162, %c0_163] : memref<9x4x4xf32, #tpu.memory_space<vmem>>, vector<1x4x4xf32>
    %200 = vector.shape_cast %199 : vector<1x4x4xf32> to vector<4x4xf32>
    %cst_164 = arith.constant dense<0.000000e+00> : vector<4x256xf32>
    %201 = tpu.matmul %200, %161, %cst_164 {dimension_numbers = #tpu.dot_dimension_numbers<[1], [0], [0], [1], [0, 0, 1, 1], [], []>} : vector<4x4xf32>, vector<4x256xf32>, vector<4x256xf32> -> vector<4x256xf32>
    %202 = arith.addf %198, %201 : vector<4x256xf32>
    %c5_165 = arith.constant 5 : index
    %c0_166 = arith.constant 0 : index
    %c0_167 = arith.constant 0 : index
    %203 = vector.load %arg7[%c5_165, %c0_166, %c0_167] : memref<9x4x4xf32, #tpu.memory_space<vmem>>, vector<1x4x4xf32>
    %204 = vector.shape_cast %203 : vector<1x4x4xf32> to vector<4x4xf32>
    %c255_i32_168 = arith.constant 255 : i32
    %205 = tpu.dynamic_rotate %161 by %c255_i32_168 dim 1 : vector<4x256xf32>, i32 -> vector<4x256xf32>
    %c5_169 = arith.constant 5 : index
    %c0_170 = arith.constant 0 : index
    %c0_171 = arith.constant 0 : index
    %206 = vector.load %arg3[%c5_169, %c0_170, %c0_171] : memref<9x1x256xf32, #tpu.memory_space<vmem>>, vector<1x1x256xf32>
    %207 = vector.shape_cast %206 : vector<1x1x256xf32> to vector<1x256xf32>
    %208 = vector.broadcast %207 : vector<1x256xf32> to vector<4x256xf32>
    %209 = arith.mulf %205, %208 : vector<4x256xf32>
    %cst_172 = arith.constant dense<0.000000e+00> : vector<4x256xf32>
    %210 = tpu.matmul %204, %209, %cst_172 {dimension_numbers = #tpu.dot_dimension_numbers<[1], [0], [0], [1], [0, 0, 1, 1], [], []>} : vector<4x4xf32>, vector<4x256xf32>, vector<4x256xf32> -> vector<4x256xf32>
    %211 = arith.addf %202, %210 : vector<4x256xf32>
    %c6_173 = arith.constant 6 : index
    %c0_174 = arith.constant 0 : index
    %c0_175 = arith.constant 0 : index
    %212 = vector.load %arg7[%c6_173, %c0_174, %c0_175] : memref<9x4x4xf32, #tpu.memory_space<vmem>>, vector<1x4x4xf32>
    %213 = vector.shape_cast %212 : vector<1x4x4xf32> to vector<4x4xf32>
    %c241_i32_176 = arith.constant 241 : i32
    %214 = tpu.dynamic_rotate %161 by %c241_i32_176 dim 1 : vector<4x256xf32>, i32 -> vector<4x256xf32>
    %c6_177 = arith.constant 6 : index
    %c0_178 = arith.constant 0 : index
    %c0_179 = arith.constant 0 : index
    %215 = vector.load %arg3[%c6_177, %c0_178, %c0_179] : memref<9x1x256xf32, #tpu.memory_space<vmem>>, vector<1x1x256xf32>
    %216 = vector.shape_cast %215 : vector<1x1x256xf32> to vector<1x256xf32>
    %217 = vector.broadcast %216 : vector<1x256xf32> to vector<4x256xf32>
    %218 = arith.mulf %214, %217 : vector<4x256xf32>
    %cst_180 = arith.constant dense<0.000000e+00> : vector<4x256xf32>
    %219 = tpu.matmul %213, %218, %cst_180 {dimension_numbers = #tpu.dot_dimension_numbers<[1], [0], [0], [1], [0, 0, 1, 1], [], []>} : vector<4x4xf32>, vector<4x256xf32>, vector<4x256xf32> -> vector<4x256xf32>
    %220 = arith.addf %211, %219 : vector<4x256xf32>
    %c7_181 = arith.constant 7 : index
    %c0_182 = arith.constant 0 : index
    %c0_183 = arith.constant 0 : index
    %221 = vector.load %arg7[%c7_181, %c0_182, %c0_183] : memref<9x4x4xf32, #tpu.memory_space<vmem>>, vector<1x4x4xf32>
    %222 = vector.shape_cast %221 : vector<1x4x4xf32> to vector<4x4xf32>
    %c240_i32_184 = arith.constant 240 : i32
    %223 = tpu.dynamic_rotate %161 by %c240_i32_184 dim 1 : vector<4x256xf32>, i32 -> vector<4x256xf32>
    %c7_185 = arith.constant 7 : index
    %c0_186 = arith.constant 0 : index
    %c0_187 = arith.constant 0 : index
    %224 = vector.load %arg3[%c7_185, %c0_186, %c0_187] : memref<9x1x256xf32, #tpu.memory_space<vmem>>, vector<1x1x256xf32>
    %225 = vector.shape_cast %224 : vector<1x1x256xf32> to vector<1x256xf32>
    %226 = vector.broadcast %225 : vector<1x256xf32> to vector<4x256xf32>
    %227 = arith.mulf %223, %226 : vector<4x256xf32>
    %cst_188 = arith.constant dense<0.000000e+00> : vector<4x256xf32>
    %228 = tpu.matmul %222, %227, %cst_188 {dimension_numbers = #tpu.dot_dimension_numbers<[1], [0], [0], [1], [0, 0, 1, 1], [], []>} : vector<4x4xf32>, vector<4x256xf32>, vector<4x256xf32> -> vector<4x256xf32>
    %229 = arith.addf %220, %228 : vector<4x256xf32>
    %c8_189 = arith.constant 8 : index
    %c0_190 = arith.constant 0 : index
    %c0_191 = arith.constant 0 : index
    %230 = vector.load %arg7[%c8_189, %c0_190, %c0_191] : memref<9x4x4xf32, #tpu.memory_space<vmem>>, vector<1x4x4xf32>
    %231 = vector.shape_cast %230 : vector<1x4x4xf32> to vector<4x4xf32>
    %c239_i32_192 = arith.constant 239 : i32
    %232 = tpu.dynamic_rotate %161 by %c239_i32_192 dim 1 : vector<4x256xf32>, i32 -> vector<4x256xf32>
    %c8_193 = arith.constant 8 : index
    %c0_194 = arith.constant 0 : index
    %c0_195 = arith.constant 0 : index
    %233 = vector.load %arg3[%c8_193, %c0_194, %c0_195] : memref<9x1x256xf32, #tpu.memory_space<vmem>>, vector<1x1x256xf32>
    %234 = vector.shape_cast %233 : vector<1x1x256xf32> to vector<1x256xf32>
    %235 = vector.broadcast %234 : vector<1x256xf32> to vector<4x256xf32>
    %236 = arith.mulf %232, %235 : vector<4x256xf32>
    %cst_196 = arith.constant dense<0.000000e+00> : vector<4x256xf32>
    %237 = tpu.matmul %231, %236, %cst_196 {dimension_numbers = #tpu.dot_dimension_numbers<[1], [0], [0], [1], [0, 0, 1, 1], [], []>} : vector<4x4xf32>, vector<4x256xf32>, vector<4x256xf32> -> vector<4x256xf32>
    %238 = arith.addf %229, %237 : vector<4x256xf32>
    %c0_197 = arith.constant 0 : index
    %c0_198 = arith.constant 0 : index
    %239 = vector.load %arg8[%c0_197, %c0_198] : memref<4x1xf32, #tpu.memory_space<vmem>>, vector<4x1xf32>
    %240 = vector.broadcast %239 : vector<4x1xf32> to vector<4x256xf32>
    %241 = arith.addf %238, %240 : vector<4x256xf32>
    %cst_199 = arith.constant 0.000000e+00 : f32
    %242 = vector.broadcast %cst_199 : f32 to vector<4x256xf32>
    %243 = arith.maximumf %241, %242 : vector<4x256xf32>
    %c0_200 = arith.constant 0 : index
    %c0_201 = arith.constant 0 : index
    %244 = vector.load %arg9[%c0_200, %c0_201] : memref<2x4xf32, #tpu.memory_space<vmem>>, vector<2x4xf32>
    %cst_202 = arith.constant dense<0.000000e+00> : vector<2x256xf32>
    %245 = tpu.matmul %244, %243, %cst_202 {dimension_numbers = #tpu.dot_dimension_numbers<[1], [0], [0], [1], [0, 0, 1, 1], [], []>} : vector<2x4xf32>, vector<4x256xf32>, vector<2x256xf32> -> vector<2x256xf32>
    %c0_203 = arith.constant 0 : index
    %c0_204 = arith.constant 0 : index
    %246 = vector.load %arg10[%c0_203, %c0_204] : memref<2x1xf32, #tpu.memory_space<vmem>>, vector<2x1xf32>
    %247 = vector.broadcast %246 : vector<2x1xf32> to vector<2x256xf32>
    %248 = arith.addf %245, %247 : vector<2x256xf32>
    %c0_205 = arith.constant 0 : index
    %c0_206 = arith.constant 0 : index
    %c0_207 = arith.constant 0 : index
    %249 = vector.load %arg11[%c0_205, %c0_206, %c0_207] : memref<2x2x256xf32, #tpu.memory_space<vmem>>, vector<1x2x256xf32>
    %250 = vector.shape_cast %249 : vector<1x2x256xf32> to vector<2x256xf32>
    %251 = vector.shape_cast %248 : vector<2x256xf32> to vector<1x2x256xf32>
    tpu.vector_store %arg11[%c0_205, %c0_206, %c0_207], %251 {strides = array<i32>} : memref<2x2x256xf32, #tpu.memory_space<vmem>>, vector<1x2x256xf32>,
    %c1_208 = arith.constant 1 : index
    %c0_209 = arith.constant 0 : index
    %c0_210 = arith.constant 0 : index
    %252 = vector.load %arg1[%c1_208, %c0_209, %c0_210] : memref<2x4x256xf32, #tpu.memory_space<vmem>>, vector<1x4x256xf32>
    %253 = vector.shape_cast %252 : vector<1x4x256xf32> to vector<4x256xf32>
    %c1_211 = arith.constant 1 : index
    %c0_212 = arith.constant 0 : index
    %c0_213 = arith.constant 0 : index
    %254 = vector.load %arg2[%c1_211, %c0_212, %c0_213] : memref<2x4x256xf32, #tpu.memory_space<vmem>>, vector<1x4x256xf32>
    %255 = vector.shape_cast %254 : vector<1x4x256xf32> to vector<4x256xf32>
    %cst_214 = arith.constant 0.000000e+00 : f32
    %256 = vector.broadcast %cst_214 : f32 to vector<4x256xf32>
    %c0_215 = arith.constant 0 : index
    %c0_216 = arith.constant 0 : index
    %c0_217 = arith.constant 0 : index
    %257 = vector.load %arg4[%c0_215, %c0_216, %c0_217] : memref<9x4x4xf32, #tpu.memory_space<vmem>>, vector<1x4x4xf32>
    %258 = vector.shape_cast %257 : vector<1x4x4xf32> to vector<4x4xf32>
    %c17_i32_218 = arith.constant 17 : i32
    %259 = tpu.dynamic_rotate %255 by %c17_i32_218 dim 1 : vector<4x256xf32>, i32 -> vector<4x256xf32>
    %c0_219 = arith.constant 0 : index
    %c0_220 = arith.constant 0 : index
    %c0_221 = arith.constant 0 : index
    %260 = vector.load %arg3[%c0_219, %c0_220, %c0_221] : memref<9x1x256xf32, #tpu.memory_space<vmem>>, vector<1x1x256xf32>
    %261 = vector.shape_cast %260 : vector<1x1x256xf32> to vector<1x256xf32>
    %262 = vector.broadcast %261 : vector<1x256xf32> to vector<4x256xf32>
    %263 = arith.mulf %259, %262 : vector<4x256xf32>
    %cst_222 = arith.constant dense<0.000000e+00> : vector<4x256xf32>
    %264 = tpu.matmul %258, %263, %cst_222 {dimension_numbers = #tpu.dot_dimension_numbers<[1], [0], [0], [1], [0, 0, 1, 1], [], []>} : vector<4x4xf32>, vector<4x256xf32>, vector<4x256xf32> -> vector<4x256xf32>
    %265 = arith.addf %256, %264 : vector<4x256xf32>
    %c0_223 = arith.constant 0 : index
    %c0_224 = arith.constant 0 : index
    %c0_225 = arith.constant 0 : index
    %266 = vector.load %arg5[%c0_223, %c0_224, %c0_225] : memref<9x4x4xf32, #tpu.memory_space<vmem>>, vector<1x4x4xf32>
    %267 = vector.shape_cast %266 : vector<1x4x4xf32> to vector<4x4xf32>
    %c17_i32_226 = arith.constant 17 : i32
    %268 = tpu.dynamic_rotate %253 by %c17_i32_226 dim 1 : vector<4x256xf32>, i32 -> vector<4x256xf32>
    %c0_227 = arith.constant 0 : index
    %c0_228 = arith.constant 0 : index
    %c0_229 = arith.constant 0 : index
    %269 = vector.load %arg3[%c0_227, %c0_228, %c0_229] : memref<9x1x256xf32, #tpu.memory_space<vmem>>, vector<1x1x256xf32>
    %270 = vector.shape_cast %269 : vector<1x1x256xf32> to vector<1x256xf32>
    %271 = vector.broadcast %270 : vector<1x256xf32> to vector<4x256xf32>
    %272 = arith.mulf %268, %271 : vector<4x256xf32>
    %cst_230 = arith.constant dense<0.000000e+00> : vector<4x256xf32>
    %273 = tpu.matmul %267, %272, %cst_230 {dimension_numbers = #tpu.dot_dimension_numbers<[1], [0], [0], [1], [0, 0, 1, 1], [], []>} : vector<4x4xf32>, vector<4x256xf32>, vector<4x256xf32> -> vector<4x256xf32>
    %274 = arith.addf %265, %273 : vector<4x256xf32>
    %c1_231 = arith.constant 1 : index
    %c0_232 = arith.constant 0 : index
    %c0_233 = arith.constant 0 : index
    %275 = vector.load %arg4[%c1_231, %c0_232, %c0_233] : memref<9x4x4xf32, #tpu.memory_space<vmem>>, vector<1x4x4xf32>
    %276 = vector.shape_cast %275 : vector<1x4x4xf32> to vector<4x4xf32>
    %c16_i32_234 = arith.constant 16 : i32
    %277 = tpu.dynamic_rotate %255 by %c16_i32_234 dim 1 : vector<4x256xf32>, i32 -> vector<4x256xf32>
    %c1_235 = arith.constant 1 : index
    %c0_236 = arith.constant 0 : index
    %c0_237 = arith.constant 0 : index
    %278 = vector.load %arg3[%c1_235, %c0_236, %c0_237] : memref<9x1x256xf32, #tpu.memory_space<vmem>>, vector<1x1x256xf32>
    %279 = vector.shape_cast %278 : vector<1x1x256xf32> to vector<1x256xf32>
    %280 = vector.broadcast %279 : vector<1x256xf32> to vector<4x256xf32>
    %281 = arith.mulf %277, %280 : vector<4x256xf32>
    %cst_238 = arith.constant dense<0.000000e+00> : vector<4x256xf32>
    %282 = tpu.matmul %276, %281, %cst_238 {dimension_numbers = #tpu.dot_dimension_numbers<[1], [0], [0], [1], [0, 0, 1, 1], [], []>} : vector<4x4xf32>, vector<4x256xf32>, vector<4x256xf32> -> vector<4x256xf32>
    %283 = arith.addf %274, %282 : vector<4x256xf32>
    %c1_239 = arith.constant 1 : index
    %c0_240 = arith.constant 0 : index
    %c0_241 = arith.constant 0 : index
    %284 = vector.load %arg5[%c1_239, %c0_240, %c0_241] : memref<9x4x4xf32, #tpu.memory_space<vmem>>, vector<1x4x4xf32>
    %285 = vector.shape_cast %284 : vector<1x4x4xf32> to vector<4x4xf32>
    %c16_i32_242 = arith.constant 16 : i32
    %286 = tpu.dynamic_rotate %253 by %c16_i32_242 dim 1 : vector<4x256xf32>, i32 -> vector<4x256xf32>
    %c1_243 = arith.constant 1 : index
    %c0_244 = arith.constant 0 : index
    %c0_245 = arith.constant 0 : index
    %287 = vector.load %arg3[%c1_243, %c0_244, %c0_245] : memref<9x1x256xf32, #tpu.memory_space<vmem>>, vector<1x1x256xf32>
    %288 = vector.shape_cast %287 : vector<1x1x256xf32> to vector<1x256xf32>
    %289 = vector.broadcast %288 : vector<1x256xf32> to vector<4x256xf32>
    %290 = arith.mulf %286, %289 : vector<4x256xf32>
    %cst_246 = arith.constant dense<0.000000e+00> : vector<4x256xf32>
    %291 = tpu.matmul %285, %290, %cst_246 {dimension_numbers = #tpu.dot_dimension_numbers<[1], [0], [0], [1], [0, 0, 1, 1], [], []>} : vector<4x4xf32>, vector<4x256xf32>, vector<4x256xf32> -> vector<4x256xf32>
    %292 = arith.addf %283, %291 : vector<4x256xf32>
    %c2_247 = arith.constant 2 : index
    %c0_248 = arith.constant 0 : index
    %c0_249 = arith.constant 0 : index
    %293 = vector.load %arg4[%c2_247, %c0_248, %c0_249] : memref<9x4x4xf32, #tpu.memory_space<vmem>>, vector<1x4x4xf32>
    %294 = vector.shape_cast %293 : vector<1x4x4xf32> to vector<4x4xf32>
    %c15_i32_250 = arith.constant 15 : i32
    %295 = tpu.dynamic_rotate %255 by %c15_i32_250 dim 1 : vector<4x256xf32>, i32 -> vector<4x256xf32>
    %c2_251 = arith.constant 2 : index
    %c0_252 = arith.constant 0 : index
    %c0_253 = arith.constant 0 : index
    %296 = vector.load %arg3[%c2_251, %c0_252, %c0_253] : memref<9x1x256xf32, #tpu.memory_space<vmem>>, vector<1x1x256xf32>
    %297 = vector.shape_cast %296 : vector<1x1x256xf32> to vector<1x256xf32>
    %298 = vector.broadcast %297 : vector<1x256xf32> to vector<4x256xf32>
    %299 = arith.mulf %295, %298 : vector<4x256xf32>
    %cst_254 = arith.constant dense<0.000000e+00> : vector<4x256xf32>
    %300 = tpu.matmul %294, %299, %cst_254 {dimension_numbers = #tpu.dot_dimension_numbers<[1], [0], [0], [1], [0, 0, 1, 1], [], []>} : vector<4x4xf32>, vector<4x256xf32>, vector<4x256xf32> -> vector<4x256xf32>
    %301 = arith.addf %292, %300 : vector<4x256xf32>
    %c2_255 = arith.constant 2 : index
    %c0_256 = arith.constant 0 : index
    %c0_257 = arith.constant 0 : index
    %302 = vector.load %arg5[%c2_255, %c0_256, %c0_257] : memref<9x4x4xf32, #tpu.memory_space<vmem>>, vector<1x4x4xf32>
    %303 = vector.shape_cast %302 : vector<1x4x4xf32> to vector<4x4xf32>
    %c15_i32_258 = arith.constant 15 : i32
    %304 = tpu.dynamic_rotate %253 by %c15_i32_258 dim 1 : vector<4x256xf32>, i32 -> vector<4x256xf32>
    %c2_259 = arith.constant 2 : index
    %c0_260 = arith.constant 0 : index
    %c0_261 = arith.constant 0 : index
    %305 = vector.load %arg3[%c2_259, %c0_260, %c0_261] : memref<9x1x256xf32, #tpu.memory_space<vmem>>, vector<1x1x256xf32>
    %306 = vector.shape_cast %305 : vector<1x1x256xf32> to vector<1x256xf32>
    %307 = vector.broadcast %306 : vector<1x256xf32> to vector<4x256xf32>
    %308 = arith.mulf %304, %307 : vector<4x256xf32>
    %cst_262 = arith.constant dense<0.000000e+00> : vector<4x256xf32>
    %309 = tpu.matmul %303, %308, %cst_262 {dimension_numbers = #tpu.dot_dimension_numbers<[1], [0], [0], [1], [0, 0, 1, 1], [], []>} : vector<4x4xf32>, vector<4x256xf32>, vector<4x256xf32> -> vector<4x256xf32>
    %310 = arith.addf %301, %309 : vector<4x256xf32>
    %c3_263 = arith.constant 3 : index
    %c0_264 = arith.constant 0 : index
    %c0_265 = arith.constant 0 : index
    %311 = vector.load %arg4[%c3_263, %c0_264, %c0_265] : memref<9x4x4xf32, #tpu.memory_space<vmem>>, vector<1x4x4xf32>
    %312 = vector.shape_cast %311 : vector<1x4x4xf32> to vector<4x4xf32>
    %c1_i32_266 = arith.constant 1 : i32
    %313 = tpu.dynamic_rotate %255 by %c1_i32_266 dim 1 : vector<4x256xf32>, i32 -> vector<4x256xf32>
    %c3_267 = arith.constant 3 : index
    %c0_268 = arith.constant 0 : index
    %c0_269 = arith.constant 0 : index
    %314 = vector.load %arg3[%c3_267, %c0_268, %c0_269] : memref<9x1x256xf32, #tpu.memory_space<vmem>>, vector<1x1x256xf32>
    %315 = vector.shape_cast %314 : vector<1x1x256xf32> to vector<1x256xf32>
    %316 = vector.broadcast %315 : vector<1x256xf32> to vector<4x256xf32>
    %317 = arith.mulf %313, %316 : vector<4x256xf32>
    %cst_270 = arith.constant dense<0.000000e+00> : vector<4x256xf32>
    %318 = tpu.matmul %312, %317, %cst_270 {dimension_numbers = #tpu.dot_dimension_numbers<[1], [0], [0], [1], [0, 0, 1, 1], [], []>} : vector<4x4xf32>, vector<4x256xf32>, vector<4x256xf32> -> vector<4x256xf32>
    %319 = arith.addf %310, %318 : vector<4x256xf32>
    %c3_271 = arith.constant 3 : index
    %c0_272 = arith.constant 0 : index
    %c0_273 = arith.constant 0 : index
    %320 = vector.load %arg5[%c3_271, %c0_272, %c0_273] : memref<9x4x4xf32, #tpu.memory_space<vmem>>, vector<1x4x4xf32>
    %321 = vector.shape_cast %320 : vector<1x4x4xf32> to vector<4x4xf32>
    %c1_i32_274 = arith.constant 1 : i32
    %322 = tpu.dynamic_rotate %253 by %c1_i32_274 dim 1 : vector<4x256xf32>, i32 -> vector<4x256xf32>
    %c3_275 = arith.constant 3 : index
    %c0_276 = arith.constant 0 : index
    %c0_277 = arith.constant 0 : index
    %323 = vector.load %arg3[%c3_275, %c0_276, %c0_277] : memref<9x1x256xf32, #tpu.memory_space<vmem>>, vector<1x1x256xf32>
    %324 = vector.shape_cast %323 : vector<1x1x256xf32> to vector<1x256xf32>
    %325 = vector.broadcast %324 : vector<1x256xf32> to vector<4x256xf32>
    %326 = arith.mulf %322, %325 : vector<4x256xf32>
    %cst_278 = arith.constant dense<0.000000e+00> : vector<4x256xf32>
    %327 = tpu.matmul %321, %326, %cst_278 {dimension_numbers = #tpu.dot_dimension_numbers<[1], [0], [0], [1], [0, 0, 1, 1], [], []>} : vector<4x4xf32>, vector<4x256xf32>, vector<4x256xf32> -> vector<4x256xf32>
    %328 = arith.addf %319, %327 : vector<4x256xf32>
    %c4_279 = arith.constant 4 : index
    %c0_280 = arith.constant 0 : index
    %c0_281 = arith.constant 0 : index
    %329 = vector.load %arg4[%c4_279, %c0_280, %c0_281] : memref<9x4x4xf32, #tpu.memory_space<vmem>>, vector<1x4x4xf32>
    %330 = vector.shape_cast %329 : vector<1x4x4xf32> to vector<4x4xf32>
    %cst_282 = arith.constant dense<0.000000e+00> : vector<4x256xf32>
    %331 = tpu.matmul %330, %255, %cst_282 {dimension_numbers = #tpu.dot_dimension_numbers<[1], [0], [0], [1], [0, 0, 1, 1], [], []>} : vector<4x4xf32>, vector<4x256xf32>, vector<4x256xf32> -> vector<4x256xf32>
    %332 = arith.addf %328, %331 : vector<4x256xf32>
    %c4_283 = arith.constant 4 : index
    %c0_284 = arith.constant 0 : index
    %c0_285 = arith.constant 0 : index
    %333 = vector.load %arg5[%c4_283, %c0_284, %c0_285] : memref<9x4x4xf32, #tpu.memory_space<vmem>>, vector<1x4x4xf32>
    %334 = vector.shape_cast %333 : vector<1x4x4xf32> to vector<4x4xf32>
    %cst_286 = arith.constant dense<0.000000e+00> : vector<4x256xf32>
    %335 = tpu.matmul %334, %253, %cst_286 {dimension_numbers = #tpu.dot_dimension_numbers<[1], [0], [0], [1], [0, 0, 1, 1], [], []>} : vector<4x4xf32>, vector<4x256xf32>, vector<4x256xf32> -> vector<4x256xf32>
    %336 = arith.addf %332, %335 : vector<4x256xf32>
    %c5_287 = arith.constant 5 : index
    %c0_288 = arith.constant 0 : index
    %c0_289 = arith.constant 0 : index
    %337 = vector.load %arg4[%c5_287, %c0_288, %c0_289] : memref<9x4x4xf32, #tpu.memory_space<vmem>>, vector<1x4x4xf32>
    %338 = vector.shape_cast %337 : vector<1x4x4xf32> to vector<4x4xf32>
    %c255_i32_290 = arith.constant 255 : i32
    %339 = tpu.dynamic_rotate %255 by %c255_i32_290 dim 1 : vector<4x256xf32>, i32 -> vector<4x256xf32>
    %c5_291 = arith.constant 5 : index
    %c0_292 = arith.constant 0 : index
    %c0_293 = arith.constant 0 : index
    %340 = vector.load %arg3[%c5_291, %c0_292, %c0_293] : memref<9x1x256xf32, #tpu.memory_space<vmem>>, vector<1x1x256xf32>
    %341 = vector.shape_cast %340 : vector<1x1x256xf32> to vector<1x256xf32>
    %342 = vector.broadcast %341 : vector<1x256xf32> to vector<4x256xf32>
    %343 = arith.mulf %339, %342 : vector<4x256xf32>
    %cst_294 = arith.constant dense<0.000000e+00> : vector<4x256xf32>
    %344 = tpu.matmul %338, %343, %cst_294 {dimension_numbers = #tpu.dot_dimension_numbers<[1], [0], [0], [1], [0, 0, 1, 1], [], []>} : vector<4x4xf32>, vector<4x256xf32>, vector<4x256xf32> -> vector<4x256xf32>
    %345 = arith.addf %336, %344 : vector<4x256xf32>
    %c5_295 = arith.constant 5 : index
    %c0_296 = arith.constant 0 : index
    %c0_297 = arith.constant 0 : index
    %346 = vector.load %arg5[%c5_295, %c0_296, %c0_297] : memref<9x4x4xf32, #tpu.memory_space<vmem>>, vector<1x4x4xf32>
    %347 = vector.shape_cast %346 : vector<1x4x4xf32> to vector<4x4xf32>
    %c255_i32_298 = arith.constant 255 : i32
    %348 = tpu.dynamic_rotate %253 by %c255_i32_298 dim 1 : vector<4x256xf32>, i32 -> vector<4x256xf32>
    %c5_299 = arith.constant 5 : index
    %c0_300 = arith.constant 0 : index
    %c0_301 = arith.constant 0 : index
    %349 = vector.load %arg3[%c5_299, %c0_300, %c0_301] : memref<9x1x256xf32, #tpu.memory_space<vmem>>, vector<1x1x256xf32>
    %350 = vector.shape_cast %349 : vector<1x1x256xf32> to vector<1x256xf32>
    %351 = vector.broadcast %350 : vector<1x256xf32> to vector<4x256xf32>
    %352 = arith.mulf %348, %351 : vector<4x256xf32>
    %cst_302 = arith.constant dense<0.000000e+00> : vector<4x256xf32>
    %353 = tpu.matmul %347, %352, %cst_302 {dimension_numbers = #tpu.dot_dimension_numbers<[1], [0], [0], [1], [0, 0, 1, 1], [], []>} : vector<4x4xf32>, vector<4x256xf32>, vector<4x256xf32> -> vector<4x256xf32>
    %354 = arith.addf %345, %353 : vector<4x256xf32>
    %c6_303 = arith.constant 6 : index
    %c0_304 = arith.constant 0 : index
    %c0_305 = arith.constant 0 : index
    %355 = vector.load %arg4[%c6_303, %c0_304, %c0_305] : memref<9x4x4xf32, #tpu.memory_space<vmem>>, vector<1x4x4xf32>
    %356 = vector.shape_cast %355 : vector<1x4x4xf32> to vector<4x4xf32>
    %c241_i32_306 = arith.constant 241 : i32
    %357 = tpu.dynamic_rotate %255 by %c241_i32_306 dim 1 : vector<4x256xf32>, i32 -> vector<4x256xf32>
    %c6_307 = arith.constant 6 : index
    %c0_308 = arith.constant 0 : index
    %c0_309 = arith.constant 0 : index
    %358 = vector.load %arg3[%c6_307, %c0_308, %c0_309] : memref<9x1x256xf32, #tpu.memory_space<vmem>>, vector<1x1x256xf32>
    %359 = vector.shape_cast %358 : vector<1x1x256xf32> to vector<1x256xf32>
    %360 = vector.broadcast %359 : vector<1x256xf32> to vector<4x256xf32>
    %361 = arith.mulf %357, %360 : vector<4x256xf32>
    %cst_310 = arith.constant dense<0.000000e+00> : vector<4x256xf32>
    %362 = tpu.matmul %356, %361, %cst_310 {dimension_numbers = #tpu.dot_dimension_numbers<[1], [0], [0], [1], [0, 0, 1, 1], [], []>} : vector<4x4xf32>, vector<4x256xf32>, vector<4x256xf32> -> vector<4x256xf32>
    %363 = arith.addf %354, %362 : vector<4x256xf32>
    %c6_311 = arith.constant 6 : index
    %c0_312 = arith.constant 0 : index
    %c0_313 = arith.constant 0 : index
    %364 = vector.load %arg5[%c6_311, %c0_312, %c0_313] : memref<9x4x4xf32, #tpu.memory_space<vmem>>, vector<1x4x4xf32>
    %365 = vector.shape_cast %364 : vector<1x4x4xf32> to vector<4x4xf32>
    %c241_i32_314 = arith.constant 241 : i32
    %366 = tpu.dynamic_rotate %253 by %c241_i32_314 dim 1 : vector<4x256xf32>, i32 -> vector<4x256xf32>
    %c6_315 = arith.constant 6 : index
    %c0_316 = arith.constant 0 : index
    %c0_317 = arith.constant 0 : index
    %367 = vector.load %arg3[%c6_315, %c0_316, %c0_317] : memref<9x1x256xf32, #tpu.memory_space<vmem>>, vector<1x1x256xf32>
    %368 = vector.shape_cast %367 : vector<1x1x256xf32> to vector<1x256xf32>
    %369 = vector.broadcast %368 : vector<1x256xf32> to vector<4x256xf32>
    %370 = arith.mulf %366, %369 : vector<4x256xf32>
    %cst_318 = arith.constant dense<0.000000e+00> : vector<4x256xf32>
    %371 = tpu.matmul %365, %370, %cst_318 {dimension_numbers = #tpu.dot_dimension_numbers<[1], [0], [0], [1], [0, 0, 1, 1], [], []>} : vector<4x4xf32>, vector<4x256xf32>, vector<4x256xf32> -> vector<4x256xf32>
    %372 = arith.addf %363, %371 : vector<4x256xf32>
    %c7_319 = arith.constant 7 : index
    %c0_320 = arith.constant 0 : index
    %c0_321 = arith.constant 0 : index
    %373 = vector.load %arg4[%c7_319, %c0_320, %c0_321] : memref<9x4x4xf32, #tpu.memory_space<vmem>>, vector<1x4x4xf32>
    %374 = vector.shape_cast %373 : vector<1x4x4xf32> to vector<4x4xf32>
    %c240_i32_322 = arith.constant 240 : i32
    %375 = tpu.dynamic_rotate %255 by %c240_i32_322 dim 1 : vector<4x256xf32>, i32 -> vector<4x256xf32>
    %c7_323 = arith.constant 7 : index
    %c0_324 = arith.constant 0 : index
    %c0_325 = arith.constant 0 : index
    %376 = vector.load %arg3[%c7_323, %c0_324, %c0_325] : memref<9x1x256xf32, #tpu.memory_space<vmem>>, vector<1x1x256xf32>
    %377 = vector.shape_cast %376 : vector<1x1x256xf32> to vector<1x256xf32>
    %378 = vector.broadcast %377 : vector<1x256xf32> to vector<4x256xf32>
    %379 = arith.mulf %375, %378 : vector<4x256xf32>
    %cst_326 = arith.constant dense<0.000000e+00> : vector<4x256xf32>
    %380 = tpu.matmul %374, %379, %cst_326 {dimension_numbers = #tpu.dot_dimension_numbers<[1], [0], [0], [1], [0, 0, 1, 1], [], []>} : vector<4x4xf32>, vector<4x256xf32>, vector<4x256xf32> -> vector<4x256xf32>
    %381 = arith.addf %372, %380 : vector<4x256xf32>
    %c7_327 = arith.constant 7 : index
    %c0_328 = arith.constant 0 : index
    %c0_329 = arith.constant 0 : index
    %382 = vector.load %arg5[%c7_327, %c0_328, %c0_329] : memref<9x4x4xf32, #tpu.memory_space<vmem>>, vector<1x4x4xf32>
    %383 = vector.shape_cast %382 : vector<1x4x4xf32> to vector<4x4xf32>
    %c240_i32_330 = arith.constant 240 : i32
    %384 = tpu.dynamic_rotate %253 by %c240_i32_330 dim 1 : vector<4x256xf32>, i32 -> vector<4x256xf32>
    %c7_331 = arith.constant 7 : index
    %c0_332 = arith.constant 0 : index
    %c0_333 = arith.constant 0 : index
    %385 = vector.load %arg3[%c7_331, %c0_332, %c0_333] : memref<9x1x256xf32, #tpu.memory_space<vmem>>, vector<1x1x256xf32>
    %386 = vector.shape_cast %385 : vector<1x1x256xf32> to vector<1x256xf32>
    %387 = vector.broadcast %386 : vector<1x256xf32> to vector<4x256xf32>
    %388 = arith.mulf %384, %387 : vector<4x256xf32>
    %cst_334 = arith.constant dense<0.000000e+00> : vector<4x256xf32>
    %389 = tpu.matmul %383, %388, %cst_334 {dimension_numbers = #tpu.dot_dimension_numbers<[1], [0], [0], [1], [0, 0, 1, 1], [], []>} : vector<4x4xf32>, vector<4x256xf32>, vector<4x256xf32> -> vector<4x256xf32>
    %390 = arith.addf %381, %389 : vector<4x256xf32>
    %c8_335 = arith.constant 8 : index
    %c0_336 = arith.constant 0 : index
    %c0_337 = arith.constant 0 : index
    %391 = vector.load %arg4[%c8_335, %c0_336, %c0_337] : memref<9x4x4xf32, #tpu.memory_space<vmem>>, vector<1x4x4xf32>
    %392 = vector.shape_cast %391 : vector<1x4x4xf32> to vector<4x4xf32>
    %c239_i32_338 = arith.constant 239 : i32
    %393 = tpu.dynamic_rotate %255 by %c239_i32_338 dim 1 : vector<4x256xf32>, i32 -> vector<4x256xf32>
    %c8_339 = arith.constant 8 : index
    %c0_340 = arith.constant 0 : index
    %c0_341 = arith.constant 0 : index
    %394 = vector.load %arg3[%c8_339, %c0_340, %c0_341] : memref<9x1x256xf32, #tpu.memory_space<vmem>>, vector<1x1x256xf32>
    %395 = vector.shape_cast %394 : vector<1x1x256xf32> to vector<1x256xf32>
    %396 = vector.broadcast %395 : vector<1x256xf32> to vector<4x256xf32>
    %397 = arith.mulf %393, %396 : vector<4x256xf32>
    %cst_342 = arith.constant dense<0.000000e+00> : vector<4x256xf32>
    %398 = tpu.matmul %392, %397, %cst_342 {dimension_numbers = #tpu.dot_dimension_numbers<[1], [0], [0], [1], [0, 0, 1, 1], [], []>} : vector<4x4xf32>, vector<4x256xf32>, vector<4x256xf32> -> vector<4x256xf32>
    %399 = arith.addf %390, %398 : vector<4x256xf32>
    %c8_343 = arith.constant 8 : index
    %c0_344 = arith.constant 0 : index
    %c0_345 = arith.constant 0 : index
    %400 = vector.load %arg5[%c8_343, %c0_344, %c0_345] : memref<9x4x4xf32, #tpu.memory_space<vmem>>, vector<1x4x4xf32>
    %401 = vector.shape_cast %400 : vector<1x4x4xf32> to vector<4x4xf32>
    %c239_i32_346 = arith.constant 239 : i32
    %402 = tpu.dynamic_rotate %253 by %c239_i32_346 dim 1 : vector<4x256xf32>, i32 -> vector<4x256xf32>
    %c8_347 = arith.constant 8 : index
    %c0_348 = arith.constant 0 : index
    %c0_349 = arith.constant 0 : index
    %403 = vector.load %arg3[%c8_347, %c0_348, %c0_349] : memref<9x1x256xf32, #tpu.memory_space<vmem>>, vector<1x1x256xf32>
    %404 = vector.shape_cast %403 : vector<1x1x256xf32> to vector<1x256xf32>
    %405 = vector.broadcast %404 : vector<1x256xf32> to vector<4x256xf32>
    %406 = arith.mulf %402, %405 : vector<4x256xf32>
    %cst_350 = arith.constant dense<0.000000e+00> : vector<4x256xf32>
    %407 = tpu.matmul %401, %406, %cst_350 {dimension_numbers = #tpu.dot_dimension_numbers<[1], [0], [0], [1], [0, 0, 1, 1], [], []>} : vector<4x4xf32>, vector<4x256xf32>, vector<4x256xf32> -> vector<4x256xf32>
    %408 = arith.addf %399, %407 : vector<4x256xf32>
    %c0_351 = arith.constant 0 : index
    %c0_352 = arith.constant 0 : index
    %409 = vector.load %arg6[%c0_351, %c0_352] : memref<4x1xf32, #tpu.memory_space<vmem>>, vector<4x1xf32>
    %410 = vector.broadcast %409 : vector<4x1xf32> to vector<4x256xf32>
    %411 = arith.addf %408, %410 : vector<4x256xf32>
    %cst_353 = arith.constant 0.000000e+00 : f32
    %412 = vector.broadcast %cst_353 : f32 to vector<4x256xf32>
    %413 = arith.maximumf %411, %412 : vector<4x256xf32>
    %cst_354 = arith.constant 0.000000e+00 : f32
    %414 = vector.broadcast %cst_354 : f32 to vector<4x256xf32>
    %c0_355 = arith.constant 0 : index
    %c0_356 = arith.constant 0 : index
    %c0_357 = arith.constant 0 : index
    %415 = vector.load %arg7[%c0_355, %c0_356, %c0_357] : memref<9x4x4xf32, #tpu.memory_space<vmem>>, vector<1x4x4xf32>
    %416 = vector.shape_cast %415 : vector<1x4x4xf32> to vector<4x4xf32>
    %c17_i32_358 = arith.constant 17 : i32
    %417 = tpu.dynamic_rotate %413 by %c17_i32_358 dim 1 : vector<4x256xf32>, i32 -> vector<4x256xf32>
    %c0_359 = arith.constant 0 : index
    %c0_360 = arith.constant 0 : index
    %c0_361 = arith.constant 0 : index
    %418 = vector.load %arg3[%c0_359, %c0_360, %c0_361] : memref<9x1x256xf32, #tpu.memory_space<vmem>>, vector<1x1x256xf32>
    %419 = vector.shape_cast %418 : vector<1x1x256xf32> to vector<1x256xf32>
    %420 = vector.broadcast %419 : vector<1x256xf32> to vector<4x256xf32>
    %421 = arith.mulf %417, %420 : vector<4x256xf32>
    %cst_362 = arith.constant dense<0.000000e+00> : vector<4x256xf32>
    %422 = tpu.matmul %416, %421, %cst_362 {dimension_numbers = #tpu.dot_dimension_numbers<[1], [0], [0], [1], [0, 0, 1, 1], [], []>} : vector<4x4xf32>, vector<4x256xf32>, vector<4x256xf32> -> vector<4x256xf32>
    %423 = arith.addf %414, %422 : vector<4x256xf32>
    %c1_363 = arith.constant 1 : index
    %c0_364 = arith.constant 0 : index
    %c0_365 = arith.constant 0 : index
    %424 = vector.load %arg7[%c1_363, %c0_364, %c0_365] : memref<9x4x4xf32, #tpu.memory_space<vmem>>, vector<1x4x4xf32>
    %425 = vector.shape_cast %424 : vector<1x4x4xf32> to vector<4x4xf32>
    %c16_i32_366 = arith.constant 16 : i32
    %426 = tpu.dynamic_rotate %413 by %c16_i32_366 dim 1 : vector<4x256xf32>, i32 -> vector<4x256xf32>
    %c1_367 = arith.constant 1 : index
    %c0_368 = arith.constant 0 : index
    %c0_369 = arith.constant 0 : index
    %427 = vector.load %arg3[%c1_367, %c0_368, %c0_369] : memref<9x1x256xf32, #tpu.memory_space<vmem>>, vector<1x1x256xf32>
    %428 = vector.shape_cast %427 : vector<1x1x256xf32> to vector<1x256xf32>
    %429 = vector.broadcast %428 : vector<1x256xf32> to vector<4x256xf32>
    %430 = arith.mulf %426, %429 : vector<4x256xf32>
    %cst_370 = arith.constant dense<0.000000e+00> : vector<4x256xf32>
    %431 = tpu.matmul %425, %430, %cst_370 {dimension_numbers = #tpu.dot_dimension_numbers<[1], [0], [0], [1], [0, 0, 1, 1], [], []>} : vector<4x4xf32>, vector<4x256xf32>, vector<4x256xf32> -> vector<4x256xf32>
    %432 = arith.addf %423, %431 : vector<4x256xf32>
    %c2_371 = arith.constant 2 : index
    %c0_372 = arith.constant 0 : index
    %c0_373 = arith.constant 0 : index
    %433 = vector.load %arg7[%c2_371, %c0_372, %c0_373] : memref<9x4x4xf32, #tpu.memory_space<vmem>>, vector<1x4x4xf32>
    %434 = vector.shape_cast %433 : vector<1x4x4xf32> to vector<4x4xf32>
    %c15_i32_374 = arith.constant 15 : i32
    %435 = tpu.dynamic_rotate %413 by %c15_i32_374 dim 1 : vector<4x256xf32>, i32 -> vector<4x256xf32>
    %c2_375 = arith.constant 2 : index
    %c0_376 = arith.constant 0 : index
    %c0_377 = arith.constant 0 : index
    %436 = vector.load %arg3[%c2_375, %c0_376, %c0_377] : memref<9x1x256xf32, #tpu.memory_space<vmem>>, vector<1x1x256xf32>
    %437 = vector.shape_cast %436 : vector<1x1x256xf32> to vector<1x256xf32>
    %438 = vector.broadcast %437 : vector<1x256xf32> to vector<4x256xf32>
    %439 = arith.mulf %435, %438 : vector<4x256xf32>
    %cst_378 = arith.constant dense<0.000000e+00> : vector<4x256xf32>
    %440 = tpu.matmul %434, %439, %cst_378 {dimension_numbers = #tpu.dot_dimension_numbers<[1], [0], [0], [1], [0, 0, 1, 1], [], []>} : vector<4x4xf32>, vector<4x256xf32>, vector<4x256xf32> -> vector<4x256xf32>
    %441 = arith.addf %432, %440 : vector<4x256xf32>
    %c3_379 = arith.constant 3 : index
    %c0_380 = arith.constant 0 : index
    %c0_381 = arith.constant 0 : index
    %442 = vector.load %arg7[%c3_379, %c0_380, %c0_381] : memref<9x4x4xf32, #tpu.memory_space<vmem>>, vector<1x4x4xf32>
    %443 = vector.shape_cast %442 : vector<1x4x4xf32> to vector<4x4xf32>
    %c1_i32_382 = arith.constant 1 : i32
    %444 = tpu.dynamic_rotate %413 by %c1_i32_382 dim 1 : vector<4x256xf32>, i32 -> vector<4x256xf32>
    %c3_383 = arith.constant 3 : index
    %c0_384 = arith.constant 0 : index
    %c0_385 = arith.constant 0 : index
    %445 = vector.load %arg3[%c3_383, %c0_384, %c0_385] : memref<9x1x256xf32, #tpu.memory_space<vmem>>, vector<1x1x256xf32>
    %446 = vector.shape_cast %445 : vector<1x1x256xf32> to vector<1x256xf32>
    %447 = vector.broadcast %446 : vector<1x256xf32> to vector<4x256xf32>
    %448 = arith.mulf %444, %447 : vector<4x256xf32>
    %cst_386 = arith.constant dense<0.000000e+00> : vector<4x256xf32>
    %449 = tpu.matmul %443, %448, %cst_386 {dimension_numbers = #tpu.dot_dimension_numbers<[1], [0], [0], [1], [0, 0, 1, 1], [], []>} : vector<4x4xf32>, vector<4x256xf32>, vector<4x256xf32> -> vector<4x256xf32>
    %450 = arith.addf %441, %449 : vector<4x256xf32>
    %c4_387 = arith.constant 4 : index
    %c0_388 = arith.constant 0 : index
    %c0_389 = arith.constant 0 : index
    %451 = vector.load %arg7[%c4_387, %c0_388, %c0_389] : memref<9x4x4xf32, #tpu.memory_space<vmem>>, vector<1x4x4xf32>
    %452 = vector.shape_cast %451 : vector<1x4x4xf32> to vector<4x4xf32>
    %cst_390 = arith.constant dense<0.000000e+00> : vector<4x256xf32>
    %453 = tpu.matmul %452, %413, %cst_390 {dimension_numbers = #tpu.dot_dimension_numbers<[1], [0], [0], [1], [0, 0, 1, 1], [], []>} : vector<4x4xf32>, vector<4x256xf32>, vector<4x256xf32> -> vector<4x256xf32>
    %454 = arith.addf %450, %453 : vector<4x256xf32>
    %c5_391 = arith.constant 5 : index
    %c0_392 = arith.constant 0 : index
    %c0_393 = arith.constant 0 : index
    %455 = vector.load %arg7[%c5_391, %c0_392, %c0_393] : memref<9x4x4xf32, #tpu.memory_space<vmem>>, vector<1x4x4xf32>
    %456 = vector.shape_cast %455 : vector<1x4x4xf32> to vector<4x4xf32>
    %c255_i32_394 = arith.constant 255 : i32
    %457 = tpu.dynamic_rotate %413 by %c255_i32_394 dim 1 : vector<4x256xf32>, i32 -> vector<4x256xf32>
    %c5_395 = arith.constant 5 : index
    %c0_396 = arith.constant 0 : index
    %c0_397 = arith.constant 0 : index
    %458 = vector.load %arg3[%c5_395, %c0_396, %c0_397] : memref<9x1x256xf32, #tpu.memory_space<vmem>>, vector<1x1x256xf32>
    %459 = vector.shape_cast %458 : vector<1x1x256xf32> to vector<1x256xf32>
    %460 = vector.broadcast %459 : vector<1x256xf32> to vector<4x256xf32>
    %461 = arith.mulf %457, %460 : vector<4x256xf32>
    %cst_398 = arith.constant dense<0.000000e+00> : vector<4x256xf32>
    %462 = tpu.matmul %456, %461, %cst_398 {dimension_numbers = #tpu.dot_dimension_numbers<[1], [0], [0], [1], [0, 0, 1, 1], [], []>} : vector<4x4xf32>, vector<4x256xf32>, vector<4x256xf32> -> vector<4x256xf32>
    %463 = arith.addf %454, %462 : vector<4x256xf32>
    %c6_399 = arith.constant 6 : index
    %c0_400 = arith.constant 0 : index
    %c0_401 = arith.constant 0 : index
    %464 = vector.load %arg7[%c6_399, %c0_400, %c0_401] : memref<9x4x4xf32, #tpu.memory_space<vmem>>, vector<1x4x4xf32>
    %465 = vector.shape_cast %464 : vector<1x4x4xf32> to vector<4x4xf32>
    %c241_i32_402 = arith.constant 241 : i32
    %466 = tpu.dynamic_rotate %413 by %c241_i32_402 dim 1 : vector<4x256xf32>, i32 -> vector<4x256xf32>
    %c6_403 = arith.constant 6 : index
    %c0_404 = arith.constant 0 : index
    %c0_405 = arith.constant 0 : index
    %467 = vector.load %arg3[%c6_403, %c0_404, %c0_405] : memref<9x1x256xf32, #tpu.memory_space<vmem>>, vector<1x1x256xf32>
    %468 = vector.shape_cast %467 : vector<1x1x256xf32> to vector<1x256xf32>
    %469 = vector.broadcast %468 : vector<1x256xf32> to vector<4x256xf32>
    %470 = arith.mulf %466, %469 : vector<4x256xf32>
    %cst_406 = arith.constant dense<0.000000e+00> : vector<4x256xf32>
    %471 = tpu.matmul %465, %470, %cst_406 {dimension_numbers = #tpu.dot_dimension_numbers<[1], [0], [0], [1], [0, 0, 1, 1], [], []>} : vector<4x4xf32>, vector<4x256xf32>, vector<4x256xf32> -> vector<4x256xf32>
    %472 = arith.addf %463, %471 : vector<4x256xf32>
    %c7_407 = arith.constant 7 : index
    %c0_408 = arith.constant 0 : index
    %c0_409 = arith.constant 0 : index
    %473 = vector.load %arg7[%c7_407, %c0_408, %c0_409] : memref<9x4x4xf32, #tpu.memory_space<vmem>>, vector<1x4x4xf32>
    %474 = vector.shape_cast %473 : vector<1x4x4xf32> to vector<4x4xf32>
    %c240_i32_410 = arith.constant 240 : i32
    %475 = tpu.dynamic_rotate %413 by %c240_i32_410 dim 1 : vector<4x256xf32>, i32 -> vector<4x256xf32>
    %c7_411 = arith.constant 7 : index
    %c0_412 = arith.constant 0 : index
    %c0_413 = arith.constant 0 : index
    %476 = vector.load %arg3[%c7_411, %c0_412, %c0_413] : memref<9x1x256xf32, #tpu.memory_space<vmem>>, vector<1x1x256xf32>
    %477 = vector.shape_cast %476 : vector<1x1x256xf32> to vector<1x256xf32>
    %478 = vector.broadcast %477 : vector<1x256xf32> to vector<4x256xf32>
    %479 = arith.mulf %475, %478 : vector<4x256xf32>
    %cst_414 = arith.constant dense<0.000000e+00> : vector<4x256xf32>
    %480 = tpu.matmul %474, %479, %cst_414 {dimension_numbers = #tpu.dot_dimension_numbers<[1], [0], [0], [1], [0, 0, 1, 1], [], []>} : vector<4x4xf32>, vector<4x256xf32>, vector<4x256xf32> -> vector<4x256xf32>
    %481 = arith.addf %472, %480 : vector<4x256xf32>
    %c8_415 = arith.constant 8 : index
    %c0_416 = arith.constant 0 : index
    %c0_417 = arith.constant 0 : index
    %482 = vector.load %arg7[%c8_415, %c0_416, %c0_417] : memref<9x4x4xf32, #tpu.memory_space<vmem>>, vector<1x4x4xf32>
    %483 = vector.shape_cast %482 : vector<1x4x4xf32> to vector<4x4xf32>
    %c239_i32_418 = arith.constant 239 : i32
    %484 = tpu.dynamic_rotate %413 by %c239_i32_418 dim 1 : vector<4x256xf32>, i32 -> vector<4x256xf32>
    %c8_419 = arith.constant 8 : index
    %c0_420 = arith.constant 0 : index
    %c0_421 = arith.constant 0 : index
    %485 = vector.load %arg3[%c8_419, %c0_420, %c0_421] : memref<9x1x256xf32, #tpu.memory_space<vmem>>, vector<1x1x256xf32>
    %486 = vector.shape_cast %485 : vector<1x1x256xf32> to vector<1x256xf32>
    %487 = vector.broadcast %486 : vector<1x256xf32> to vector<4x256xf32>
    %488 = arith.mulf %484, %487 : vector<4x256xf32>
    %cst_422 = arith.constant dense<0.000000e+00> : vector<4x256xf32>
    %489 = tpu.matmul %483, %488, %cst_422 {dimension_numbers = #tpu.dot_dimension_numbers<[1], [0], [0], [1], [0, 0, 1, 1], [], []>} : vector<4x4xf32>, vector<4x256xf32>, vector<4x256xf32> -> vector<4x256xf32>
    %490 = arith.addf %481, %489 : vector<4x256xf32>
    %c0_423 = arith.constant 0 : index
    %c0_424 = arith.constant 0 : index
    %491 = vector.load %arg8[%c0_423, %c0_424] : memref<4x1xf32, #tpu.memory_space<vmem>>, vector<4x1xf32>
    %492 = vector.broadcast %491 : vector<4x1xf32> to vector<4x256xf32>
    %493 = arith.addf %490, %492 : vector<4x256xf32>
    %cst_425 = arith.constant 0.000000e+00 : f32
    %494 = vector.broadcast %cst_425 : f32 to vector<4x256xf32>
    %495 = arith.maximumf %493, %494 : vector<4x256xf32>
    %c0_426 = arith.constant 0 : index
    %c0_427 = arith.constant 0 : index
    %496 = vector.load %arg9[%c0_426, %c0_427] : memref<2x4xf32, #tpu.memory_space<vmem>>, vector<2x4xf32>
    %cst_428 = arith.constant dense<0.000000e+00> : vector<2x256xf32>
    %497 = tpu.matmul %496, %495, %cst_428 {dimension_numbers = #tpu.dot_dimension_numbers<[1], [0], [0], [1], [0, 0, 1, 1], [], []>} : vector<2x4xf32>, vector<4x256xf32>, vector<2x256xf32> -> vector<2x256xf32>
    %c0_429 = arith.constant 0 : index
    %c0_430 = arith.constant 0 : index
    %498 = vector.load %arg10[%c0_429, %c0_430] : memref<2x1xf32, #tpu.memory_space<vmem>>, vector<2x1xf32>
    %499 = vector.broadcast %498 : vector<2x1xf32> to vector<2x256xf32>
    %500 = arith.addf %497, %499 : vector<2x256xf32>
    %c1_431 = arith.constant 1 : index
    %c0_432 = arith.constant 0 : index
    %c0_433 = arith.constant 0 : index
    %501 = vector.load %arg11[%c1_431, %c0_432, %c0_433] : memref<2x2x256xf32, #tpu.memory_space<vmem>>, vector<1x2x256xf32>
    %502 = vector.shape_cast %501 : vector<1x2x256xf32> to vector<2x256xf32>
    %503 = vector.shape_cast %500 : vector<2x256xf32> to vector<1x2x256xf32>
    tpu.vector_store %arg11[%c1_431, %c0_432, %c0_433], %503 {strides = array<i32>} : memref<2x2x256xf32, #tpu.memory_space<vmem>>, vector<1x2x256xf32>,
    return
  }
  func.func @transform_0(%arg0: i32) -> (i32, i32, i32) {
    %c0_i32 = arith.constant 0 : i32
    %c0_i32_0 = arith.constant 0 : i32
    %c0_i32_1 = arith.constant 0 : i32
    %c0_i32_2 = arith.constant 0 : i32
    return %c0_i32, %c0_i32_0, %c0_i32_1 : i32, i32, i32
  }
  func.func @transform_1(%arg0: i32) -> (i32, i32, i32) {
    %c0_i32 = arith.constant 0 : i32
    %c0_i32_0 = arith.constant 0 : i32
    %c0_i32_1 = arith.constant 0 : i32
    %c0_i32_2 = arith.constant 0 : i32
    return %c0_i32, %c0_i32_0, %c0_i32_1 : i32, i32, i32
  }
  func.func @transform_2(%arg0: i32) -> (i32, i32, i32) {
    %c0_i32 = arith.constant 0 : i32
    %c0_i32_0 = arith.constant 0 : i32
    %c0_i32_1 = arith.constant 0 : i32
    %c0_i32_2 = arith.constant 0 : i32
    return %c0_i32, %c0_i32_0, %c0_i32_1 : i32, i32, i32
  }
  func.func @transform_3(%arg0: i32) -> (i32, i32, i32) {
    %c0_i32 = arith.constant 0 : i32
    %c0_i32_0 = arith.constant 0 : i32
    %c0_i32_1 = arith.constant 0 : i32
    %c0_i32_2 = arith.constant 0 : i32
    return %c0_i32, %c0_i32_0, %c0_i32_1 : i32, i32, i32
  }
  func.func @transform_4(%arg0: i32) -> (i32, i32, i32) {
    %c0_i32 = arith.constant 0 : i32
    %c0_i32_0 = arith.constant 0 : i32
    %c0_i32_1 = arith.constant 0 : i32
    %c0_i32_2 = arith.constant 0 : i32
    return %c0_i32, %c0_i32_0, %c0_i32_1 : i32, i32, i32
  }
  func.func @transform_5(%arg0: i32) -> (i32, i32) {
    %c0_i32 = arith.constant 0 : i32
    %c0_i32_0 = arith.constant 0 : i32
    %c0_i32_1 = arith.constant 0 : i32
    return %c0_i32, %c0_i32_0 : i32, i32
  }
  func.func @transform_6(%arg0: i32) -> (i32, i32, i32) {
    %c0_i32 = arith.constant 0 : i32
    %c0_i32_0 = arith.constant 0 : i32
    %c0_i32_1 = arith.constant 0 : i32
    %c0_i32_2 = arith.constant 0 : i32
    return %c0_i32, %c0_i32_0, %c0_i32_1 : i32, i32, i32
  }
  func.func @transform_7(%arg0: i32) -> (i32, i32) {
    %c0_i32 = arith.constant 0 : i32
    %c0_i32_0 = arith.constant 0 : i32
    %c0_i32_1 = arith.constant 0 : i32
    return %c0_i32, %c0_i32_0 : i32, i32
  }
  func.func @transform_8(%arg0: i32) -> (i32, i32) {
    %c0_i32 = arith.constant 0 : i32
    %c0_i32_0 = arith.constant 0 : i32
    %c0_i32_1 = arith.constant 0 : i32
    return %c0_i32, %c0_i32_0 : i32, i32
  }
  func.func @transform_9(%arg0: i32) -> (i32, i32) {
    %c0_i32 = arith.constant 0 : i32
    %c0_i32_0 = arith.constant 0 : i32
    %c0_i32_1 = arith.constant 0 : i32
    return %c0_i32, %c0_i32_0 : i32, i32
  }
  func.func @transform_10(%arg0: i32) -> (i32, i32, i32) {
    %c0_i32 = arith.constant 0 : i32
    %c0_i32_0 = arith.constant 0 : i32
    %c0_i32_1 = arith.constant 0 : i32
    %c0_i32_2 = arith.constant 0 : i32
    return %c0_i32, %c0_i32_0, %c0_i32_1 : i32, i32, i32
  }
}

</mosaic_0001>

<llo_original>
// kernel: output_block.1
$region0: #{output_block.1}
  #allocation0 [shape = 'u32[]', space=smem, size = 0x4, offset = 0x4, fixed_abs, tag = 'smem constant byte address 0x4 - core index']
  #allocation1 [shape = 'u32[144,128]{1,0:T(1,128)}', space=vmem, size = 0x12000, scoped, tag = 'internal scratch']
  %s0 = inlined_call_operand.vmem [shape: f32[2,4,256], index: 0, kind: input, shape index: {}]
  %s1 = inlined_call_operand.vmem [shape: f32[2,4,256], index: 1, kind: input, shape index: {}]
  %s2 = inlined_call_operand.vmem [shape: f32[9,1,256], index: 2, kind: input, shape index: {}]
  %s3 = inlined_call_operand.vmem [shape: f32[9,4,4], index: 3, kind: input, shape index: {}]
  %s4 = inlined_call_operand.vmem [shape: f32[9,4,4], index: 4, kind: input, shape index: {}]
  %s5 = inlined_call_operand.vmem [shape: f32[4,1], index: 5, kind: input, shape index: {}]
  %s6 = inlined_call_operand.vmem [shape: f32[9,4,4], index: 6, kind: input, shape index: {}]
  %s7 = inlined_call_operand.vmem [shape: f32[4,1], index: 7, kind: input, shape index: {}]
  %s8 = inlined_call_operand.vmem [shape: f32[2,4], index: 8, kind: input, shape index: {}]
  %s9 = inlined_call_operand.vmem [shape: f32[2,1], index: 9, kind: input, shape index: {}]
  %s10 = inlined_call_operand.vmem [shape: f32[2,2,256], index: 10, kind: output, shape index: {}]
  %s11 = sld [smem:[#allocation0]]
  $region50: #{output_block.1} parent=0
    _
  %s13 = ssub.s32 1, %s11
  %s14 = scalar_select 0, %s13, %s11
  // Predicated region
  $region2: #{output_block.1} parent=0 // pred_check
    _
  $region3: #{output_block.1} parent=0 // pred_check_branch
    %16 = sbr.rel (0) target = $region5
  $region4: #{output_block.1} parent=0 // pred_region
    _
  $region5: #{output_block.1} parent=0 // pred_fallthru
    _
  // Predicated region
  $region6: #{output_block.1} parent=0 // pred_check
    _
  $region7: #{output_block.1} parent=0 // pred_check_branch
    %18 = sbr.rel (0) target = $region9
  $region8: #{output_block.1} parent=0 // pred_region
    _
  $region9: #{output_block.1} parent=0 // pred_fallthru
    _
  // Predicated region
  $region10: #{output_block.1} parent=0 // pred_check
    _
  $region11: #{output_block.1} parent=0 // pred_check_branch
    %20 = sbr.rel (0) target = $region13
  $region12: #{output_block.1} parent=0 // pred_region
    _
  $region13: #{output_block.1} parent=0 // pred_fallthru
    _
  // Predicated region
  $region14: #{output_block.1} parent=0 // pred_check
    _
  $region15: #{output_block.1} parent=0 // pred_check_branch
    %22 = sbr.rel (0) target = $region17
  $region16: #{output_block.1} parent=0 // pred_region
    _
  $region17: #{output_block.1} parent=0 // pred_fallthru
    _
  // Predicated region
  $region18: #{output_block.1} parent=0 // pred_check
    _
  $region19: #{output_block.1} parent=0 // pred_check_branch
    %24 = sbr.rel (0) target = $region21
  $region20: #{output_block.1} parent=0 // pred_region
    _
  $region21: #{output_block.1} parent=0 // pred_fallthru
    _
  // Predicated region
  $region22: #{output_block.1} parent=0 // pred_check
    _
  $region23: #{output_block.1} parent=0 // pred_check_branch
    %26 = sbr.rel (0) target = $region25
  $region24: #{output_block.1} parent=0 // pred_region
    _
  $region25: #{output_block.1} parent=0 // pred_fallthru
    _
  // Predicated region
  $region26: #{output_block.1} parent=0 // pred_check
    _
  $region27: #{output_block.1} parent=0 // pred_check_branch
    %28 = sbr.rel (0) target = $region29
  $region28: #{output_block.1} parent=0 // pred_region
    _
  $region29: #{output_block.1} parent=0 // pred_fallthru
    _
  // Predicated region
  $region30: #{output_block.1} parent=0 // pred_check
    _
  $region31: #{output_block.1} parent=0 // pred_check_branch
    %30 = sbr.rel (0) target = $region33
  $region32: #{output_block.1} parent=0 // pred_region
    _
  $region33: #{output_block.1} parent=0 // pred_fallthru
    _
  // Predicated region
  $region34: #{output_block.1} parent=0 // pred_check
    _
  $region35: #{output_block.1} parent=0 // pred_check_branch
    %32 = sbr.rel (0) target = $region37
  $region36: #{output_block.1} parent=0 // pred_region
    _
  $region37: #{output_block.1} parent=0 // pred_fallthru
    _
  // Predicated region
  $region38: #{output_block.1} parent=0 // pred_check
    _
  $region39: #{output_block.1} parent=0 // pred_check_branch
    %34 = sbr.rel (0) target = $region41
  $region40: #{output_block.1} parent=0 // pred_region
    _
  $region41: #{output_block.1} parent=0 // pred_fallthru
    _
  %v35 = vld [vmem:[%s0] sm:$0xff]
  %v36 = vld [vmem:[%s1] sm:$0xff]
  %v37 = vld [vmem:[%s3] sm:$0xf]
  %v39 = vcombine.high %v36, %v36
  %41 = vrot.lane.b32.xlu0 %v36, 17
  %v42 = vpop.permute.xlu0 %41
  %43 = vrot.lane.b32.xlu0 %v39, 17
  %v44 = vpop.permute.xlu0 %43
  %v45 = vlaneseq
  %v46 = vand.u32 %v45, 127
  %vm47 = vcmp.lt.s32.totalorder %v46, 17
  %v48 = vsel %vm47, %v42, %v44
  %v49 = vsel %vm47, %v44, %v42
  %v50 = vld [vmem:[%s2] sm:$0x3]
  %v52 = vlaneseq
  %v53 = vshrl.u32 %v52, 7
  %v54 = vsub.s32 0, %v53
  %v55 = vrot.slane %v50, %v54
  %v56 = vlaneseq
  %v57 = vshrl.u32 %v56, 7
  %v58 = vsub.s32 1, %v57
  %v59 = vrot.slane %v50, %v58
  %v62 = vmul.f32 %v49, %v55
  %v63 = vmul.f32 %v48, %v59
  %v64 = vld [vmem:[%s4] sm:$0xf]
  %v66 = vcombine.high %v35, %v35
  %68 = vrot.lane.b32.xlu0 %v35, 17
  %v69 = vpop.permute.xlu0 %68
  %70 = vrot.lane.b32.xlu0 %v66, 17
  %v71 = vpop.permute.xlu0 %70
  %v72 = vsel %vm47, %v69, %v71
  %v73 = vsel %vm47, %v71, %v69
  %v74 = vmul.f32 %v73, %v55
  %v75 = vmul.f32 %v72, %v59
  %vm76 = vcmask 31744
  %v78 = vsel %vm76, %v64, 0
  %vm80 = vcmask 1043456
  %v82 = vsel %vm80, %v74, 0
  %v85 = vsel %vm80, %v75, 0
  %87 = vmatprep.subr.mxu0 %v85
  %88 = vmatpush1.msra.mxu0 %v82
  %89 = vmatprep.subr.mxu0 0.0
  %90 = vmatpush1.msra.mxu0 0.0
  %91 = vmatprep.subr.mxu0 0.0
  %92 = vmatpush1.msra.mxu0 0.0
  %93 = vmatprep.subr.mxu0 0.0
  %94 = vmatpush1.msra.mxu0 0.0
  %95 = vmatprep.subr.mxu0 0.0
  %96 = vmatpush1.msra.mxu0 0.0
  %97 = vmatprep.subr.mxu0 0.0
  %98 = vmatpush1.msra.mxu0 0.0
  %99 = vmatprep.subr.mxu0 0.0
  %100 = vmatpush1.msra.mxu0 0.0
  %101 = vmatprep.subr.mxu0 0.0
  %102 = vmatpush1.msra.mxu0 0.0
  %103 = vmatprep.subr.mxu0 0.0
  %104 = vmatpush1.msra.mxu0 0.0
  %105 = vmatprep.subr.mxu0 0.0
  %106 = vmatpush1.msra.mxu0 0.0
  %107 = vmatprep.subr.mxu0 0.0
  %108 = vmatpush1.msra.mxu0 0.0
  %109 = vmatprep.subr.mxu0 0.0
  %110 = vmatpush1.msra.mxu0 0.0
  %111 = vmatprep.subr.mxu0 0.0
  %112 = vmatpush1.msra.mxu0 0.0
  %113 = vmatprep.subr.mxu0 0.0
  %114 = vmatpush1.msra.mxu0 0.0
  %115 = vmatprep.subr.mxu0 0.0
  %116 = vmatpush1.msra.mxu0 0.0
  %117 = vmatprep.subr.mxu0 0.0
  %118 = vmatpush1.msra.mxu0 0.0
  %119 = vmatprep.subr.mxu0 0.0
  %120 = vmatpush1.msra.mxu0 0.0
  %121 = vmatprep.subr.mxu0 0.0
  %122 = vmatpush1.msra.mxu0 0.0
  %123 = vmatprep.subr.mxu0 0.0
  %124 = vmatpush1.msra.mxu0 0.0
  %125 = vmatprep.subr.mxu0 0.0
  %126 = vmatpush1.msra.mxu0 0.0
  %127 = vmatprep.subr.mxu0 0.0
  %128 = vmatpush1.msra.mxu0 0.0
  %129 = vmatprep.subr.mxu0 0.0
  %130 = vmatpush1.msra.mxu0 0.0
  %131 = vmatprep.subr.mxu0 0.0
  %132 = vmatpush1.msra.mxu0 0.0
  %133 = vmatprep.subr.mxu0 0.0
  %134 = vmatpush1.msra.mxu0 0.0
  %135 = vmatprep.subr.mxu0 0.0
  %136 = vmatpush1.msra.mxu0 0.0
  %137 = vmatprep.subr.mxu0 0.0
  %138 = vmatpush1.msra.mxu0 0.0
  %139 = vmatprep.subr.mxu0 0.0
  %140 = vmatpush1.msra.mxu0 0.0
  %141 = vmatprep.subr.mxu0 0.0
  %142 = vmatpush1.msra.mxu0 0.0
  %143 = vmatprep.subr.mxu0 0.0
  %144 = vmatpush1.msra.mxu0 0.0
  %145 = vmatprep.subr.mxu0 0.0
  %146 = vmatpush1.msra.mxu0 0.0
  %147 = vmatprep.subr.mxu0 0.0
  %148 = vmatpush1.msra.mxu0 0.0
  %149 = vmatprep.subr.mxu0 0.0
  %150 = vmatpush1.msra.mxu0 0.0
  %151 = vmatprep.mubr.f32.mxu0 0.0
  %152 = vmatmul.mubr.f32.gmra.mrb[0].mxu0 %v78
  %v153 = vpop.f32.mrb[0].mxu0
  %v154 = vadd.f32 0.0, %v153
  %v155 = vpop.f32.mrb[0].mxu0
  %v156 = vadd.f32 0.0, %v155
  %157 = vdwg.mxu0
  %v159 = vsel %vm76, %v37, 0
  %v162 = vsel %vm80, %v62, 0
  %v165 = vsel %vm80, %v63, 0
  %167 = vmatprep.subr.mxu0 %v165
  %168 = vmatpush1.msra.mxu0 %v162
  %169 = vmatprep.subr.mxu0 0.0
  %170 = vmatpush1.msra.mxu0 0.0
  %171 = vmatprep.subr.mxu0 0.0
  %172 = vmatpush1.msra.mxu0 0.0
  %173 = vmatprep.subr.mxu0 0.0
  %174 = vmatpush1.msra.mxu0 0.0
  %175 = vmatprep.subr.mxu0 0.0
  %176 = vmatpush1.msra.mxu0 0.0
  %177 = vmatprep.subr.mxu0 0.0
  %178 = vmatpush1.msra.mxu0 0.0
  %179 = vmatprep.subr.mxu0 0.0
  %180 = vmatpush1.msra.mxu0 0.0
  %181 = vmatprep.subr.mxu0 0.0
  %182 = vmatpush1.msra.mxu0 0.0
  %183 = vmatprep.subr.mxu0 0.0
  %184 = vmatpush1.msra.mxu0 0.0
  %185 = vmatprep.subr.mxu0 0.0
  %186 = vmatpush1.msra.mxu0 0.0
  %187 = vmatprep.subr.mxu0 0.0
  %188 = vmatpush1.msra.mxu0 0.0
  %189 = vmatprep.subr.mxu0 0.0
  %190 = vmatpush1.msra.mxu0 0.0
  %191 = vmatprep.subr.mxu0 0.0
  %192 = vmatpush1.msra.mxu0 0.0
  %193 = vmatprep.subr.mxu0 0.0
  %194 = vmatpush1.msra.mxu0 0.0
  %195 = vmatprep.subr.mxu0 0.0
  %196 = vmatpush1.msra.mxu0 0.0
  %197 = vmatprep.subr.mxu0 0.0
  %198 = vmatpush1.msra.mxu0 0.0
  %199 = vmatprep.subr.mxu0 0.0
  %200 = vmatpush1.msra.mxu0 0.0
  %201 = vmatprep.subr.mxu0 0.0
  %202 = vmatpush1.msra.mxu0 0.0
  %203 = vmatprep.subr.mxu0 0.0
  %204 = vmatpush1.msra.mxu0 0.0
  %205 = vmatprep.subr.mxu0 0.0
  %206 = vmatpush1.msra.mxu0 0.0
  %207 = vmatprep.subr.mxu0 0.0
  %208 = vmatpush1.msra.mxu0 0.0
  %209 = vmatprep.subr.mxu0 0.0
  %210 = vmatpush1.msra.mxu0 0.0
  %211 = vmatprep.subr.mxu0 0.0
  %212 = vmatpush1.msra.mxu0 0.0
  %213 = vmatprep.subr.mxu0 0.0
  %214 = vmatpush1.msra.mxu0 0.0
  %215 = vmatprep.subr.mxu0 0.0
  %216 = vmatpush1.msra.mxu0 0.0
  %217 = vmatprep.subr.mxu0 0.0
  %218 = vmatpush1.msra.mxu0 0.0
  %219 = vmatprep.subr.mxu0 0.0
  %220 = vmatpush1.msra.mxu0 0.0
  %221 = vmatprep.subr.mxu0 0.0
  %222 = vmatpush1.msra.mxu0 0.0
  %223 = vmatprep.subr.mxu0 0.0
  %224 = vmatpush1.msra.mxu0 0.0
  %225 = vmatprep.subr.mxu0 0.0
  %226 = vmatpush1.msra.mxu0 0.0
  %227 = vmatprep.subr.mxu0 0.0
  %228 = vmatpush1.msra.mxu0 0.0
  %229 = vmatprep.subr.mxu0 0.0
  %230 = vmatpush1.msra.mxu0 0.0
  %231 = vmatprep.mubr.f32.mxu0 0.0
  %232 = vmatmul.mubr.f32.gmra.mrb[0].mxu0 %v159
  %v233 = vpop.f32.mrb[0].mxu0
  %v234 = vadd.f32 %v154, %v233
  %v235 = vpop.f32.mrb[0].mxu0
  %v236 = vadd.f32 %v156, %v235
  %237 = vdwg.mxu0
  %s238 = scalar_lea.vmem %s3, 4
  %v239 = vld [vmem:[%s238] sm:$0xf]
  %240 = vrot.lane.b32.xlu0 %v36, 16
  %v241 = vpop.permute.xlu0 %240
  %242 = vrot.lane.b32.xlu0 %v39, 16
  %v243 = vpop.permute.xlu0 %242
  %vm244 = vcmp.lt.s32.totalorder %v46, 16
  %v245 = vsel %vm244, %v241, %v243
  %v246 = vsel %vm244, %v243, %v241
  %s247 = scalar_lea.vmem %s2, 2
  %v248 = vld [vmem:[%s247] sm:$0x3]
  %v250 = vlaneseq
  %v251 = vshrl.u32 %v250, 7
  %v252 = vsub.s32 0, %v251
  %v253 = vrot.slane %v248, %v252
  %v254 = vlaneseq
  %v255 = vshrl.u32 %v254, 7
  %v256 = vsub.s32 1, %v255
  %v257 = vrot.slane %v248, %v256
  %v260 = vmul.f32 %v246, %v253
  %v261 = vmul.f32 %v245, %v257
  %v263 = vsel %vm76, %v239, 0
  %v266 = vsel %vm80, %v260, 0
  %v269 = vsel %vm80, %v261, 0
  %271 = vmatprep.subr.mxu0 %v269
  %272 = vmatpush1.msra.mxu0 %v266
  %273 = vmatprep.subr.mxu0 0.0
  %274 = vmatpush1.msra.mxu0 0.0
  %275 = vmatprep.subr.mxu0 0.0
  %276 = vmatpush1.msra.mxu0 0.0
  %277 = vmatprep.subr.mxu0 0.0
  %278 = vmatpush1.msra.mxu0 0.0
  %279 = vmatprep.subr.mxu0 0.0
  %280 = vmatpush1.msra.mxu0 0.0
  %281 = vmatprep.subr.mxu0 0.0
  %282 = vmatpush1.msra.mxu0 0.0
  %283 = vmatprep.subr.mxu0 0.0
  %284 = vmatpush1.msra.mxu0 0.0
  %285 = vmatprep.subr.mxu0 0.0
  %286 = vmatpush1.msra.mxu0 0.0
  %287 = vmatprep.subr.mxu0 0.0
  %288 = vmatpush1.msra.mxu0 0.0
  %289 = vmatprep.subr.mxu0 0.0
  %290 = vmatpush1.msra.mxu0 0.0
  %291 = vmatprep.subr.mxu0 0.0
  %292 = vmatpush1.msra.mxu0 0.0
  %293 = vmatprep.subr.mxu0 0.0
  %294 = vmatpush1.msra.mxu0 0.0
  %295 = vmatprep.subr.mxu0 0.0
  %296 = vmatpush1.msra.mxu0 0.0
  %297 = vmatprep.subr.mxu0 0.0
  %298 = vmatpush1.msra.mxu0 0.0
  %299 = vmatprep.subr.mxu0 0.0
  %300 = vmatpush1.msra.mxu0 0.0
  %301 = vmatprep.subr.mxu0 0.0
  %302 = vmatpush1.msra.mxu0 0.0
  %303 = vmatprep.subr.mxu0 0.0
  %304 = vmatpush1.msra.mxu0 0.0
  %305 = vmatprep.subr.mxu0 0.0
  %306 = vmatpush1.msra.mxu0 0.0
  %307 = vmatprep.subr.mxu0 0.0
  %308 = vmatpush1.msra.mxu0 0.0
  %309 = vmatprep.subr.mxu0 0.0
  %310 = vmatpush1.msra.mxu0 0.0
  %311 = vmatprep.subr.mxu0 0.0
  %312 = vmatpush1.msra.mxu0 0.0
  %313 = vmatprep.subr.mxu0 0.0
  %314 = vmatpush1.msra.mxu0 0.0
  %315 = vmatprep.subr.mxu0 0.0
  %316 = vmatpush1.msra.mxu0 0.0
  %317 = vmatprep.subr.mxu0 0.0
  %318 = vmatpush1.msra.mxu0 0.0
  %319 = vmatprep.subr.mxu0 0.0
  %320 = vmatpush1.msra.mxu0 0.0
  %321 = vmatprep.subr.mxu0 0.0
  %322 = vmatpush1.msra.mxu0 0.0
  %323 = vmatprep.subr.mxu0 0.0
  %324 = vmatpush1.msra.mxu0 0.0
  %325 = vmatprep.subr.mxu0 0.0
  %326 = vmatpush1.msra.mxu0 0.0
  %327 = vmatprep.subr.mxu0 0.0
  %328 = vmatpush1.msra.mxu0 0.0
  %329 = vmatprep.subr.mxu0 0.0
  %330 = vmatpush1.msra.mxu0 0.0
  %331 = vmatprep.subr.mxu0 0.0
  %332 = vmatpush1.msra.mxu0 0.0
  %333 = vmatprep.subr.mxu0 0.0
  %334 = vmatpush1.msra.mxu0 0.0
  %335 = vmatprep.mubr.f32.mxu0 0.0
  %336 = vmatmul.mubr.f32.gmra.mrb[0].mxu0 %v263
  %v337 = vpop.f32.mrb[0].mxu0
  %v338 = vadd.f32 0.0, %v337
  %v339 = vpop.f32.mrb[0].mxu0
  %v340 = vadd.f32 0.0, %v339
  %341 = vdwg.mxu0
  %v342 = vadd.f32 %v234, %v338
  %v343 = vadd.f32 %v236, %v340
  %s344 = scalar_lea.vmem %s4, 4
  %v345 = vld [vmem:[%s344] sm:$0xf]
  %346 = vrot.lane.b32.xlu0 %v35, 16
  %v347 = vpop.permute.xlu0 %346
  %348 = vrot.lane.b32.xlu0 %v66, 16
  %v349 = vpop.permute.xlu0 %348
  %v350 = vsel %vm244, %v347, %v349
  %v351 = vsel %vm244, %v349, %v347
  %v352 = vmul.f32 %v351, %v253
  %v353 = vmul.f32 %v350, %v257
  %v355 = vsel %vm76, %v345, 0
  %v358 = vsel %vm80, %v352, 0
  %v361 = vsel %vm80, %v353, 0
  %363 = vmatprep.subr.mxu0 %v361
  %364 = vmatpush1.msra.mxu0 %v358
  %365 = vmatprep.subr.mxu0 0.0
  %366 = vmatpush1.msra.mxu0 0.0
  %367 = vmatprep.subr.mxu0 0.0
  %368 = vmatpush1.msra.mxu0 0.0
  %369 = vmatprep.subr.mxu0 0.0
  %370 = vmatpush1.msra.mxu0 0.0
  %371 = vmatprep.subr.mxu0 0.0
  %372 = vmatpush1.msra.mxu0 0.0
  %373 = vmatprep.subr.mxu0 0.0
  %374 = vmatpush1.msra.mxu0 0.0
  %375 = vmatprep.subr.mxu0 0.0
  %376 = vmatpush1.msra.mxu0 0.0
  %377 = vmatprep.subr.mxu0 0.0
  %378 = vmatpush1.msra.mxu0 0.0
  %379 = vmatprep.subr.mxu0 0.0
  %380 = vmatpush1.msra.mxu0 0.0
  %381 = vmatprep.subr.mxu0 0.0
  %382 = vmatpush1.msra.mxu0 0.0
  %383 = vmatprep.subr.mxu0 0.0
  %384 = vmatpush1.msra.mxu0 0.0
  %385 = vmatprep.subr.mxu0 0.0
  %386 = vmatpush1.msra.mxu0 0.0
  %387 = vmatprep.subr.mxu0 0.0
  %388 = vmatpush1.msra.mxu0 0.0
  %389 = vmatprep.subr.mxu0 0.0
  %390 = vmatpush1.msra.mxu0 0.0
  %391 = vmatprep.subr.mxu0 0.0
  %392 = vmatpush1.msra.mxu0 0.0
  %393 = vmatprep.subr.mxu0 0.0
  %394 = vmatpush1.msra.mxu0 0.0
  %395 = vmatprep.subr.mxu0 0.0
  %396 = vmatpush1.msra.mxu0 0.0
  %397 = vmatprep.subr.mxu0 0.0
  %398 = vmatpush1.msra.mxu0 0.0
  %399 = vmatprep.subr.mxu0 0.0
  %400 = vmatpush1.msra.mxu0 0.0
  %401 = vmatprep.subr.mxu0 0.0
  %402 = vmatpush1.msra.mxu0 0.0
  %403 = vmatprep.subr.mxu0 0.0
  %404 = vmatpush1.msra.mxu0 0.0
  %405 = vmatprep.subr.mxu0 0.0
  %406 = vmatpush1.msra.mxu0 0.0
  %407 = vmatprep.subr.mxu0 0.0
  %408 = vmatpush1.msra.mxu0 0.0
  %409 = vmatprep.subr.mxu0 0.0
  %410 = vmatpush1.msra.mxu0 0.0
  %411 = vmatprep.subr.mxu0 0.0
  %412 = vmatpush1.msra.mxu0 0.0
  %413 = vmatprep.subr.mxu0 0.0
  %414 = vmatpush1.msra.mxu0 0.0
  %415 = vmatprep.subr.mxu0 0.0
  %416 = vmatpush1.msra.mxu0 0.0
  %417 = vmatprep.subr.mxu0 0.0
  %418 = vmatpush1.msra.mxu0 0.0
  %419 = vmatprep.subr.mxu0 0.0
  %420 = vmatpush1.msra.mxu0 0.0
  %421 = vmatprep.subr.mxu0 0.0
  %422 = vmatpush1.msra.mxu0 0.0
  %423 = vmatprep.subr.mxu0 0.0
  %424 = vmatpush1.msra.mxu0 0.0
  %425 = vmatprep.subr.mxu0 0.0
  %426 = vmatpush1.msra.mxu0 0.0
  %427 = vmatprep.mubr.f32.mxu0 0.0
  %428 = vmatmul.mubr.f32.gmra.mrb[0].mxu0 %v355
  %v429 = vpop.f32.mrb[0].mxu0
  %v430 = vadd.f32 0.0, %v429
  %v431 = vpop.f32.mrb[0].mxu0
  %v432 = vadd.f32 0.0, %v431
  %433 = vdwg.mxu0
  %v434 = vadd.f32 %v342, %v430
  %v435 = vadd.f32 %v343, %v432
  %s436 = scalar_lea.vmem %s3, 8
  %v437 = vld [vmem:[%s436] sm:$0xf]
  %438 = vrot.lane.b32.xlu0 %v36, 15
  %v439 = vpop.permute.xlu0 %438
  %440 = vrot.lane.b32.xlu0 %v39, 15
  %v441 = vpop.permute.xlu0 %440
  %vm442 = vcmp.lt.s32.totalorder %v46, 15
  %v443 = vsel %vm442, %v439, %v441
  %v444 = vsel %vm442, %v441, %v439
  %s445 = scalar_lea.vmem %s2, 4
  %v446 = vld [vmem:[%s445] sm:$0x3]
  %v448 = vlaneseq
  %v449 = vshrl.u32 %v448, 7
  %v450 = vsub.s32 0, %v449
  %v451 = vrot.slane %v446, %v450
  %v452 = vlaneseq
  %v453 = vshrl.u32 %v452, 7
  %v454 = vsub.s32 1, %v453
  %v455 = vrot.slane %v446, %v454
  %v458 = vmul.f32 %v444, %v451
  %v459 = vmul.f32 %v443, %v455
  %v461 = vsel %vm76, %v437, 0
  %v464 = vsel %vm80, %v458, 0
  %v467 = vsel %vm80, %v459, 0
  %469 = vmatprep.subr.mxu0 %v467
  %470 = vmatpush1.msra.mxu0 %v464
  %471 = vmatprep.subr.mxu0 0.0
  %472 = vmatpush1.msra.mxu0 0.0
  %473 = vmatprep.subr.mxu0 0.0
  %474 = vmatpush1.msra.mxu0 0.0
  %475 = vmatprep.subr.mxu0 0.0
  %476 = vmatpush1.msra.mxu0 0.0
  %477 = vmatprep.subr.mxu0 0.0
  %478 = vmatpush1.msra.mxu0 0.0
  %479 = vmatprep.subr.mxu0 0.0
  %480 = vmatpush1.msra.mxu0 0.0
  %481 = vmatprep.subr.mxu0 0.0
  %482 = vmatpush1.msra.mxu0 0.0
  %483 = vmatprep.subr.mxu0 0.0
  %484 = vmatpush1.msra.mxu0 0.0
  %485 = vmatprep.subr.mxu0 0.0
  %486 = vmatpush1.msra.mxu0 0.0
  %487 = vmatprep.subr.mxu0 0.0
  %488 = vmatpush1.msra.mxu0 0.0
  %489 = vmatprep.subr.mxu0 0.0
  %490 = vmatpush1.msra.mxu0 0.0
  %491 = vmatprep.subr.mxu0 0.0
  %492 = vmatpush1.msra.mxu0 0.0
  %493 = vmatprep.subr.mxu0 0.0
  %494 = vmatpush1.msra.mxu0 0.0
  %495 = vmatprep.subr.mxu0 0.0
  %496 = vmatpush1.msra.mxu0 0.0
  %497 = vmatprep.subr.mxu0 0.0
  %498 = vmatpush1.msra.mxu0 0.0
  %499 = vmatprep.subr.mxu0 0.0
  %500 = vmatpush1.msra.mxu0 0.0
  %501 = vmatprep.subr.mxu0 0.0
  %502 = vmatpush1.msra.mxu0 0.0
  %503 = vmatprep.subr.mxu0 0.0
  %504 = vmatpush1.msra.mxu0 0.0
  %505 = vmatprep.subr.mxu0 0.0
  %506 = vmatpush1.msra.mxu0 0.0
  %507 = vmatprep.subr.mxu0 0.0
  %508 = vmatpush1.msra.mxu0 0.0
  %509 = vmatprep.subr.mxu0 0.0
  %510 = vmatpush1.msra.mxu0 0.0
  %511 = vmatprep.subr.mxu0 0.0
  %512 = vmatpush1.msra.mxu0 0.0
  %513 = vmatprep.subr.mxu0 0.0
  %514 = vmatpush1.msra.mxu0 0.0
  %515 = vmatprep.subr.mxu0 0.0
  %516 = vmatpush1.msra.mxu0 0.0
  %517 = vmatprep.subr.mxu0 0.0
  %518 = vmatpush1.msra.mxu0 0.0
  %519 = vmatprep.subr.mxu0 0.0
  %520 = vmatpush1.msra.mxu0 0.0
  %521 = vmatprep.subr.mxu0 0.0
  %522 = vmatpush1.msra.mxu0 0.0
  %523 = vmatprep.subr.mxu0 0.0
  %524 = vmatpush1.msra.mxu0 0.0
  %525 = vmatprep.subr.mxu0 0.0
  %526 = vmatpush1.msra.mxu0 0.0
  %527 = vmatprep.subr.mxu0 0.0
  %528 = vmatpush1.msra.mxu0 0.0
  %529 = vmatprep.subr.mxu0 0.0
  %530 = vmatpush1.msra.mxu0 0.0
  %531 = vmatprep.subr.mxu0 0.0
  %532 = vmatpush1.msra.mxu0 0.0
  %533 = vmatprep.mubr.f32.mxu0 0.0
  %534 = vmatmul.mubr.f32.gmra.mrb[0].mxu0 %v461
  %v535 = vpop.f32.mrb[0].mxu0
  %v536 = vadd.f32 0.0, %v535
  %v537 = vpop.f32.mrb[0].mxu0
  %v538 = vadd.f32 0.0, %v537
  %539 = vdwg.mxu0
  %v540 = vadd.f32 %v434, %v536
  %v541 = vadd.f32 %v435, %v538
  %s542 = scalar_lea.vmem %s4, 8
  %v543 = vld [vmem:[%s542] sm:$0xf]
  %544 = vrot.lane.b32.xlu0 %v35, 15
  %v545 = vpop.permute.xlu0 %544
  %546 = vrot.lane.b32.xlu0 %v66, 15
  %v547 = vpop.permute.xlu0 %546
  %v548 = vsel %vm442, %v545, %v547
  %v549 = vsel %vm442, %v547, %v545
  %v550 = vmul.f32 %v549, %v451
  %v551 = vmul.f32 %v548, %v455
  %v553 = vsel %vm76, %v543, 0
  %v556 = vsel %vm80, %v550, 0
  %v559 = vsel %vm80, %v551, 0
  %561 = vmatprep.subr.mxu0 %v559
  %562 = vmatpush1.msra.mxu0 %v556
  %563 = vmatprep.subr.mxu0 0.0
  %564 = vmatpush1.msra.mxu0 0.0
  %565 = vmatprep.subr.mxu0 0.0
  %566 = vmatpush1.msra.mxu0 0.0
  %567 = vmatprep.subr.mxu0 0.0
  %568 = vmatpush1.msra.mxu0 0.0
  %569 = vmatprep.subr.mxu0 0.0
  %570 = vmatpush1.msra.mxu0 0.0
  %571 = vmatprep.subr.mxu0 0.0
  %572 = vmatpush1.msra.mxu0 0.0
  %573 = vmatprep.subr.mxu0 0.0
  %574 = vmatpush1.msra.mxu0 0.0
  %575 = vmatprep.subr.mxu0 0.0
  %576 = vmatpush1.msra.mxu0 0.0
  %577 = vmatprep.subr.mxu0 0.0
  %578 = vmatpush1.msra.mxu0 0.0
  %579 = vmatprep.subr.mxu0 0.0
  %580 = vmatpush1.msra.mxu0 0.0
  %581 = vmatprep.subr.mxu0 0.0
  %582 = vmatpush1.msra.mxu0 0.0
  %583 = vmatprep.subr.mxu0 0.0
  %584 = vmatpush1.msra.mxu0 0.0
  %585 = vmatprep.subr.mxu0 0.0
  %586 = vmatpush1.msra.mxu0 0.0
  %587 = vmatprep.subr.mxu0 0.0
  %588 = vmatpush1.msra.mxu0 0.0
  %589 = vmatprep.subr.mxu0 0.0
  %590 = vmatpush1.msra.mxu0 0.0
  %591 = vmatprep.subr.mxu0 0.0
  %592 = vmatpush1.msra.mxu0 0.0
  %593 = vmatprep.subr.mxu0 0.0
  %594 = vmatpush1.msra.mxu0 0.0
  %595 = vmatprep.subr.mxu0 0.0
  %596 = vmatpush1.msra.mxu0 0.0
  %597 = vmatprep.subr.mxu0 0.0
  %598 = vmatpush1.msra.mxu0 0.0
  %599 = vmatprep.subr.mxu0 0.0
  %600 = vmatpush1.msra.mxu0 0.0
  %601 = vmatprep.subr.mxu0 0.0
  %602 = vmatpush1.msra.mxu0 0.0
  %603 = vmatprep.subr.mxu0 0.0
  %604 = vmatpush1.msra.mxu0 0.0
  %605 = vmatprep.subr.mxu0 0.0
  %606 = vmatpush1.msra.mxu0 0.0
  %607 = vmatprep.subr.mxu0 0.0
  %608 = vmatpush1.msra.mxu0 0.0
  %609 = vmatprep.subr.mxu0 0.0
  %610 = vmatpush1.msra.mxu0 0.0
  %611 = vmatprep.subr.mxu0 0.0
  %612 = vmatpush1.msra.mxu0 0.0
  %613 = vmatprep.subr.mxu0 0.0
  %614 = vmatpush1.msra.mxu0 0.0
  %615 = vmatprep.subr.mxu0 0.0
  %616 = vmatpush1.msra.mxu0 0.0
  %617 = vmatprep.subr.mxu0 0.0
  %618 = vmatpush1.msra.mxu0 0.0
  %619 = vmatprep.subr.mxu0 0.0
  %620 = vmatpush1.msra.mxu0 0.0
  %621 = vmatprep.subr.mxu0 0.0
  %622 = vmatpush1.msra.mxu0 0.0
  %623 = vmatprep.subr.mxu0 0.0
  %624 = vmatpush1.msra.mxu0 0.0
  %625 = vmatprep.mubr.f32.mxu0 0.0
  %626 = vmatmul.mubr.f32.gmra.mrb[0].mxu0 %v553
  %v627 = vpop.f32.mrb[0].mxu0
  %v628 = vadd.f32 0.0, %v627
  %v629 = vpop.f32.mrb[0].mxu0
  %v630 = vadd.f32 0.0, %v629
  %631 = vdwg.mxu0
  %v632 = vadd.f32 %v540, %v628
  %v633 = vadd.f32 %v541, %v630
  %s634 = scalar_lea.vmem %s3, 12
  %v635 = vld [vmem:[%s634] sm:$0xf]
  %636 = vrot.lane.b32.xlu0 %v36, 1
  %v637 = vpop.permute.xlu0 %636
  %638 = vrot.lane.b32.xlu0 %v39, 1
  %v639 = vpop.permute.xlu0 %638
  %vm640 = vcmp.lt.s32.totalorder %v46, 1
  %v641 = vsel %vm640, %v637, %v639
  %v642 = vsel %vm640, %v639, %v637
  %s643 = scalar_lea.vmem %s2, 6
  %v644 = vld [vmem:[%s643] sm:$0x3]
  %v646 = vlaneseq
  %v647 = vshrl.u32 %v646, 7
  %v648 = vsub.s32 0, %v647
  %v649 = vrot.slane %v644, %v648
  %v650 = vlaneseq
  %v651 = vshrl.u32 %v650, 7
  %v652 = vsub.s32 1, %v651
  %v653 = vrot.slane %v644, %v652
  %v656 = vmul.f32 %v642, %v649
  %v657 = vmul.f32 %v641, %v653
  %v659 = vsel %vm76, %v635, 0
  %v662 = vsel %vm80, %v656, 0
  %v665 = vsel %vm80, %v657, 0
  %667 = vmatprep.subr.mxu0 %v665
  %668 = vmatpush1.msra.mxu0 %v662
  %669 = vmatprep.subr.mxu0 0.0
  %670 = vmatpush1.msra.mxu0 0.0
  %671 = vmatprep.subr.mxu0 0.0
  %672 = vmatpush1.msra.mxu0 0.0
  %673 = vmatprep.subr.mxu0 0.0
  %674 = vmatpush1.msra.mxu0 0.0
  %675 = vmatprep.subr.mxu0 0.0
  %676 = vmatpush1.msra.mxu0 0.0
  %677 = vmatprep.subr.mxu0 0.0
  %678 = vmatpush1.msra.mxu0 0.0
  %679 = vmatprep.subr.mxu0 0.0
  %680 = vmatpush1.msra.mxu0 0.0
  %681 = vmatprep.subr.mxu0 0.0
  %682 = vmatpush1.msra.mxu0 0.0
  %683 = vmatprep.subr.mxu0 0.0
  %684 = vmatpush1.msra.mxu0 0.0
  %685 = vmatprep.subr.mxu0 0.0
  %686 = vmatpush1.msra.mxu0 0.0
  %687 = vmatprep.subr.mxu0 0.0
  %688 = vmatpush1.msra.mxu0 0.0
  %689 = vmatprep.subr.mxu0 0.0
  %690 = vmatpush1.msra.mxu0 0.0
  %691 = vmatprep.subr.mxu0 0.0
  %692 = vmatpush1.msra.mxu0 0.0
  %693 = vmatprep.subr.mxu0 0.0
  %694 = vmatpush1.msra.mxu0 0.0
  %695 = vmatprep.subr.mxu0 0.0
  %696 = vmatpush1.msra.mxu0 0.0
  %697 = vmatprep.subr.mxu0 0.0
  %698 = vmatpush1.msra.mxu0 0.0
  %699 = vmatprep.subr.mxu0 0.0
  %700 = vmatpush1.msra.mxu0 0.0
  %701 = vmatprep.subr.mxu0 0.0
  %702 = vmatpush1.msra.mxu0 0.0
  %703 = vmatprep.subr.mxu0 0.0
  %704 = vmatpush1.msra.mxu0 0.0
  %705 = vmatprep.subr.mxu0 0.0
  %706 = vmatpush1.msra.mxu0 0.0
  %707 = vmatprep.subr.mxu0 0.0
  %708 = vmatpush1.msra.mxu0 0.0
  %709 = vmatprep.subr.mxu0 0.0
  %710 = vmatpush1.msra.mxu0 0.0
  %711 = vmatprep.subr.mxu0 0.0
  %712 = vmatpush1.msra.mxu0 0.0
  %713 = vmatprep.subr.mxu0 0.0
  %714 = vmatpush1.msra.mxu0 0.0
  %715 = vmatprep.subr.mxu0 0.0
  %716 = vmatpush1.msra.mxu0 0.0
  %717 = vmatprep.subr.mxu0 0.0
  %718 = vmatpush1.msra.mxu0 0.0
  %719 = vmatprep.subr.mxu0 0.0
  %720 = vmatpush1.msra.mxu0 0.0
  %721 = vmatprep.subr.mxu0 0.0
  %722 = vmatpush1.msra.mxu0 0.0
  %723 = vmatprep.subr.mxu0 0.0
  %724 = vmatpush1.msra.mxu0 0.0
  %725 = vmatprep.subr.mxu0 0.0
  %726 = vmatpush1.msra.mxu0 0.0
  %727 = vmatprep.subr.mxu0 0.0
  %728 = vmatpush1.msra.mxu0 0.0
  %729 = vmatprep.subr.mxu0 0.0
  %730 = vmatpush1.msra.mxu0 0.0
  %731 = vmatprep.mubr.f32.mxu0 0.0
  %732 = vmatmul.mubr.f32.gmra.mrb[0].mxu0 %v659
  %v733 = vpop.f32.mrb[0].mxu0
  %v734 = vadd.f32 0.0, %v733
  %v735 = vpop.f32.mrb[0].mxu0
  %v736 = vadd.f32 0.0, %v735
  %737 = vdwg.mxu0
  %v738 = vadd.f32 %v632, %v734
  %v739 = vadd.f32 %v633, %v736
  %s740 = scalar_lea.vmem %s4, 12
  %v741 = vld [vmem:[%s740] sm:$0xf]
  %742 = vrot.lane.b32.xlu0 %v35, 1
  %v743 = vpop.permute.xlu0 %742
  %744 = vrot.lane.b32.xlu0 %v66, 1
  %v745 = vpop.permute.xlu0 %744
  %v746 = vsel %vm640, %v743, %v745
  %v747 = vsel %vm640, %v745, %v743
  %v748 = vmul.f32 %v747, %v649
  %v749 = vmul.f32 %v746, %v653
  %v751 = vsel %vm76, %v741, 0
  %v754 = vsel %vm80, %v748, 0
  %v757 = vsel %vm80, %v749, 0
  %759 = vmatprep.subr.mxu0 %v757
  %760 = vmatpush1.msra.mxu0 %v754
  %761 = vmatprep.subr.mxu0 0.0
  %762 = vmatpush1.msra.mxu0 0.0
  %763 = vmatprep.subr.mxu0 0.0
  %764 = vmatpush1.msra.mxu0 0.0
  %765 = vmatprep.subr.mxu0 0.0
  %766 = vmatpush1.msra.mxu0 0.0
  %767 = vmatprep.subr.mxu0 0.0
  %768 = vmatpush1.msra.mxu0 0.0
  %769 = vmatprep.subr.mxu0 0.0
  %770 = vmatpush1.msra.mxu0 0.0
  %771 = vmatprep.subr.mxu0 0.0
  %772 = vmatpush1.msra.mxu0 0.0
  %773 = vmatprep.subr.mxu0 0.0
  %774 = vmatpush1.msra.mxu0 0.0
  %775 = vmatprep.subr.mxu0 0.0
  %776 = vmatpush1.msra.mxu0 0.0
  %777 = vmatprep.subr.mxu0 0.0
  %778 = vmatpush1.msra.mxu0 0.0
  %779 = vmatprep.subr.mxu0 0.0
  %780 = vmatpush1.msra.mxu0 0.0
  %781 = vmatprep.subr.mxu0 0.0
  %782 = vmatpush1.msra.mxu0 0.0
  %783 = vmatprep.subr.mxu0 0.0
  %784 = vmatpush1.msra.mxu0 0.0
  %785 = vmatprep.subr.mxu0 0.0
  %786 = vmatpush1.msra.mxu0 0.0
  %787 = vmatprep.subr.mxu0 0.0
  %788 = vmatpush1.msra.mxu0 0.0
  %789 = vmatprep.subr.mxu0 0.0
  %790 = vmatpush1.msra.mxu0 0.0
  %791 = vmatprep.subr.mxu0 0.0
  %792 = vmatpush1.msra.mxu0 0.0
  %793 = vmatprep.subr.mxu0 0.0
  %794 = vmatpush1.msra.mxu0 0.0
  %795 = vmatprep.subr.mxu0 0.0
  %796 = vmatpush1.msra.mxu0 0.0
  %797 = vmatprep.subr.mxu0 0.0
  %798 = vmatpush1.msra.mxu0 0.0
  %799 = vmatprep.subr.mxu0 0.0
  %800 = vmatpush1.msra.mxu0 0.0
  %801 = vmatprep.subr.mxu0 0.0
  %802 = vmatpush1.msra.mxu0 0.0
  %803 = vmatprep.subr.mxu0 0.0
  %804 = vmatpush1.msra.mxu0 0.0
  %805 = vmatprep.subr.mxu0 0.0
  %806 = vmatpush1.msra.mxu0 0.0
  %807 = vmatprep.subr.mxu0 0.0
  %808 = vmatpush1.msra.mxu0 0.0
  %809 = vmatprep.subr.mxu0 0.0
  %810 = vmatpush1.msra.mxu0 0.0
  %811 = vmatprep.subr.mxu0 0.0
  %812 = vmatpush1.msra.mxu0 0.0
  %813 = vmatprep.subr.mxu0 0.0
  %814 = vmatpush1.msra.mxu0 0.0
  %815 = vmatprep.subr.mxu0 0.0
  %816 = vmatpush1.msra.mxu0 0.0
  %817 = vmatprep.subr.mxu0 0.0
  %818 = vmatpush1.msra.mxu0 0.0
  %819 = vmatprep.subr.mxu0 0.0
  %820 = vmatpush1.msra.mxu0 0.0
  %821 = vmatprep.subr.mxu0 0.0
  %822 = vmatpush1.msra.mxu0 0.0
  %823 = vmatprep.mubr.f32.mxu0 0.0
  %824 = vmatmul.mubr.f32.gmra.mrb[0].mxu0 %v751
  %v825 = vpop.f32.mrb[0].mxu0
  %v826 = vadd.f32 0.0, %v825
  %v827 = vpop.f32.mrb[0].mxu0
  %v828 = vadd.f32 0.0, %v827
  %829 = vdwg.mxu0
  %v830 = vadd.f32 %v738, %v826
  %v831 = vadd.f32 %v739, %v828
  %s832 = scalar_lea.vmem %s3, 16
  %v833 = vld [vmem:[%s832] sm:$0xf]
  %v835 = vsel %vm76, %v833, 0
  %v837 = vsel %vm80, %v36, 0
  %v839 = vsel %vm80, %v39, 0
  %841 = vmatprep.subr.mxu0 %v839
  %842 = vmatpush1.msra.mxu0 %v837
  %843 = vmatprep.subr.mxu0 0.0
  %844 = vmatpush1.msra.mxu0 0.0
  %845 = vmatprep.subr.mxu0 0.0
  %846 = vmatpush1.msra.mxu0 0.0
  %847 = vmatprep.subr.mxu0 0.0
  %848 = vmatpush1.msra.mxu0 0.0
  %849 = vmatprep.subr.mxu0 0.0
  %850 = vmatpush1.msra.mxu0 0.0
  %851 = vmatprep.subr.mxu0 0.0
  %852 = vmatpush1.msra.mxu0 0.0
  %853 = vmatprep.subr.mxu0 0.0
  %854 = vmatpush1.msra.mxu0 0.0
  %855 = vmatprep.subr.mxu0 0.0
  %856 = vmatpush1.msra.mxu0 0.0
  %857 = vmatprep.subr.mxu0 0.0
  %858 = vmatpush1.msra.mxu0 0.0
  %859 = vmatprep.subr.mxu0 0.0
  %860 = vmatpush1.msra.mxu0 0.0
  %861 = vmatprep.subr.mxu0 0.0
  %862 = vmatpush1.msra.mxu0 0.0
  %863 = vmatprep.subr.mxu0 0.0
  %864 = vmatpush1.msra.mxu0 0.0
  %865 = vmatprep.subr.mxu0 0.0
  %866 = vmatpush1.msra.mxu0 0.0
  %867 = vmatprep.subr.mxu0 0.0
  %868 = vmatpush1.msra.mxu0 0.0
  %869 = vmatprep.subr.mxu0 0.0
  %870 = vmatpush1.msra.mxu0 0.0
  %871 = vmatprep.subr.mxu0 0.0
  %872 = vmatpush1.msra.mxu0 0.0
  %873 = vmatprep.subr.mxu0 0.0
  %874 = vmatpush1.msra.mxu0 0.0
  %875 = vmatprep.subr.mxu0 0.0
  %876 = vmatpush1.msra.mxu0 0.0
  %877 = vmatprep.subr.mxu0 0.0
  %878 = vmatpush1.msra.mxu0 0.0
  %879 = vmatprep.subr.mxu0 0.0
  %880 = vmatpush1.msra.mxu0 0.0
  %881 = vmatprep.subr.mxu0 0.0
  %882 = vmatpush1.msra.mxu0 0.0
  %883 = vmatprep.subr.mxu0 0.0
  %884 = vmatpush1.msra.mxu0 0.0
  %885 = vmatprep.subr.mxu0 0.0
  %886 = vmatpush1.msra.mxu0 0.0
  %887 = vmatprep.subr.mxu0 0.0
  %888 = vmatpush1.msra.mxu0 0.0
  %889 = vmatprep.subr.mxu0 0.0
  %890 = vmatpush1.msra.mxu0 0.0
  %891 = vmatprep.subr.mxu0 0.0
  %892 = vmatpush1.msra.mxu0 0.0
  %893 = vmatprep.subr.mxu0 0.0
  %894 = vmatpush1.msra.mxu0 0.0
  %895 = vmatprep.subr.mxu0 0.0
  %896 = vmatpush1.msra.mxu0 0.0
  %897 = vmatprep.subr.mxu0 0.0
  %898 = vmatpush1.msra.mxu0 0.0
  %899 = vmatprep.subr.mxu0 0.0
  %900 = vmatpush1.msra.mxu0 0.0
  %901 = vmatprep.subr.mxu0 0.0
  %902 = vmatpush1.msra.mxu0 0.0
  %903 = vmatprep.subr.mxu0 0.0
  %904 = vmatpush1.msra.mxu0 0.0
  %905 = vmatprep.mubr.f32.mxu0 0.0
  %906 = vmatmul.mubr.f32.gmra.mrb[0].mxu0 %v835
  %v907 = vpop.f32.mrb[0].mxu0
  %v908 = vadd.f32 0.0, %v907
  %v909 = vpop.f32.mrb[0].mxu0
  %v910 = vadd.f32 0.0, %v909
  %911 = vdwg.mxu0
  %v912 = vadd.f32 %v830, %v908
  %v913 = vadd.f32 %v831, %v910
  %s914 = scalar_lea.vmem %s4, 16
  %v915 = vld [vmem:[%s914] sm:$0xf]
  %v917 = vsel %vm76, %v915, 0
  %v919 = vsel %vm80, %v35, 0
  %v921 = vsel %vm80, %v66, 0
  %923 = vmatprep.subr.mxu0 %v921
  %924 = vmatpush1.msra.mxu0 %v919
  %925 = vmatprep.subr.mxu0 0.0
  %926 = vmatpush1.msra.mxu0 0.0
  %927 = vmatprep.subr.mxu0 0.0
  %928 = vmatpush1.msra.mxu0 0.0
  %929 = vmatprep.subr.mxu0 0.0
  %930 = vmatpush1.msra.mxu0 0.0
  %931 = vmatprep.subr.mxu0 0.0
  %932 = vmatpush1.msra.mxu0 0.0
  %933 = vmatprep.subr.mxu0 0.0
  %934 = vmatpush1.msra.mxu0 0.0
  %935 = vmatprep.subr.mxu0 0.0
  %936 = vmatpush1.msra.mxu0 0.0
  %937 = vmatprep.subr.mxu0 0.0
  %938 = vmatpush1.msra.mxu0 0.0
  %939 = vmatprep.subr.mxu0 0.0
  %940 = vmatpush1.msra.mxu0 0.0
  %941 = vmatprep.subr.mxu0 0.0
  %942 = vmatpush1.msra.mxu0 0.0
  %943 = vmatprep.subr.mxu0 0.0
  %944 = vmatpush1.msra.mxu0 0.0
  %945 = vmatprep.subr.mxu0 0.0
  %946 = vmatpush1.msra.mxu0 0.0
  %947 = vmatprep.subr.mxu0 0.0
  %948 = vmatpush1.msra.mxu0 0.0
  %949 = vmatprep.subr.mxu0 0.0
  %950 = vmatpush1.msra.mxu0 0.0
  %951 = vmatprep.subr.mxu0 0.0
  %952 = vmatpush1.msra.mxu0 0.0
  %953 = vmatprep.subr.mxu0 0.0
  %954 = vmatpush1.msra.mxu0 0.0
  %955 = vmatprep.subr.mxu0 0.0
  %956 = vmatpush1.msra.mxu0 0.0
  %957 = vmatprep.subr.mxu0 0.0
  %958 = vmatpush1.msra.mxu0 0.0
  %959 = vmatprep.subr.mxu0 0.0
  %960 = vmatpush1.msra.mxu0 0.0
  %961 = vmatprep.subr.mxu0 0.0
  %962 = vmatpush1.msra.mxu0 0.0
  %963 = vmatprep.subr.mxu0 0.0
  %964 = vmatpush1.msra.mxu0 0.0
  %965 = vmatprep.subr.mxu0 0.0
  %966 = vmatpush1.msra.mxu0 0.0
  %967 = vmatprep.subr.mxu0 0.0
  %968 = vmatpush1.msra.mxu0 0.0
  %969 = vmatprep.subr.mxu0 0.0
  %970 = vmatpush1.msra.mxu0 0.0
  %971 = vmatprep.subr.mxu0 0.0
  %972 = vmatpush1.msra.mxu0 0.0
  %973 = vmatprep.subr.mxu0 0.0
  %974 = vmatpush1.msra.mxu0 0.0
  %975 = vmatprep.subr.mxu0 0.0
  %976 = vmatpush1.msra.mxu0 0.0
  %977 = vmatprep.subr.mxu0 0.0
  %978 = vmatpush1.msra.mxu0 0.0
  %979 = vmatprep.subr.mxu0 0.0
  %980 = vmatpush1.msra.mxu0 0.0
  %981 = vmatprep.subr.mxu0 0.0
  %982 = vmatpush1.msra.mxu0 0.0
  %983 = vmatprep.subr.mxu0 0.0
  %984 = vmatpush1.msra.mxu0 0.0
  %985 = vmatprep.subr.mxu0 0.0
  %986 = vmatpush1.msra.mxu0 0.0
  %987 = vmatprep.mubr.f32.mxu0 0.0
  %988 = vmatmul.mubr.f32.gmra.mrb[0].mxu0 %v917
  %v989 = vpop.f32.mrb[0].mxu0
  %v990 = vadd.f32 0.0, %v989
  %v991 = vpop.f32.mrb[0].mxu0
  %v992 = vadd.f32 0.0, %v991
  %993 = vdwg.mxu0
  %v994 = vadd.f32 %v912, %v990
  %v995 = vadd.f32 %v913, %v992
  %s996 = scalar_lea.vmem %s3, 20
  %v997 = vld [vmem:[%s996] sm:$0xf]
  %998 = vrot.lane.b32.xlu0 %v36, 127
  %v999 = vpop.permute.xlu0 %998
  %1000 = vrot.lane.b32.xlu0 %v39, 127
  %v1001 = vpop.permute.xlu0 %1000
  %vm1002 = vcmp.lt.s32.totalorder %v46, 127
  %v1003 = vsel %vm1002, %v999, %v1001
  %v1004 = vsel %vm1002, %v1001, %v999
  %s1005 = scalar_lea.vmem %s2, 10
  %v1006 = vld [vmem:[%s1005] sm:$0x3]
  %v1008 = vlaneseq
  %v1009 = vshrl.u32 %v1008, 7
  %v1010 = vsub.s32 0, %v1009
  %v1011 = vrot.slane %v1006, %v1010
  %v1012 = vlaneseq
  %v1013 = vshrl.u32 %v1012, 7
  %v1014 = vsub.s32 1, %v1013
  %v1015 = vrot.slane %v1006, %v1014
  %v1018 = vmul.f32 %v1003, %v1011
  %v1019 = vmul.f32 %v1004, %v1015
  %v1021 = vsel %vm76, %v997, 0
  %v1024 = vsel %vm80, %v1018, 0
  %v1027 = vsel %vm80, %v1019, 0
  %1029 = vmatprep.subr.mxu0 %v1027
  %1030 = vmatpush1.msra.mxu0 %v1024
  %1031 = vmatprep.subr.mxu0 0.0
  %1032 = vmatpush1.msra.mxu0 0.0
  %1033 = vmatprep.subr.mxu0 0.0
  %1034 = vmatpush1.msra.mxu0 0.0
  %1035 = vmatprep.subr.mxu0 0.0
  %1036 = vmatpush1.msra.mxu0 0.0
  %1037 = vmatprep.subr.mxu0 0.0
  %1038 = vmatpush1.msra.mxu0 0.0
  %1039 = vmatprep.subr.mxu0 0.0
  %1040 = vmatpush1.msra.mxu0 0.0
  %1041 = vmatprep.subr.mxu0 0.0
  %1042 = vmatpush1.msra.mxu0 0.0
  %1043 = vmatprep.subr.mxu0 0.0
  %1044 = vmatpush1.msra.mxu0 0.0
  %1045 = vmatprep.subr.mxu0 0.0
  %1046 = vmatpush1.msra.mxu0 0.0
  %1047 = vmatprep.subr.mxu0 0.0
  %1048 = vmatpush1.msra.mxu0 0.0
  %1049 = vmatprep.subr.mxu0 0.0
  %1050 = vmatpush1.msra.mxu0 0.0
  %1051 = vmatprep.subr.mxu0 0.0
  %1052 = vmatpush1.msra.mxu0 0.0
  %1053 = vmatprep.subr.mxu0 0.0
  %1054 = vmatpush1.msra.mxu0 0.0
  %1055 = vmatprep.subr.mxu0 0.0
  %1056 = vmatpush1.msra.mxu0 0.0
  %1057 = vmatprep.subr.mxu0 0.0
  %1058 = vmatpush1.msra.mxu0 0.0
  %1059 = vmatprep.subr.mxu0 0.0
  %1060 = vmatpush1.msra.mxu0 0.0
  %1061 = vmatprep.subr.mxu0 0.0
  %1062 = vmatpush1.msra.mxu0 0.0
  %1063 = vmatprep.subr.mxu0 0.0
  %1064 = vmatpush1.msra.mxu0 0.0
  %1065 = vmatprep.subr.mxu0 0.0
  %1066 = vmatpush1.msra.mxu0 0.0
  %1067 = vmatprep.subr.mxu0 0.0
  %1068 = vmatpush1.msra.mxu0 0.0
  %1069 = vmatprep.subr.mxu0 0.0
  %1070 = vmatpush1.msra.mxu0 0.0
  %1071 = vmatprep.subr.mxu0 0.0
  %1072 = vmatpush1.msra.mxu0 0.0
  %1073 = vmatprep.subr.mxu0 0.0
  %1074 = vmatpush1.msra.mxu0 0.0
  %1075 = vmatprep.subr.mxu0 0.0
  %1076 = vmatpush1.msra.mxu0 0.0
  %1077 = vmatprep.subr.mxu0 0.0
  %1078 = vmatpush1.msra.mxu0 0.0
  %1079 = vmatprep.subr.mxu0 0.0
  %1080 = vmatpush1.msra.mxu0 0.0
  %1081 = vmatprep.subr.mxu0 0.0
  %1082 = vmatpush1.msra.mxu0 0.0
  %1083 = vmatprep.subr.mxu0 0.0
  %1084 = vmatpush1.msra.mxu0 0.0
  %1085 = vmatprep.subr.mxu0 0.0
  %1086 = vmatpush1.msra.mxu0 0.0
  %1087 = vmatprep.subr.mxu0 0.0
  %1088 = vmatpush1.msra.mxu0 0.0
  %1089 = vmatprep.subr.mxu0 0.0
  %1090 = vmatpush1.msra.mxu0 0.0
  %1091 = vmatprep.subr.mxu0 0.0
  %1092 = vmatpush1.msra.mxu0 0.0
  %1093 = vmatprep.mubr.f32.mxu0 0.0
  %1094 = vmatmul.mubr.f32.gmra.mrb[0].mxu0 %v1021
  %v1095 = vpop.f32.mrb[0].mxu0
  %v1096 = vadd.f32 0.0, %v1095
  %v1097 = vpop.f32.mrb[0].mxu0
  %v1098 = vadd.f32 0.0, %v1097
  %1099 = vdwg.mxu0
  %v1100 = vadd.f32 %v994, %v1096
  %v1101 = vadd.f32 %v995, %v1098
  %s1102 = scalar_lea.vmem %s4, 20
  %v1103 = vld [vmem:[%s1102] sm:$0xf]
  %1104 = vrot.lane.b32.xlu0 %v35, 127
  %v1105 = vpop.permute.xlu0 %1104
  %1106 = vrot.lane.b32.xlu0 %v66, 127
  %v1107 = vpop.permute.xlu0 %1106
  %v1108 = vsel %vm1002, %v1105, %v1107
  %v1109 = vsel %vm1002, %v1107, %v1105
  %v1110 = vmul.f32 %v1108, %v1011
  %v1111 = vmul.f32 %v1109, %v1015
  %v1113 = vsel %vm76, %v1103, 0
  %v1116 = vsel %vm80, %v1110, 0
  %v1119 = vsel %vm80, %v1111, 0
  %1121 = vmatprep.subr.mxu0 %v1119
  %1122 = vmatpush1.msra.mxu0 %v1116
  %1123 = vmatprep.subr.mxu0 0.0
  %1124 = vmatpush1.msra.mxu0 0.0
  %1125 = vmatprep.subr.mxu0 0.0
  %1126 = vmatpush1.msra.mxu0 0.0
  %1127 = vmatprep.subr.mxu0 0.0
  %1128 = vmatpush1.msra.mxu0 0.0
  %1129 = vmatprep.subr.mxu0 0.0
  %1130 = vmatpush1.msra.mxu0 0.0
  %1131 = vmatprep.subr.mxu0 0.0
  %1132 = vmatpush1.msra.mxu0 0.0
  %1133 = vmatprep.subr.mxu0 0.0
  %1134 = vmatpush1.msra.mxu0 0.0
  %1135 = vmatprep.subr.mxu0 0.0
  %1136 = vmatpush1.msra.mxu0 0.0
  %1137 = vmatprep.subr.mxu0 0.0
  %1138 = vmatpush1.msra.mxu0 0.0
  %1139 = vmatprep.subr.mxu0 0.0
  %1140 = vmatpush1.msra.mxu0 0.0
  %1141 = vmatprep.subr.mxu0 0.0
  %1142 = vmatpush1.msra.mxu0 0.0
  %1143 = vmatprep.subr.mxu0 0.0
  %1144 = vmatpush1.msra.mxu0 0.0
  %1145 = vmatprep.subr.mxu0 0.0
  %1146 = vmatpush1.msra.mxu0 0.0
  %1147 = vmatprep.subr.mxu0 0.0
  %1148 = vmatpush1.msra.mxu0 0.0
  %1149 = vmatprep.subr.mxu0 0.0
  %1150 = vmatpush1.msra.mxu0 0.0
  %1151 = vmatprep.subr.mxu0 0.0
  %1152 = vmatpush1.msra.mxu0 0.0
  %1153 = vmatprep.subr.mxu0 0.0
  %1154 = vmatpush1.msra.mxu0 0.0
  %1155 = vmatprep.subr.mxu0 0.0
  %1156 = vmatpush1.msra.mxu0 0.0
  %1157 = vmatprep.subr.mxu0 0.0
  %1158 = vmatpush1.msra.mxu0 0.0
  %1159 = vmatprep.subr.mxu0 0.0
  %1160 = vmatpush1.msra.mxu0 0.0
  %1161 = vmatprep.subr.mxu0 0.0
  %1162 = vmatpush1.msra.mxu0 0.0
  %1163 = vmatprep.subr.mxu0 0.0
  %1164 = vmatpush1.msra.mxu0 0.0
  %1165 = vmatprep.subr.mxu0 0.0
  %1166 = vmatpush1.msra.mxu0 0.0
  %1167 = vmatprep.subr.mxu0 0.0
  %1168 = vmatpush1.msra.mxu0 0.0
  %1169 = vmatprep.subr.mxu0 0.0
  %1170 = vmatpush1.msra.mxu0 0.0
  %1171 = vmatprep.subr.mxu0 0.0
  %1172 = vmatpush1.msra.mxu0 0.0
  %1173 = vmatprep.subr.mxu0 0.0
  %1174 = vmatpush1.msra.mxu0 0.0
  %1175 = vmatprep.subr.mxu0 0.0
  %1176 = vmatpush1.msra.mxu0 0.0
  %1177 = vmatprep.subr.mxu0 0.0
  %1178 = vmatpush1.msra.mxu0 0.0
  %1179 = vmatprep.subr.mxu0 0.0
  %1180 = vmatpush1.msra.mxu0 0.0
  %1181 = vmatprep.subr.mxu0 0.0
  %1182 = vmatpush1.msra.mxu0 0.0
  %1183 = vmatprep.subr.mxu0 0.0
  %1184 = vmatpush1.msra.mxu0 0.0
  %1185 = vmatprep.mubr.f32.mxu0 0.0
  %1186 = vmatmul.mubr.f32.gmra.mrb[0].mxu0 %v1113
  %v1187 = vpop.f32.mrb[0].mxu0
  %v1188 = vadd.f32 0.0, %v1187
  %v1189 = vpop.f32.mrb[0].mxu0
  %v1190 = vadd.f32 0.0, %v1189
  %1191 = vdwg.mxu0
  %v1192 = vadd.f32 %v1100, %v1188
  %v1193 = vadd.f32 %v1101, %v1190
  %s1194 = scalar_lea.vmem %s3, 24
  %v1195 = vld [vmem:[%s1194] sm:$0xf]
  %1196 = vrot.lane.b32.xlu0 %v36, 113
  %v1197 = vpop.permute.xlu0 %1196
  %1198 = vrot.lane.b32.xlu0 %v39, 113
  %v1199 = vpop.permute.xlu0 %1198
  %vm1200 = vcmp.lt.s32.totalorder %v46, 113
  %v1201 = vsel %vm1200, %v1197, %v1199
  %v1202 = vsel %vm1200, %v1199, %v1197
  %s1203 = scalar_lea.vmem %s2, 12
  %v1204 = vld [vmem:[%s1203] sm:$0x3]
  %v1206 = vlaneseq
  %v1207 = vshrl.u32 %v1206, 7
  %v1208 = vsub.s32 0, %v1207
  %v1209 = vrot.slane %v1204, %v1208
  %v1210 = vlaneseq
  %v1211 = vshrl.u32 %v1210, 7
  %v1212 = vsub.s32 1, %v1211
  %v1213 = vrot.slane %v1204, %v1212
  %v1216 = vmul.f32 %v1201, %v1209
  %v1217 = vmul.f32 %v1202, %v1213
  %v1219 = vsel %vm76, %v1195, 0
  %v1222 = vsel %vm80, %v1216, 0
  %v1225 = vsel %vm80, %v1217, 0
  %1227 = vmatprep.subr.mxu0 %v1225
  %1228 = vmatpush1.msra.mxu0 %v1222
  %1229 = vmatprep.subr.mxu0 0.0
  %1230 = vmatpush1.msra.mxu0 0.0
  %1231 = vmatprep.subr.mxu0 0.0
  %1232 = vmatpush1.msra.mxu0 0.0
  %1233 = vmatprep.subr.mxu0 0.0
  %1234 = vmatpush1.msra.mxu0 0.0
  %1235 = vmatprep.subr.mxu0 0.0
  %1236 = vmatpush1.msra.mxu0 0.0
  %1237 = vmatprep.subr.mxu0 0.0
  %1238 = vmatpush1.msra.mxu0 0.0
  %1239 = vmatprep.subr.mxu0 0.0
  %1240 = vmatpush1.msra.mxu0 0.0
  %1241 = vmatprep.subr.mxu0 0.0
  %1242 = vmatpush1.msra.mxu0 0.0
  %1243 = vmatprep.subr.mxu0 0.0
  %1244 = vmatpush1.msra.mxu0 0.0
  %1245 = vmatprep.subr.mxu0 0.0
  %1246 = vmatpush1.msra.mxu0 0.0
  %1247 = vmatprep.subr.mxu0 0.0
  %1248 = vmatpush1.msra.mxu0 0.0
  %1249 = vmatprep.subr.mxu0 0.0
  %1250 = vmatpush1.msra.mxu0 0.0
  %1251 = vmatprep.subr.mxu0 0.0
  %1252 = vmatpush1.msra.mxu0 0.0
  %1253 = vmatprep.subr.mxu0 0.0
  %1254 = vmatpush1.msra.mxu0 0.0
  %1255 = vmatprep.subr.mxu0 0.0
  %1256 = vmatpush1.msra.mxu0 0.0
  %1257 = vmatprep.subr.mxu0 0.0
  %1258 = vmatpush1.msra.mxu0 0.0
  %1259 = vmatprep.subr.mxu0 0.0
  %1260 = vmatpush1.msra.mxu0 0.0
  %1261 = vmatprep.subr.mxu0 0.0
  %1262 = vmatpush1.msra.mxu0 0.0
  %1263 = vmatprep.subr.mxu0 0.0
  %1264 = vmatpush1.msra.mxu0 0.0
  %1265 = vmatprep.subr.mxu0 0.0
  %1266 = vmatpush1.msra.mxu0 0.0
  %1267 = vmatprep.subr.mxu0 0.0
  %1268 = vmatpush1.msra.mxu0 0.0
  %1269 = vmatprep.subr.mxu0 0.0
  %1270 = vmatpush1.msra.mxu0 0.0
  %1271 = vmatprep.subr.mxu0 0.0
  %1272 = vmatpush1.msra.mxu0 0.0
  %1273 = vmatprep.subr.mxu0 0.0
  %1274 = vmatpush1.msra.mxu0 0.0
  %1275 = vmatprep.subr.mxu0 0.0
  %1276 = vmatpush1.msra.mxu0 0.0
  %1277 = vmatprep.subr.mxu0 0.0
  %1278 = vmatpush1.msra.mxu0 0.0
  %1279 = vmatprep.subr.mxu0 0.0
  %1280 = vmatpush1.msra.mxu0 0.0
  %1281 = vmatprep.subr.mxu0 0.0
  %1282 = vmatpush1.msra.mxu0 0.0
  %1283 = vmatprep.subr.mxu0 0.0
  %1284 = vmatpush1.msra.mxu0 0.0
  %1285 = vmatprep.subr.mxu0 0.0
  %1286 = vmatpush1.msra.mxu0 0.0
  %1287 = vmatprep.subr.mxu0 0.0
  %1288 = vmatpush1.msra.mxu0 0.0
  %1289 = vmatprep.subr.mxu0 0.0
  %1290 = vmatpush1.msra.mxu0 0.0
  %1291 = vmatprep.mubr.f32.mxu0 0.0
  %1292 = vmatmul.mubr.f32.gmra.mrb[0].mxu0 %v1219
  %v1293 = vpop.f32.mrb[0].mxu0
  %v1294 = vadd.f32 0.0, %v1293
  %v1295 = vpop.f32.mrb[0].mxu0
  %v1296 = vadd.f32 0.0, %v1295
  %1297 = vdwg.mxu0
  %v1298 = vadd.f32 %v1192, %v1294
  %v1299 = vadd.f32 %v1193, %v1296
  %s1300 = scalar_lea.vmem %s4, 24
  %v1301 = vld [vmem:[%s1300] sm:$0xf]
  %1302 = vrot.lane.b32.xlu0 %v35, 113
  %v1303 = vpop.permute.xlu0 %1302
  %1304 = vrot.lane.b32.xlu0 %v66, 113
  %v1305 = vpop.permute.xlu0 %1304
  %v1306 = vsel %vm1200, %v1303, %v1305
  %v1307 = vsel %vm1200, %v1305, %v1303
  %v1308 = vmul.f32 %v1306, %v1209
  %v1309 = vmul.f32 %v1307, %v1213
  %v1311 = vsel %vm76, %v1301, 0
  %v1314 = vsel %vm80, %v1308, 0
  %v1317 = vsel %vm80, %v1309, 0
  %1319 = vmatprep.subr.mxu0 %v1317
  %1320 = vmatpush1.msra.mxu0 %v1314
  %1321 = vmatprep.subr.mxu0 0.0
  %1322 = vmatpush1.msra.mxu0 0.0
  %1323 = vmatprep.subr.mxu0 0.0
  %1324 = vmatpush1.msra.mxu0 0.0
  %1325 = vmatprep.subr.mxu0 0.0
  %1326 = vmatpush1.msra.mxu0 0.0
  %1327 = vmatprep.subr.mxu0 0.0
  %1328 = vmatpush1.msra.mxu0 0.0
  %1329 = vmatprep.subr.mxu0 0.0
  %1330 = vmatpush1.msra.mxu0 0.0
  %1331 = vmatprep.subr.mxu0 0.0
  %1332 = vmatpush1.msra.mxu0 0.0
  %1333 = vmatprep.subr.mxu0 0.0
  %1334 = vmatpush1.msra.mxu0 0.0
  %1335 = vmatprep.subr.mxu0 0.0
  %1336 = vmatpush1.msra.mxu0 0.0
  %1337 = vmatprep.subr.mxu0 0.0
  %1338 = vmatpush1.msra.mxu0 0.0
  %1339 = vmatprep.subr.mxu0 0.0
  %1340 = vmatpush1.msra.mxu0 0.0
  %1341 = vmatprep.subr.mxu0 0.0
  %1342 = vmatpush1.msra.mxu0 0.0
  %1343 = vmatprep.subr.mxu0 0.0
  %1344 = vmatpush1.msra.mxu0 0.0
  %1345 = vmatprep.subr.mxu0 0.0
  %1346 = vmatpush1.msra.mxu0 0.0
  %1347 = vmatprep.subr.mxu0 0.0
  %1348 = vmatpush1.msra.mxu0 0.0
  %1349 = vmatprep.subr.mxu0 0.0
  %1350 = vmatpush1.msra.mxu0 0.0
  %1351 = vmatprep.subr.mxu0 0.0
  %1352 = vmatpush1.msra.mxu0 0.0
  %1353 = vmatprep.subr.mxu0 0.0
  %1354 = vmatpush1.msra.mxu0 0.0
  %1355 = vmatprep.subr.mxu0 0.0
  %1356 = vmatpush1.msra.mxu0 0.0
  %1357 = vmatprep.subr.mxu0 0.0
  %1358 = vmatpush1.msra.mxu0 0.0
  %1359 = vmatprep.subr.mxu0 0.0
  %1360 = vmatpush1.msra.mxu0 0.0
  %1361 = vmatprep.subr.mxu0 0.0
  %1362 = vmatpush1.msra.mxu0 0.0
  %1363 = vmatprep.subr.mxu0 0.0
  %1364 = vmatpush1.msra.mxu0 0.0
  %1365 = vmatprep.subr.mxu0 0.0
  %1366 = vmatpush1.msra.mxu0 0.0
  %1367 = vmatprep.subr.mxu0 0.0
  %1368 = vmatpush1.msra.mxu0 0.0
  %1369 = vmatprep.subr.mxu0 0.0
  %1370 = vmatpush1.msra.mxu0 0.0
  %1371 = vmatprep.subr.mxu0 0.0
  %1372 = vmatpush1.msra.mxu0 0.0
  %1373 = vmatprep.subr.mxu0 0.0
  %1374 = vmatpush1.msra.mxu0 0.0
  %1375 = vmatprep.subr.mxu0 0.0
  %1376 = vmatpush1.msra.mxu0 0.0
  %1377 = vmatprep.subr.mxu0 0.0
  %1378 = vmatpush1.msra.mxu0 0.0
  %1379 = vmatprep.subr.mxu0 0.0
  %1380 = vmatpush1.msra.mxu0 0.0
  %1381 = vmatprep.subr.mxu0 0.0
  %1382 = vmatpush1.msra.mxu0 0.0
  %1383 = vmatprep.mubr.f32.mxu0 0.0
  %1384 = vmatmul.mubr.f32.gmra.mrb[0].mxu0 %v1311
  %v1385 = vpop.f32.mrb[0].mxu0
  %v1386 = vadd.f32 0.0, %v1385
  %v1387 = vpop.f32.mrb[0].mxu0
  %v1388 = vadd.f32 0.0, %v1387
  %1389 = vdwg.mxu0
  %v1390 = vadd.f32 %v1298, %v1386
  %v1391 = vadd.f32 %v1299, %v1388
  %s1392 = scalar_lea.vmem %s3, 28
  %v1393 = vld [vmem:[%s1392] sm:$0xf]
  %1394 = vrot.lane.b32.xlu0 %v36, 112
  %v1395 = vpop.permute.xlu0 %1394
  %1396 = vrot.lane.b32.xlu0 %v39, 112
  %v1397 = vpop.permute.xlu0 %1396
  %vm1398 = vcmp.lt.s32.totalorder %v46, 112
  %v1399 = vsel %vm1398, %v1395, %v1397
  %v1400 = vsel %vm1398, %v1397, %v1395
  %s1401 = scalar_lea.vmem %s2, 14
  %v1402 = vld [vmem:[%s1401] sm:$0x3]
  %v1404 = vlaneseq
  %v1405 = vshrl.u32 %v1404, 7
  %v1406 = vsub.s32 0, %v1405
  %v1407 = vrot.slane %v1402, %v1406
  %v1408 = vlaneseq
  %v1409 = vshrl.u32 %v1408, 7
  %v1410 = vsub.s32 1, %v1409
  %v1411 = vrot.slane %v1402, %v1410
  %v1414 = vmul.f32 %v1399, %v1407
  %v1415 = vmul.f32 %v1400, %v1411
  %v1417 = vsel %vm76, %v1393, 0
  %v1420 = vsel %vm80, %v1414, 0
  %v1423 = vsel %vm80, %v1415, 0
  %1425 = vmatprep.subr.mxu0 %v1423
  %1426 = vmatpush1.msra.mxu0 %v1420
  %1427 = vmatprep.subr.mxu0 0.0
  %1428 = vmatpush1.msra.mxu0 0.0
  %1429 = vmatprep.subr.mxu0 0.0
  %1430 = vmatpush1.msra.mxu0 0.0
  %1431 = vmatprep.subr.mxu0 0.0
  %1432 = vmatpush1.msra.mxu0 0.0
  %1433 = vmatprep.subr.mxu0 0.0
  %1434 = vmatpush1.msra.mxu0 0.0
  %1435 = vmatprep.subr.mxu0 0.0
  %1436 = vmatpush1.msra.mxu0 0.0
  %1437 = vmatprep.subr.mxu0 0.0
  %1438 = vmatpush1.msra.mxu0 0.0
  %1439 = vmatprep.subr.mxu0 0.0
  %1440 = vmatpush1.msra.mxu0 0.0
  %1441 = vmatprep.subr.mxu0 0.0
  %1442 = vmatpush1.msra.mxu0 0.0
  %1443 = vmatprep.subr.mxu0 0.0
  %1444 = vmatpush1.msra.mxu0 0.0
  %1445 = vmatprep.subr.mxu0 0.0
  %1446 = vmatpush1.msra.mxu0 0.0
  %1447 = vmatprep.subr.mxu0 0.0
  %1448 = vmatpush1.msra.mxu0 0.0
  %1449 = vmatprep.subr.mxu0 0.0
  %1450 = vmatpush1.msra.mxu0 0.0
  %1451 = vmatprep.subr.mxu0 0.0
  %1452 = vmatpush1.msra.mxu0 0.0
  %1453 = vmatprep.subr.mxu0 0.0
  %1454 = vmatpush1.msra.mxu0 0.0
  %1455 = vmatprep.subr.mxu0 0.0
  %1456 = vmatpush1.msra.mxu0 0.0
  %1457 = vmatprep.subr.mxu0 0.0
  %1458 = vmatpush1.msra.mxu0 0.0
  %1459 = vmatprep.subr.mxu0 0.0
  %1460 = vmatpush1.msra.mxu0 0.0
  %1461 = vmatprep.subr.mxu0 0.0
  %1462 = vmatpush1.msra.mxu0 0.0
  %1463 = vmatprep.subr.mxu0 0.0
  %1464 = vmatpush1.msra.mxu0 0.0
  %1465 = vmatprep.subr.mxu0 0.0
  %1466 = vmatpush1.msra.mxu0 0.0
  %1467 = vmatprep.subr.mxu0 0.0
  %1468 = vmatpush1.msra.mxu0 0.0
  %1469 = vmatprep.subr.mxu0 0.0
  %1470 = vmatpush1.msra.mxu0 0.0
  %1471 = vmatprep.subr.mxu0 0.0
  %1472 = vmatpush1.msra.mxu0 0.0
  %1473 = vmatprep.subr.mxu0 0.0
  %1474 = vmatpush1.msra.mxu0 0.0
  %1475 = vmatprep.subr.mxu0 0.0
  %1476 = vmatpush1.msra.mxu0 0.0
  %1477 = vmatprep.subr.mxu0 0.0
  %1478 = vmatpush1.msra.mxu0 0.0
  %1479 = vmatprep.subr.mxu0 0.0
  %1480 = vmatpush1.msra.mxu0 0.0
  %1481 = vmatprep.subr.mxu0 0.0
  %1482 = vmatpush1.msra.mxu0 0.0
  %1483 = vmatprep.subr.mxu0 0.0
  %1484 = vmatpush1.msra.mxu0 0.0
  %1485 = vmatprep.subr.mxu0 0.0
  %1486 = vmatpush1.msra.mxu0 0.0
  %1487 = vmatprep.subr.mxu0 0.0
  %1488 = vmatpush1.msra.mxu0 0.0
  %1489 = vmatprep.mubr.f32.mxu0 0.0
  %1490 = vmatmul.mubr.f32.gmra.mrb[0].mxu0 %v1417
  %v1491 = vpop.f32.mrb[0].mxu0
  %v1492 = vadd.f32 0.0, %v1491
  %v1493 = vpop.f32.mrb[0].mxu0
  %v1494 = vadd.f32 0.0, %v1493
  %1495 = vdwg.mxu0
  %v1496 = vadd.f32 %v1390, %v1492
  %v1497 = vadd.f32 %v1391, %v1494
  %s1498 = scalar_lea.vmem %s4, 28
  %v1499 = vld [vmem:[%s1498] sm:$0xf]
  %1500 = vrot.lane.b32.xlu0 %v35, 112
  %v1501 = vpop.permute.xlu0 %1500
  %1502 = vrot.lane.b32.xlu0 %v66, 112
  %v1503 = vpop.permute.xlu0 %1502
  %v1504 = vsel %vm1398, %v1501, %v1503
  %v1505 = vsel %vm1398, %v1503, %v1501
  %v1506 = vmul.f32 %v1504, %v1407
  %v1507 = vmul.f32 %v1505, %v1411
  %v1509 = vsel %vm76, %v1499, 0
  %v1512 = vsel %vm80, %v1506, 0
  %v1515 = vsel %vm80, %v1507, 0
  %1517 = vmatprep.subr.mxu0 %v1515
  %1518 = vmatpush1.msra.mxu0 %v1512
  %1519 = vmatprep.subr.mxu0 0.0
  %1520 = vmatpush1.msra.mxu0 0.0
  %1521 = vmatprep.subr.mxu0 0.0
  %1522 = vmatpush1.msra.mxu0 0.0
  %1523 = vmatprep.subr.mxu0 0.0
  %1524 = vmatpush1.msra.mxu0 0.0
  %1525 = vmatprep.subr.mxu0 0.0
  %1526 = vmatpush1.msra.mxu0 0.0
  %1527 = vmatprep.subr.mxu0 0.0
  %1528 = vmatpush1.msra.mxu0 0.0
  %1529 = vmatprep.subr.mxu0 0.0
  %1530 = vmatpush1.msra.mxu0 0.0
  %1531 = vmatprep.subr.mxu0 0.0
  %1532 = vmatpush1.msra.mxu0 0.0
  %1533 = vmatprep.subr.mxu0 0.0
  %1534 = vmatpush1.msra.mxu0 0.0
  %1535 = vmatprep.subr.mxu0 0.0
  %1536 = vmatpush1.msra.mxu0 0.0
  %1537 = vmatprep.subr.mxu0 0.0
  %1538 = vmatpush1.msra.mxu0 0.0
  %1539 = vmatprep.subr.mxu0 0.0
  %1540 = vmatpush1.msra.mxu0 0.0
  %1541 = vmatprep.subr.mxu0 0.0
  %1542 = vmatpush1.msra.mxu0 0.0
  %1543 = vmatprep.subr.mxu0 0.0
  %1544 = vmatpush1.msra.mxu0 0.0
  %1545 = vmatprep.subr.mxu0 0.0
  %1546 = vmatpush1.msra.mxu0 0.0
  %1547 = vmatprep.subr.mxu0 0.0
  %1548 = vmatpush1.msra.mxu0 0.0
  %1549 = vmatprep.subr.mxu0 0.0
  %1550 = vmatpush1.msra.mxu0 0.0
  %1551 = vmatprep.subr.mxu0 0.0
  %1552 = vmatpush1.msra.mxu0 0.0
  %1553 = vmatprep.subr.mxu0 0.0
  %1554 = vmatpush1.msra.mxu0 0.0
  %1555 = vmatprep.subr.mxu0 0.0
  %1556 = vmatpush1.msra.mxu0 0.0
  %1557 = vmatprep.subr.mxu0 0.0
  %1558 = vmatpush1.msra.mxu0 0.0
  %1559 = vmatprep.subr.mxu0 0.0
  %1560 = vmatpush1.msra.mxu0 0.0
  %1561 = vmatprep.subr.mxu0 0.0
  %1562 = vmatpush1.msra.mxu0 0.0
  %1563 = vmatprep.subr.mxu0 0.0
  %1564 = vmatpush1.msra.mxu0 0.0
  %1565 = vmatprep.subr.mxu0 0.0
  %1566 = vmatpush1.msra.mxu0 0.0
  %1567 = vmatprep.subr.mxu0 0.0
  %1568 = vmatpush1.msra.mxu0 0.0
  %1569 = vmatprep.subr.mxu0 0.0
  %1570 = vmatpush1.msra.mxu0 0.0
  %1571 = vmatprep.subr.mxu0 0.0
  %1572 = vmatpush1.msra.mxu0 0.0
  %1573 = vmatprep.subr.mxu0 0.0
  %1574 = vmatpush1.msra.mxu0 0.0
  %1575 = vmatprep.subr.mxu0 0.0
  %1576 = vmatpush1.msra.mxu0 0.0
  %1577 = vmatprep.subr.mxu0 0.0
  %1578 = vmatpush1.msra.mxu0 0.0
  %1579 = vmatprep.subr.mxu0 0.0
  %1580 = vmatpush1.msra.mxu0 0.0
  %1581 = vmatprep.mubr.f32.mxu0 0.0
  %1582 = vmatmul.mubr.f32.gmra.mrb[0].mxu0 %v1509
  %v1583 = vpop.f32.mrb[0].mxu0
  %v1584 = vadd.f32 0.0, %v1583
  %v1585 = vpop.f32.mrb[0].mxu0
  %v1586 = vadd.f32 0.0, %v1585
  %1587 = vdwg.mxu0
  %v1588 = vadd.f32 %v1496, %v1584
  %v1589 = vadd.f32 %v1497, %v1586
  %s1590 = scalar_lea.vmem %s3, 32
  %v1591 = vld [vmem:[%s1590] sm:$0xf]
  %1592 = vrot.lane.b32.xlu0 %v36, 111
  %v1593 = vpop.permute.xlu0 %1592
  %1594 = vrot.lane.b32.xlu0 %v39, 111
  %v1595 = vpop.permute.xlu0 %1594
  %vm1596 = vcmp.lt.s32.totalorder %v46, 111
  %v1597 = vsel %vm1596, %v1593, %v1595
  %v1598 = vsel %vm1596, %v1595, %v1593
  %s1599 = scalar_lea.vmem %s2, 16
  %v1600 = vld [vmem:[%s1599] sm:$0x3]
  %v1602 = vlaneseq
  %v1603 = vshrl.u32 %v1602, 7
  %v1604 = vsub.s32 0, %v1603
  %v1605 = vrot.slane %v1600, %v1604
  %v1606 = vlaneseq
  %v1607 = vshrl.u32 %v1606, 7
  %v1608 = vsub.s32 1, %v1607
  %v1609 = vrot.slane %v1600, %v1608
  %v1612 = vmul.f32 %v1597, %v1605
  %v1613 = vmul.f32 %v1598, %v1609
  %v1615 = vsel %vm76, %v1591, 0
  %v1618 = vsel %vm80, %v1612, 0
  %v1621 = vsel %vm80, %v1613, 0
  %1623 = vmatprep.subr.mxu0 %v1621
  %1624 = vmatpush1.msra.mxu0 %v1618
  %1625 = vmatprep.subr.mxu0 0.0
  %1626 = vmatpush1.msra.mxu0 0.0
  %1627 = vmatprep.subr.mxu0 0.0
  %1628 = vmatpush1.msra.mxu0 0.0
  %1629 = vmatprep.subr.mxu0 0.0
  %1630 = vmatpush1.msra.mxu0 0.0
  %1631 = vmatprep.subr.mxu0 0.0
  %1632 = vmatpush1.msra.mxu0 0.0
  %1633 = vmatprep.subr.mxu0 0.0
  %1634 = vmatpush1.msra.mxu0 0.0
  %1635 = vmatprep.subr.mxu0 0.0
  %1636 = vmatpush1.msra.mxu0 0.0
  %1637 = vmatprep.subr.mxu0 0.0
  %1638 = vmatpush1.msra.mxu0 0.0
  %1639 = vmatprep.subr.mxu0 0.0
  %1640 = vmatpush1.msra.mxu0 0.0
  %1641 = vmatprep.subr.mxu0 0.0
  %1642 = vmatpush1.msra.mxu0 0.0
  %1643 = vmatprep.subr.mxu0 0.0
  %1644 = vmatpush1.msra.mxu0 0.0
  %1645 = vmatprep.subr.mxu0 0.0
  %1646 = vmatpush1.msra.mxu0 0.0
  %1647 = vmatprep.subr.mxu0 0.0
  %1648 = vmatpush1.msra.mxu0 0.0
  %1649 = vmatprep.subr.mxu0 0.0
  %1650 = vmatpush1.msra.mxu0 0.0
  %1651 = vmatprep.subr.mxu0 0.0
  %1652 = vmatpush1.msra.mxu0 0.0
  %1653 = vmatprep.subr.mxu0 0.0
  %1654 = vmatpush1.msra.mxu0 0.0
  %1655 = vmatprep.subr.mxu0 0.0
  %1656 = vmatpush1.msra.mxu0 0.0
  %1657 = vmatprep.subr.mxu0 0.0
  %1658 = vmatpush1.msra.mxu0 0.0
  %1659 = vmatprep.subr.mxu0 0.0
  %1660 = vmatpush1.msra.mxu0 0.0
  %1661 = vmatprep.subr.mxu0 0.0
  %1662 = vmatpush1.msra.mxu0 0.0
  %1663 = vmatprep.subr.mxu0 0.0
  %1664 = vmatpush1.msra.mxu0 0.0
  %1665 = vmatprep.subr.mxu0 0.0
  %1666 = vmatpush1.msra.mxu0 0.0
  %1667 = vmatprep.subr.mxu0 0.0
  %1668 = vmatpush1.msra.mxu0 0.0
  %1669 = vmatprep.subr.mxu0 0.0
  %1670 = vmatpush1.msra.mxu0 0.0
  %1671 = vmatprep.subr.mxu0 0.0
  %1672 = vmatpush1.msra.mxu0 0.0
  %1673 = vmatprep.subr.mxu0 0.0
  %1674 = vmatpush1.msra.mxu0 0.0
  %1675 = vmatprep.subr.mxu0 0.0
  %1676 = vmatpush1.msra.mxu0 0.0
  %1677 = vmatprep.subr.mxu0 0.0
  %1678 = vmatpush1.msra.mxu0 0.0
  %1679 = vmatprep.subr.mxu0 0.0
  %1680 = vmatpush1.msra.mxu0 0.0
  %1681 = vmatprep.subr.mxu0 0.0
  %1682 = vmatpush1.msra.mxu0 0.0
  %1683 = vmatprep.subr.mxu0 0.0
  %1684 = vmatpush1.msra.mxu0 0.0
  %1685 = vmatprep.subr.mxu0 0.0
  %1686 = vmatpush1.msra.mxu0 0.0
  %1687 = vmatprep.mubr.f32.mxu0 0.0
  %1688 = vmatmul.mubr.f32.gmra.mrb[0].mxu0 %v1615
  %v1689 = vpop.f32.mrb[0].mxu0
  %v1690 = vadd.f32 0.0, %v1689
  %v1691 = vpop.f32.mrb[0].mxu0
  %v1692 = vadd.f32 0.0, %v1691
  %1693 = vdwg.mxu0
  %v1694 = vadd.f32 %v1588, %v1690
  %v1695 = vadd.f32 %v1589, %v1692
  %s1696 = scalar_lea.vmem %s4, 32
  %v1697 = vld [vmem:[%s1696] sm:$0xf]
  %1698 = vrot.lane.b32.xlu0 %v35, 111
  %v1699 = vpop.permute.xlu0 %1698
  %1700 = vrot.lane.b32.xlu0 %v66, 111
  %v1701 = vpop.permute.xlu0 %1700
  %v1702 = vsel %vm1596, %v1699, %v1701
  %v1703 = vsel %vm1596, %v1701, %v1699
  %v1704 = vmul.f32 %v1702, %v1605
  %v1705 = vmul.f32 %v1703, %v1609
  %v1707 = vsel %vm76, %v1697, 0
  %v1710 = vsel %vm80, %v1704, 0
  %v1713 = vsel %vm80, %v1705, 0
  %1715 = vmatprep.subr.mxu0 %v1713
  %1716 = vmatpush1.msra.mxu0 %v1710
  %1717 = vmatprep.subr.mxu0 0.0
  %1718 = vmatpush1.msra.mxu0 0.0
  %1719 = vmatprep.subr.mxu0 0.0
  %1720 = vmatpush1.msra.mxu0 0.0
  %1721 = vmatprep.subr.mxu0 0.0
  %1722 = vmatpush1.msra.mxu0 0.0
  %1723 = vmatprep.subr.mxu0 0.0
  %1724 = vmatpush1.msra.mxu0 0.0
  %1725 = vmatprep.subr.mxu0 0.0
  %1726 = vmatpush1.msra.mxu0 0.0
  %1727 = vmatprep.subr.mxu0 0.0
  %1728 = vmatpush1.msra.mxu0 0.0
  %1729 = vmatprep.subr.mxu0 0.0
  %1730 = vmatpush1.msra.mxu0 0.0
  %1731 = vmatprep.subr.mxu0 0.0
  %1732 = vmatpush1.msra.mxu0 0.0
  %1733 = vmatprep.subr.mxu0 0.0
  %1734 = vmatpush1.msra.mxu0 0.0
  %1735 = vmatprep.subr.mxu0 0.0
  %1736 = vmatpush1.msra.mxu0 0.0
  %1737 = vmatprep.subr.mxu0 0.0
  %1738 = vmatpush1.msra.mxu0 0.0
  %1739 = vmatprep.subr.mxu0 0.0
  %1740 = vmatpush1.msra.mxu0 0.0
  %1741 = vmatprep.subr.mxu0 0.0
  %1742 = vmatpush1.msra.mxu0 0.0
  %1743 = vmatprep.subr.mxu0 0.0
  %1744 = vmatpush1.msra.mxu0 0.0
  %1745 = vmatprep.subr.mxu0 0.0
  %1746 = vmatpush1.msra.mxu0 0.0
  %1747 = vmatprep.subr.mxu0 0.0
  %1748 = vmatpush1.msra.mxu0 0.0
  %1749 = vmatprep.subr.mxu0 0.0
  %1750 = vmatpush1.msra.mxu0 0.0
  %1751 = vmatprep.subr.mxu0 0.0
  %1752 = vmatpush1.msra.mxu0 0.0
  %1753 = vmatprep.subr.mxu0 0.0
  %1754 = vmatpush1.msra.mxu0 0.0
  %1755 = vmatprep.subr.mxu0 0.0
  %1756 = vmatpush1.msra.mxu0 0.0
  %1757 = vmatprep.subr.mxu0 0.0
  %1758 = vmatpush1.msra.mxu0 0.0
  %1759 = vmatprep.subr.mxu0 0.0
  %1760 = vmatpush1.msra.mxu0 0.0
  %1761 = vmatprep.subr.mxu0 0.0
  %1762 = vmatpush1.msra.mxu0 0.0
  %1763 = vmatprep.subr.mxu0 0.0
  %1764 = vmatpush1.msra.mxu0 0.0
  %1765 = vmatprep.subr.mxu0 0.0
  %1766 = vmatpush1.msra.mxu0 0.0
  %1767 = vmatprep.subr.mxu0 0.0
  %1768 = vmatpush1.msra.mxu0 0.0
  %1769 = vmatprep.subr.mxu0 0.0
  %1770 = vmatpush1.msra.mxu0 0.0
  %1771 = vmatprep.subr.mxu0 0.0
  %1772 = vmatpush1.msra.mxu0 0.0
  %1773 = vmatprep.subr.mxu0 0.0
  %1774 = vmatpush1.msra.mxu0 0.0
  %1775 = vmatprep.subr.mxu0 0.0
  %1776 = vmatpush1.msra.mxu0 0.0
  %1777 = vmatprep.subr.mxu0 0.0
  %1778 = vmatpush1.msra.mxu0 0.0
  %1779 = vmatprep.mubr.f32.mxu0 0.0
  %1780 = vmatmul.mubr.f32.gmra.mrb[0].mxu0 %v1707
  %v1781 = vpop.f32.mrb[0].mxu0
  %v1782 = vadd.f32 0.0, %v1781
  %v1783 = vpop.f32.mrb[0].mxu0
  %v1784 = vadd.f32 0.0, %v1783
  %1785 = vdwg.mxu0
  %v1786 = vadd.f32 %v1694, %v1782
  %v1787 = vadd.f32 %v1695, %v1784
  %v1788 = vld [vmem:[%s5] sm:$0xf]
  %1790 = vset.pattern.permute.xlu0 0
  %1791 = vperm.xlu0 %1790, %v1788
  %v1792 = vpop.permute.xlu0 %1791
  %v1794 = vadd.f32 %v1786, %v1792
  %v1795 = vadd.f32 %v1787, %v1792
  %v1796 = vmax.f32 %v1794, 0.0
  %v1797 = vmax.f32 %v1795, 0.0
  %v1798 = vld [vmem:[%s6] sm:$0xf]
  %1799 = vrot.lane.b32.xlu0 %v1796, 17
  %v1800 = vpop.permute.xlu0 %1799
  %1801 = vrot.lane.b32.xlu0 %v1797, 17
  %v1802 = vpop.permute.xlu0 %1801
  %v1803 = vsel %vm47, %v1800, %v1802
  %v1804 = vsel %vm47, %v1802, %v1800
  %v1805 = vmul.f32 %v1804, %v55
  %v1806 = vmul.f32 %v1803, %v59
  %s1807 = scalar_lea.vmem %s6, 4
  %v1808 = vld [vmem:[%s1807] sm:$0xf]
  %1809 = vrot.lane.b32.xlu0 %v1796, 16
  %v1810 = vpop.permute.xlu0 %1809
  %1811 = vrot.lane.b32.xlu0 %v1797, 16
  %v1812 = vpop.permute.xlu0 %1811
  %v1813 = vsel %vm244, %v1810, %v1812
  %v1814 = vsel %vm244, %v1812, %v1810
  %v1815 = vmul.f32 %v1814, %v253
  %v1816 = vmul.f32 %v1813, %v257
  %v1818 = vsel %vm76, %v1808, 0
  %v1821 = vsel %vm80, %v1815, 0
  %v1824 = vsel %vm80, %v1816, 0
  %1826 = vmatprep.subr.mxu0 %v1824
  %1827 = vmatpush1.msra.mxu0 %v1821
  %1828 = vmatprep.subr.mxu0 0.0
  %1829 = vmatpush1.msra.mxu0 0.0
  %1830 = vmatprep.subr.mxu0 0.0
  %1831 = vmatpush1.msra.mxu0 0.0
  %1832 = vmatprep.subr.mxu0 0.0
  %1833 = vmatpush1.msra.mxu0 0.0
  %1834 = vmatprep.subr.mxu0 0.0
  %1835 = vmatpush1.msra.mxu0 0.0
  %1836 = vmatprep.subr.mxu0 0.0
  %1837 = vmatpush1.msra.mxu0 0.0
  %1838 = vmatprep.subr.mxu0 0.0
  %1839 = vmatpush1.msra.mxu0 0.0
  %1840 = vmatprep.subr.mxu0 0.0
  %1841 = vmatpush1.msra.mxu0 0.0
  %1842 = vmatprep.subr.mxu0 0.0
  %1843 = vmatpush1.msra.mxu0 0.0
  %1844 = vmatprep.subr.mxu0 0.0
  %1845 = vmatpush1.msra.mxu0 0.0
  %1846 = vmatprep.subr.mxu0 0.0
  %1847 = vmatpush1.msra.mxu0 0.0
  %1848 = vmatprep.subr.mxu0 0.0
  %1849 = vmatpush1.msra.mxu0 0.0
  %1850 = vmatprep.subr.mxu0 0.0
  %1851 = vmatpush1.msra.mxu0 0.0
  %1852 = vmatprep.subr.mxu0 0.0
  %1853 = vmatpush1.msra.mxu0 0.0
  %1854 = vmatprep.subr.mxu0 0.0
  %1855 = vmatpush1.msra.mxu0 0.0
  %1856 = vmatprep.subr.mxu0 0.0
  %1857 = vmatpush1.msra.mxu0 0.0
  %1858 = vmatprep.subr.mxu0 0.0
  %1859 = vmatpush1.msra.mxu0 0.0
  %1860 = vmatprep.subr.mxu0 0.0
  %1861 = vmatpush1.msra.mxu0 0.0
  %1862 = vmatprep.subr.mxu0 0.0
  %1863 = vmatpush1.msra.mxu0 0.0
  %1864 = vmatprep.subr.mxu0 0.0
  %1865 = vmatpush1.msra.mxu0 0.0
  %1866 = vmatprep.subr.mxu0 0.0
  %1867 = vmatpush1.msra.mxu0 0.0
  %1868 = vmatprep.subr.mxu0 0.0
  %1869 = vmatpush1.msra.mxu0 0.0
  %1870 = vmatprep.subr.mxu0 0.0
  %1871 = vmatpush1.msra.mxu0 0.0
  %1872 = vmatprep.subr.mxu0 0.0
  %1873 = vmatpush1.msra.mxu0 0.0
  %1874 = vmatprep.subr.mxu0 0.0
  %1875 = vmatpush1.msra.mxu0 0.0
  %1876 = vmatprep.subr.mxu0 0.0
  %1877 = vmatpush1.msra.mxu0 0.0
  %1878 = vmatprep.subr.mxu0 0.0
  %1879 = vmatpush1.msra.mxu0 0.0
  %1880 = vmatprep.subr.mxu0 0.0
  %1881 = vmatpush1.msra.mxu0 0.0
  %1882 = vmatprep.subr.mxu0 0.0
  %1883 = vmatpush1.msra.mxu0 0.0
  %1884 = vmatprep.subr.mxu0 0.0
  %1885 = vmatpush1.msra.mxu0 0.0
  %1886 = vmatprep.subr.mxu0 0.0
  %1887 = vmatpush1.msra.mxu0 0.0
  %1888 = vmatprep.subr.mxu0 0.0
  %1889 = vmatpush1.msra.mxu0 0.0
  %1890 = vmatprep.mubr.f32.mxu0 0.0
  %1891 = vmatmul.mubr.f32.gmra.mrb[0].mxu0 %v1818
  %v1892 = vpop.f32.mrb[0].mxu0
  %v1893 = vadd.f32 0.0, %v1892
  %v1894 = vpop.f32.mrb[0].mxu0
  %v1895 = vadd.f32 0.0, %v1894
  %1896 = vdwg.mxu0
  %v1898 = vsel %vm76, %v1798, 0
  %v1901 = vsel %vm80, %v1805, 0
  %v1904 = vsel %vm80, %v1806, 0
  %1906 = vmatprep.subr.mxu0 %v1904
  %1907 = vmatpush1.msra.mxu0 %v1901
  %1908 = vmatprep.subr.mxu0 0.0
  %1909 = vmatpush1.msra.mxu0 0.0
  %1910 = vmatprep.subr.mxu0 0.0
  %1911 = vmatpush1.msra.mxu0 0.0
  %1912 = vmatprep.subr.mxu0 0.0
  %1913 = vmatpush1.msra.mxu0 0.0
  %1914 = vmatprep.subr.mxu0 0.0
  %1915 = vmatpush1.msra.mxu0 0.0
  %1916 = vmatprep.subr.mxu0 0.0
  %1917 = vmatpush1.msra.mxu0 0.0
  %1918 = vmatprep.subr.mxu0 0.0
  %1919 = vmatpush1.msra.mxu0 0.0
  %1920 = vmatprep.subr.mxu0 0.0
  %1921 = vmatpush1.msra.mxu0 0.0
  %1922 = vmatprep.subr.mxu0 0.0
  %1923 = vmatpush1.msra.mxu0 0.0
  %1924 = vmatprep.subr.mxu0 0.0
  %1925 = vmatpush1.msra.mxu0 0.0
  %1926 = vmatprep.subr.mxu0 0.0
  %1927 = vmatpush1.msra.mxu0 0.0
  %1928 = vmatprep.subr.mxu0 0.0
  %1929 = vmatpush1.msra.mxu0 0.0
  %1930 = vmatprep.subr.mxu0 0.0
  %1931 = vmatpush1.msra.mxu0 0.0
  %1932 = vmatprep.subr.mxu0 0.0
  %1933 = vmatpush1.msra.mxu0 0.0
  %1934 = vmatprep.subr.mxu0 0.0
  %1935 = vmatpush1.msra.mxu0 0.0
  %1936 = vmatprep.subr.mxu0 0.0
  %1937 = vmatpush1.msra.mxu0 0.0
  %1938 = vmatprep.subr.mxu0 0.0
  %1939 = vmatpush1.msra.mxu0 0.0
  %1940 = vmatprep.subr.mxu0 0.0
  %1941 = vmatpush1.msra.mxu0 0.0
  %1942 = vmatprep.subr.mxu0 0.0
  %1943 = vmatpush1.msra.mxu0 0.0
  %1944 = vmatprep.subr.mxu0 0.0
  %1945 = vmatpush1.msra.mxu0 0.0
  %1946 = vmatprep.subr.mxu0 0.0
  %1947 = vmatpush1.msra.mxu0 0.0
  %1948 = vmatprep.subr.mxu0 0.0
  %1949 = vmatpush1.msra.mxu0 0.0
  %1950 = vmatprep.subr.mxu0 0.0
  %1951 = vmatpush1.msra.mxu0 0.0
  %1952 = vmatprep.subr.mxu0 0.0
  %1953 = vmatpush1.msra.mxu0 0.0
  %1954 = vmatprep.subr.mxu0 0.0
  %1955 = vmatpush1.msra.mxu0 0.0
  %1956 = vmatprep.subr.mxu0 0.0
  %1957 = vmatpush1.msra.mxu0 0.0
  %1958 = vmatprep.subr.mxu0 0.0
  %1959 = vmatpush1.msra.mxu0 0.0
  %1960 = vmatprep.subr.mxu0 0.0
  %1961 = vmatpush1.msra.mxu0 0.0
  %1962 = vmatprep.subr.mxu0 0.0
  %1963 = vmatpush1.msra.mxu0 0.0
  %1964 = vmatprep.subr.mxu0 0.0
  %1965 = vmatpush1.msra.mxu0 0.0
  %1966 = vmatprep.subr.mxu0 0.0
  %1967 = vmatpush1.msra.mxu0 0.0
  %1968 = vmatprep.subr.mxu0 0.0
  %1969 = vmatpush1.msra.mxu0 0.0
  %1970 = vmatprep.mubr.f32.mxu0 0.0
  %1971 = vmatmul.mubr.f32.gmra.mrb[0].mxu0 %v1898
  %v1972 = vpop.f32.mrb[0].mxu0
  %v1973 = vadd.f32 %v1893, %v1972
  %v1974 = vpop.f32.mrb[0].mxu0
  %v1975 = vadd.f32 %v1895, %v1974
  %1976 = vdwg.mxu0
  %s1977 = scalar_lea.vmem %s6, 8
  %v1978 = vld [vmem:[%s1977] sm:$0xf]
  %1979 = vrot.lane.b32.xlu0 %v1796, 15
  %v1980 = vpop.permute.xlu0 %1979
  %1981 = vrot.lane.b32.xlu0 %v1797, 15
  %v1982 = vpop.permute.xlu0 %1981
  %v1983 = vsel %vm442, %v1980, %v1982
  %v1984 = vsel %vm442, %v1982, %v1980
  %v1985 = vmul.f32 %v1984, %v451
  %v1986 = vmul.f32 %v1983, %v455
  %v1988 = vsel %vm76, %v1978, 0
  %v1991 = vsel %vm80, %v1985, 0
  %v1994 = vsel %vm80, %v1986, 0
  %1996 = vmatprep.subr.mxu0 %v1994
  %1997 = vmatpush1.msra.mxu0 %v1991
  %1998 = vmatprep.subr.mxu0 0.0
  %1999 = vmatpush1.msra.mxu0 0.0
  %2000 = vmatprep.subr.mxu0 0.0
  %2001 = vmatpush1.msra.mxu0 0.0
  %2002 = vmatprep.subr.mxu0 0.0
  %2003 = vmatpush1.msra.mxu0 0.0
  %2004 = vmatprep.subr.mxu0 0.0
  %2005 = vmatpush1.msra.mxu0 0.0
  %2006 = vmatprep.subr.mxu0 0.0
  %2007 = vmatpush1.msra.mxu0 0.0
  %2008 = vmatprep.subr.mxu0 0.0
  %2009 = vmatpush1.msra.mxu0 0.0
  %2010 = vmatprep.subr.mxu0 0.0
  %2011 = vmatpush1.msra.mxu0 0.0
  %2012 = vmatprep.subr.mxu0 0.0
  %2013 = vmatpush1.msra.mxu0 0.0
  %2014 = vmatprep.subr.mxu0 0.0
  %2015 = vmatpush1.msra.mxu0 0.0
  %2016 = vmatprep.subr.mxu0 0.0
  %2017 = vmatpush1.msra.mxu0 0.0
  %2018 = vmatprep.subr.mxu0 0.0
  %2019 = vmatpush1.msra.mxu0 0.0
  %2020 = vmatprep.subr.mxu0 0.0
  %2021 = vmatpush1.msra.mxu0 0.0
  %2022 = vmatprep.subr.mxu0 0.0
  %2023 = vmatpush1.msra.mxu0 0.0
  %2024 = vmatprep.subr.mxu0 0.0
  %2025 = vmatpush1.msra.mxu0 0.0
  %2026 = vmatprep.subr.mxu0 0.0
  %2027 = vmatpush1.msra.mxu0 0.0
  %2028 = vmatprep.subr.mxu0 0.0
  %2029 = vmatpush1.msra.mxu0 0.0
  %2030 = vmatprep.subr.mxu0 0.0
  %2031 = vmatpush1.msra.mxu0 0.0
  %2032 = vmatprep.subr.mxu0 0.0
  %2033 = vmatpush1.msra.mxu0 0.0
  %2034 = vmatprep.subr.mxu0 0.0
  %2035 = vmatpush1.msra.mxu0 0.0
  %2036 = vmatprep.subr.mxu0 0.0
  %2037 = vmatpush1.msra.mxu0 0.0
  %2038 = vmatprep.subr.mxu0 0.0
  %2039 = vmatpush1.msra.mxu0 0.0
  %2040 = vmatprep.subr.mxu0 0.0
  %2041 = vmatpush1.msra.mxu0 0.0
  %2042 = vmatprep.subr.mxu0 0.0
  %2043 = vmatpush1.msra.mxu0 0.0
  %2044 = vmatprep.subr.mxu0 0.0
  %2045 = vmatpush1.msra.mxu0 0.0
  %2046 = vmatprep.subr.mxu0 0.0
  %2047 = vmatpush1.msra.mxu0 0.0
  %2048 = vmatprep.subr.mxu0 0.0
  %2049 = vmatpush1.msra.mxu0 0.0
  %2050 = vmatprep.subr.mxu0 0.0
  %2051 = vmatpush1.msra.mxu0 0.0
  %2052 = vmatprep.subr.mxu0 0.0
  %2053 = vmatpush1.msra.mxu0 0.0
  %2054 = vmatprep.subr.mxu0 0.0
  %2055 = vmatpush1.msra.mxu0 0.0
  %2056 = vmatprep.subr.mxu0 0.0
  %2057 = vmatpush1.msra.mxu0 0.0
  %2058 = vmatprep.subr.mxu0 0.0
  %2059 = vmatpush1.msra.mxu0 0.0
  %2060 = vmatprep.mubr.f32.mxu0 0.0
  %2061 = vmatmul.mubr.f32.gmra.mrb[0].mxu0 %v1988
  %v2062 = vpop.f32.mrb[0].mxu0
  %v2063 = vadd.f32 0.0, %v2062
  %v2064 = vpop.f32.mrb[0].mxu0
  %v2065 = vadd.f32 0.0, %v2064
  %2066 = vdwg.mxu0
  %v2067 = vadd.f32 %v1973, %v2063
  %v2068 = vadd.f32 %v1975, %v2065
  %s2069 = scalar_lea.vmem %s6, 12
  %v2070 = vld [vmem:[%s2069] sm:$0xf]
  %2071 = vrot.lane.b32.xlu0 %v1796, 1
  %v2072 = vpop.permute.xlu0 %2071
  %2073 = vrot.lane.b32.xlu0 %v1797, 1
  %v2074 = vpop.permute.xlu0 %2073
  %v2075 = vsel %vm640, %v2072, %v2074
  %v2076 = vsel %vm640, %v2074, %v2072
  %v2077 = vmul.f32 %v2076, %v649
  %v2078 = vmul.f32 %v2075, %v653
  %v2080 = vsel %vm76, %v2070, 0
  %v2083 = vsel %vm80, %v2077, 0
  %v2086 = vsel %vm80, %v2078, 0
  %2088 = vmatprep.subr.mxu0 %v2086
  %2089 = vmatpush1.msra.mxu0 %v2083
  %2090 = vmatprep.subr.mxu0 0.0
  %2091 = vmatpush1.msra.mxu0 0.0
  %2092 = vmatprep.subr.mxu0 0.0
  %2093 = vmatpush1.msra.mxu0 0.0
  %2094 = vmatprep.subr.mxu0 0.0
  %2095 = vmatpush1.msra.mxu0 0.0
  %2096 = vmatprep.subr.mxu0 0.0
  %2097 = vmatpush1.msra.mxu0 0.0
  %2098 = vmatprep.subr.mxu0 0.0
  %2099 = vmatpush1.msra.mxu0 0.0
  %2100 = vmatprep.subr.mxu0 0.0
  %2101 = vmatpush1.msra.mxu0 0.0
  %2102 = vmatprep.subr.mxu0 0.0
  %2103 = vmatpush1.msra.mxu0 0.0
  %2104 = vmatprep.subr.mxu0 0.0
  %2105 = vmatpush1.msra.mxu0 0.0
  %2106 = vmatprep.subr.mxu0 0.0
  %2107 = vmatpush1.msra.mxu0 0.0
  %2108 = vmatprep.subr.mxu0 0.0
  %2109 = vmatpush1.msra.mxu0 0.0
  %2110 = vmatprep.subr.mxu0 0.0
  %2111 = vmatpush1.msra.mxu0 0.0
  %2112 = vmatprep.subr.mxu0 0.0
  %2113 = vmatpush1.msra.mxu0 0.0
  %2114 = vmatprep.subr.mxu0 0.0
  %2115 = vmatpush1.msra.mxu0 0.0
  %2116 = vmatprep.subr.mxu0 0.0
  %2117 = vmatpush1.msra.mxu0 0.0
  %2118 = vmatprep.subr.mxu0 0.0
  %2119 = vmatpush1.msra.mxu0 0.0
  %2120 = vmatprep.subr.mxu0 0.0
  %2121 = vmatpush1.msra.mxu0 0.0
  %2122 = vmatprep.subr.mxu0 0.0
  %2123 = vmatpush1.msra.mxu0 0.0
  %2124 = vmatprep.subr.mxu0 0.0
  %2125 = vmatpush1.msra.mxu0 0.0
  %2126 = vmatprep.subr.mxu0 0.0
  %2127 = vmatpush1.msra.mxu0 0.0
  %2128 = vmatprep.subr.mxu0 0.0
  %2129 = vmatpush1.msra.mxu0 0.0
  %2130 = vmatprep.subr.mxu0 0.0
  %2131 = vmatpush1.msra.mxu0 0.0
  %2132 = vmatprep.subr.mxu0 0.0
  %2133 = vmatpush1.msra.mxu0 0.0
  %2134 = vmatprep.subr.mxu0 0.0
  %2135 = vmatpush1.msra.mxu0 0.0
  %2136 = vmatprep.subr.mxu0 0.0
  %2137 = vmatpush1.msra.mxu0 0.0
  %2138 = vmatprep.subr.mxu0 0.0
  %2139 = vmatpush1.msra.mxu0 0.0
  %2140 = vmatprep.subr.mxu0 0.0
  %2141 = vmatpush1.msra.mxu0 0.0
  %2142 = vmatprep.subr.mxu0 0.0
  %2143 = vmatpush1.msra.mxu0 0.0
  %2144 = vmatprep.subr.mxu0 0.0
  %2145 = vmatpush1.msra.mxu0 0.0
  %2146 = vmatprep.subr.mxu0 0.0
  %2147 = vmatpush1.msra.mxu0 0.0
  %2148 = vmatprep.subr.mxu0 0.0
  %2149 = vmatpush1.msra.mxu0 0.0
  %2150 = vmatprep.subr.mxu0 0.0
  %2151 = vmatpush1.msra.mxu0 0.0
  %2152 = vmatprep.mubr.f32.mxu0 0.0
  %2153 = vmatmul.mubr.f32.gmra.mrb[0].mxu0 %v2080
  %v2154 = vpop.f32.mrb[0].mxu0
  %v2155 = vadd.f32 0.0, %v2154
  %v2156 = vpop.f32.mrb[0].mxu0
  %v2157 = vadd.f32 0.0, %v2156
  %2158 = vdwg.mxu0
  %v2159 = vadd.f32 %v2067, %v2155
  %v2160 = vadd.f32 %v2068, %v2157
  %s2161 = scalar_lea.vmem %s6, 16
  %v2162 = vld [vmem:[%s2161] sm:$0xf]
  %v2164 = vsel %vm76, %v2162, 0
  %v2167 = vsel %vm80, %v1796, 0
  %v2170 = vsel %vm80, %v1797, 0
  %2172 = vmatprep.subr.mxu0 %v2170
  %2173 = vmatpush1.msra.mxu0 %v2167
  %2174 = vmatprep.subr.mxu0 0.0
  %2175 = vmatpush1.msra.mxu0 0.0
  %2176 = vmatprep.subr.mxu0 0.0
  %2177 = vmatpush1.msra.mxu0 0.0
  %2178 = vmatprep.subr.mxu0 0.0
  %2179 = vmatpush1.msra.mxu0 0.0
  %2180 = vmatprep.subr.mxu0 0.0
  %2181 = vmatpush1.msra.mxu0 0.0
  %2182 = vmatprep.subr.mxu0 0.0
  %2183 = vmatpush1.msra.mxu0 0.0
  %2184 = vmatprep.subr.mxu0 0.0
  %2185 = vmatpush1.msra.mxu0 0.0
  %2186 = vmatprep.subr.mxu0 0.0
  %2187 = vmatpush1.msra.mxu0 0.0
  %2188 = vmatprep.subr.mxu0 0.0
  %2189 = vmatpush1.msra.mxu0 0.0
  %2190 = vmatprep.subr.mxu0 0.0
  %2191 = vmatpush1.msra.mxu0 0.0
  %2192 = vmatprep.subr.mxu0 0.0
  %2193 = vmatpush1.msra.mxu0 0.0
  %2194 = vmatprep.subr.mxu0 0.0
  %2195 = vmatpush1.msra.mxu0 0.0
  %2196 = vmatprep.subr.mxu0 0.0
  %2197 = vmatpush1.msra.mxu0 0.0
  %2198 = vmatprep.subr.mxu0 0.0
  %2199 = vmatpush1.msra.mxu0 0.0
  %2200 = vmatprep.subr.mxu0 0.0
  %2201 = vmatpush1.msra.mxu0 0.0
  %2202 = vmatprep.subr.mxu0 0.0
  %2203 = vmatpush1.msra.mxu0 0.0
  %2204 = vmatprep.subr.mxu0 0.0
  %2205 = vmatpush1.msra.mxu0 0.0
  %2206 = vmatprep.subr.mxu0 0.0
  %2207 = vmatpush1.msra.mxu0 0.0
  %2208 = vmatprep.subr.mxu0 0.0
  %2209 = vmatpush1.msra.mxu0 0.0
  %2210 = vmatprep.subr.mxu0 0.0
  %2211 = vmatpush1.msra.mxu0 0.0
  %2212 = vmatprep.subr.mxu0 0.0
  %2213 = vmatpush1.msra.mxu0 0.0
  %2214 = vmatprep.subr.mxu0 0.0
  %2215 = vmatpush1.msra.mxu0 0.0
  %2216 = vmatprep.subr.mxu0 0.0
  %2217 = vmatpush1.msra.mxu0 0.0
  %2218 = vmatprep.subr.mxu0 0.0
  %2219 = vmatpush1.msra.mxu0 0.0
  %2220 = vmatprep.subr.mxu0 0.0
  %2221 = vmatpush1.msra.mxu0 0.0
  %2222 = vmatprep.subr.mxu0 0.0
  %2223 = vmatpush1.msra.mxu0 0.0
  %2224 = vmatprep.subr.mxu0 0.0
  %2225 = vmatpush1.msra.mxu0 0.0
  %2226 = vmatprep.subr.mxu0 0.0
  %2227 = vmatpush1.msra.mxu0 0.0
  %2228 = vmatprep.subr.mxu0 0.0
  %2229 = vmatpush1.msra.mxu0 0.0
  %2230 = vmatprep.subr.mxu0 0.0
  %2231 = vmatpush1.msra.mxu0 0.0
  %2232 = vmatprep.subr.mxu0 0.0
  %2233 = vmatpush1.msra.mxu0 0.0
  %2234 = vmatprep.subr.mxu0 0.0
  %2235 = vmatpush1.msra.mxu0 0.0
  %2236 = vmatprep.mubr.f32.mxu0 0.0
  %2237 = vmatmul.mubr.f32.gmra.mrb[0].mxu0 %v2164
  %v2238 = vpop.f32.mrb[0].mxu0
  %v2239 = vadd.f32 0.0, %v2238
  %v2240 = vpop.f32.mrb[0].mxu0
  %v2241 = vadd.f32 0.0, %v2240
  %2242 = vdwg.mxu0
  %v2243 = vadd.f32 %v2159, %v2239
  %v2244 = vadd.f32 %v2160, %v2241
  %s2245 = scalar_lea.vmem %s6, 20
  %v2246 = vld [vmem:[%s2245] sm:$0xf]
  %2247 = vrot.lane.b32.xlu0 %v1796, 127
  %v2248 = vpop.permute.xlu0 %2247
  %2249 = vrot.lane.b32.xlu0 %v1797, 127
  %v2250 = vpop.permute.xlu0 %2249
  %v2251 = vsel %vm1002, %v2248, %v2250
  %v2252 = vsel %vm1002, %v2250, %v2248
  %v2253 = vmul.f32 %v2251, %v1011
  %v2254 = vmul.f32 %v2252, %v1015
  %v2256 = vsel %vm76, %v2246, 0
  %v2259 = vsel %vm80, %v2253, 0
  %v2262 = vsel %vm80, %v2254, 0
  %2264 = vmatprep.subr.mxu0 %v2262
  %2265 = vmatpush1.msra.mxu0 %v2259
  %2266 = vmatprep.subr.mxu0 0.0
  %2267 = vmatpush1.msra.mxu0 0.0
  %2268 = vmatprep.subr.mxu0 0.0
  %2269 = vmatpush1.msra.mxu0 0.0
  %2270 = vmatprep.subr.mxu0 0.0
  %2271 = vmatpush1.msra.mxu0 0.0
  %2272 = vmatprep.subr.mxu0 0.0
  %2273 = vmatpush1.msra.mxu0 0.0
  %2274 = vmatprep.subr.mxu0 0.0
  %2275 = vmatpush1.msra.mxu0 0.0
  %2276 = vmatprep.subr.mxu0 0.0
  %2277 = vmatpush1.msra.mxu0 0.0
  %2278 = vmatprep.subr.mxu0 0.0
  %2279 = vmatpush1.msra.mxu0 0.0
  %2280 = vmatprep.subr.mxu0 0.0
  %2281 = vmatpush1.msra.mxu0 0.0
  %2282 = vmatprep.subr.mxu0 0.0
  %2283 = vmatpush1.msra.mxu0 0.0
  %2284 = vmatprep.subr.mxu0 0.0
  %2285 = vmatpush1.msra.mxu0 0.0
  %2286 = vmatprep.subr.mxu0 0.0
  %2287 = vmatpush1.msra.mxu0 0.0
  %2288 = vmatprep.subr.mxu0 0.0
  %2289 = vmatpush1.msra.mxu0 0.0
  %2290 = vmatprep.subr.mxu0 0.0
  %2291 = vmatpush1.msra.mxu0 0.0
  %2292 = vmatprep.subr.mxu0 0.0
  %2293 = vmatpush1.msra.mxu0 0.0
  %2294 = vmatprep.subr.mxu0 0.0
  %2295 = vmatpush1.msra.mxu0 0.0
  %2296 = vmatprep.subr.mxu0 0.0
  %2297 = vmatpush1.msra.mxu0 0.0
  %2298 = vmatprep.subr.mxu0 0.0
  %2299 = vmatpush1.msra.mxu0 0.0
  %2300 = vmatprep.subr.mxu0 0.0
  %2301 = vmatpush1.msra.mxu0 0.0
  %2302 = vmatprep.subr.mxu0 0.0
  %2303 = vmatpush1.msra.mxu0 0.0
  %2304 = vmatprep.subr.mxu0 0.0
  %2305 = vmatpush1.msra.mxu0 0.0
  %2306 = vmatprep.subr.mxu0 0.0
  %2307 = vmatpush1.msra.mxu0 0.0
  %2308 = vmatprep.subr.mxu0 0.0
  %2309 = vmatpush1.msra.mxu0 0.0
  %2310 = vmatprep.subr.mxu0 0.0
  %2311 = vmatpush1.msra.mxu0 0.0
  %2312 = vmatprep.subr.mxu0 0.0
  %2313 = vmatpush1.msra.mxu0 0.0
  %2314 = vmatprep.subr.mxu0 0.0
  %2315 = vmatpush1.msra.mxu0 0.0
  %2316 = vmatprep.subr.mxu0 0.0
  %2317 = vmatpush1.msra.mxu0 0.0
  %2318 = vmatprep.subr.mxu0 0.0
  %2319 = vmatpush1.msra.mxu0 0.0
  %2320 = vmatprep.subr.mxu0 0.0
  %2321 = vmatpush1.msra.mxu0 0.0
  %2322 = vmatprep.subr.mxu0 0.0
  %2323 = vmatpush1.msra.mxu0 0.0
  %2324 = vmatprep.subr.mxu0 0.0
  %2325 = vmatpush1.msra.mxu0 0.0
  %2326 = vmatprep.subr.mxu0 0.0
  %2327 = vmatpush1.msra.mxu0 0.0
  %2328 = vmatprep.mubr.f32.mxu0 0.0
  %2329 = vmatmul.mubr.f32.gmra.mrb[0].mxu0 %v2256
  %v2330 = vpop.f32.mrb[0].mxu0
  %v2331 = vadd.f32 0.0, %v2330
  %v2332 = vpop.f32.mrb[0].mxu0
  %v2333 = vadd.f32 0.0, %v2332
  %2334 = vdwg.mxu0
  %v2335 = vadd.f32 %v2243, %v2331
  %v2336 = vadd.f32 %v2244, %v2333
  %s2337 = scalar_lea.vmem %s6, 24
  %v2338 = vld [vmem:[%s2337] sm:$0xf]
  %2339 = vrot.lane.b32.xlu0 %v1796, 113
  %v2340 = vpop.permute.xlu0 %2339
  %2341 = vrot.lane.b32.xlu0 %v1797, 113
  %v2342 = vpop.permute.xlu0 %2341
  %v2343 = vsel %vm1200, %v2340, %v2342
  %v2344 = vsel %vm1200, %v2342, %v2340
  %v2345 = vmul.f32 %v2343, %v1209
  %v2346 = vmul.f32 %v2344, %v1213
  %v2348 = vsel %vm76, %v2338, 0
  %v2351 = vsel %vm80, %v2345, 0
  %v2354 = vsel %vm80, %v2346, 0
  %2356 = vmatprep.subr.mxu0 %v2354
  %2357 = vmatpush1.msra.mxu0 %v2351
  %2358 = vmatprep.subr.mxu0 0.0
  %2359 = vmatpush1.msra.mxu0 0.0
  %2360 = vmatprep.subr.mxu0 0.0
  %2361 = vmatpush1.msra.mxu0 0.0
  %2362 = vmatprep.subr.mxu0 0.0
  %2363 = vmatpush1.msra.mxu0 0.0
  %2364 = vmatprep.subr.mxu0 0.0
  %2365 = vmatpush1.msra.mxu0 0.0
  %2366 = vmatprep.subr.mxu0 0.0
  %2367 = vmatpush1.msra.mxu0 0.0
  %2368 = vmatprep.subr.mxu0 0.0
  %2369 = vmatpush1.msra.mxu0 0.0
  %2370 = vmatprep.subr.mxu0 0.0
  %2371 = vmatpush1.msra.mxu0 0.0
  %2372 = vmatprep.subr.mxu0 0.0
  %2373 = vmatpush1.msra.mxu0 0.0
  %2374 = vmatprep.subr.mxu0 0.0
  %2375 = vmatpush1.msra.mxu0 0.0
  %2376 = vmatprep.subr.mxu0 0.0
  %2377 = vmatpush1.msra.mxu0 0.0
  %2378 = vmatprep.subr.mxu0 0.0
  %2379 = vmatpush1.msra.mxu0 0.0
  %2380 = vmatprep.subr.mxu0 0.0
  %2381 = vmatpush1.msra.mxu0 0.0
  %2382 = vmatprep.subr.mxu0 0.0
  %2383 = vmatpush1.msra.mxu0 0.0
  %2384 = vmatprep.subr.mxu0 0.0
  %2385 = vmatpush1.msra.mxu0 0.0
  %2386 = vmatprep.subr.mxu0 0.0
  %2387 = vmatpush1.msra.mxu0 0.0
  %2388 = vmatprep.subr.mxu0 0.0
  %2389 = vmatpush1.msra.mxu0 0.0
  %2390 = vmatprep.subr.mxu0 0.0
  %2391 = vmatpush1.msra.mxu0 0.0
  %2392 = vmatprep.subr.mxu0 0.0
  %2393 = vmatpush1.msra.mxu0 0.0
  %2394 = vmatprep.subr.mxu0 0.0
  %2395 = vmatpush1.msra.mxu0 0.0
  %2396 = vmatprep.subr.mxu0 0.0
  %2397 = vmatpush1.msra.mxu0 0.0
  %2398 = vmatprep.subr.mxu0 0.0
  %2399 = vmatpush1.msra.mxu0 0.0
  %2400 = vmatprep.subr.mxu0 0.0
  %2401 = vmatpush1.msra.mxu0 0.0
  %2402 = vmatprep.subr.mxu0 0.0
  %2403 = vmatpush1.msra.mxu0 0.0
  %2404 = vmatprep.subr.mxu0 0.0
  %2405 = vmatpush1.msra.mxu0 0.0
  %2406 = vmatprep.subr.mxu0 0.0
  %2407 = vmatpush1.msra.mxu0 0.0
  %2408 = vmatprep.subr.mxu0 0.0
  %2409 = vmatpush1.msra.mxu0 0.0
  %2410 = vmatprep.subr.mxu0 0.0
  %2411 = vmatpush1.msra.mxu0 0.0
  %2412 = vmatprep.subr.mxu0 0.0
  %2413 = vmatpush1.msra.mxu0 0.0
  %2414 = vmatprep.subr.mxu0 0.0
  %2415 = vmatpush1.msra.mxu0 0.0
  %2416 = vmatprep.subr.mxu0 0.0
  %2417 = vmatpush1.msra.mxu0 0.0
  %2418 = vmatprep.subr.mxu0 0.0
  %2419 = vmatpush1.msra.mxu0 0.0
  %2420 = vmatprep.mubr.f32.mxu0 0.0
  %2421 = vmatmul.mubr.f32.gmra.mrb[0].mxu0 %v2348
  %v2422 = vpop.f32.mrb[0].mxu0
  %v2423 = vadd.f32 0.0, %v2422
  %v2424 = vpop.f32.mrb[0].mxu0
  %v2425 = vadd.f32 0.0, %v2424
  %2426 = vdwg.mxu0
  %v2427 = vadd.f32 %v2335, %v2423
  %v2428 = vadd.f32 %v2336, %v2425
  %s2429 = scalar_lea.vmem %s6, 28
  %v2430 = vld [vmem:[%s2429] sm:$0xf]
  %2431 = vrot.lane.b32.xlu0 %v1796, 112
  %v2432 = vpop.permute.xlu0 %2431
  %2433 = vrot.lane.b32.xlu0 %v1797, 112
  %v2434 = vpop.permute.xlu0 %2433
  %v2435 = vsel %vm1398, %v2432, %v2434
  %v2436 = vsel %vm1398, %v2434, %v2432
  %v2437 = vmul.f32 %v2435, %v1407
  %v2438 = vmul.f32 %v2436, %v1411
  %v2440 = vsel %vm76, %v2430, 0
  %v2443 = vsel %vm80, %v2437, 0
  %v2446 = vsel %vm80, %v2438, 0
  %2448 = vmatprep.subr.mxu0 %v2446
  %2449 = vmatpush1.msra.mxu0 %v2443
  %2450 = vmatprep.subr.mxu0 0.0
  %2451 = vmatpush1.msra.mxu0 0.0
  %2452 = vmatprep.subr.mxu0 0.0
  %2453 = vmatpush1.msra.mxu0 0.0
  %2454 = vmatprep.subr.mxu0 0.0
  %2455 = vmatpush1.msra.mxu0 0.0
  %2456 = vmatprep.subr.mxu0 0.0
  %2457 = vmatpush1.msra.mxu0 0.0
  %2458 = vmatprep.subr.mxu0 0.0
  %2459 = vmatpush1.msra.mxu0 0.0
  %2460 = vmatprep.subr.mxu0 0.0
  %2461 = vmatpush1.msra.mxu0 0.0
  %2462 = vmatprep.subr.mxu0 0.0
  %2463 = vmatpush1.msra.mxu0 0.0
  %2464 = vmatprep.subr.mxu0 0.0
  %2465 = vmatpush1.msra.mxu0 0.0
  %2466 = vmatprep.subr.mxu0 0.0
  %2467 = vmatpush1.msra.mxu0 0.0
  %2468 = vmatprep.subr.mxu0 0.0
  %2469 = vmatpush1.msra.mxu0 0.0
  %2470 = vmatprep.subr.mxu0 0.0
  %2471 = vmatpush1.msra.mxu0 0.0
  %2472 = vmatprep.subr.mxu0 0.0
  %2473 = vmatpush1.msra.mxu0 0.0
  %2474 = vmatprep.subr.mxu0 0.0
  %2475 = vmatpush1.msra.mxu0 0.0
  %2476 = vmatprep.subr.mxu0 0.0
  %2477 = vmatpush1.msra.mxu0 0.0
  %2478 = vmatprep.subr.mxu0 0.0
  %2479 = vmatpush1.msra.mxu0 0.0
  %2480 = vmatprep.subr.mxu0 0.0
  %2481 = vmatpush1.msra.mxu0 0.0
  %2482 = vmatprep.subr.mxu0 0.0
  %2483 = vmatpush1.msra.mxu0 0.0
  %2484 = vmatprep.subr.mxu0 0.0
  %2485 = vmatpush1.msra.mxu0 0.0
  %2486 = vmatprep.subr.mxu0 0.0
  %2487 = vmatpush1.msra.mxu0 0.0
  %2488 = vmatprep.subr.mxu0 0.0
  %2489 = vmatpush1.msra.mxu0 0.0
  %2490 = vmatprep.subr.mxu0 0.0
  %2491 = vmatpush1.msra.mxu0 0.0
  %2492 = vmatprep.subr.mxu0 0.0
  %2493 = vmatpush1.msra.mxu0 0.0
  %2494 = vmatprep.subr.mxu0 0.0
  %2495 = vmatpush1.msra.mxu0 0.0
  %2496 = vmatprep.subr.mxu0 0.0
  %2497 = vmatpush1.msra.mxu0 0.0
  %2498 = vmatprep.subr.mxu0 0.0
  %2499 = vmatpush1.msra.mxu0 0.0
  %2500 = vmatprep.subr.mxu0 0.0
  %2501 = vmatpush1.msra.mxu0 0.0
  %2502 = vmatprep.subr.mxu0 0.0
  %2503 = vmatpush1.msra.mxu0 0.0
  %2504 = vmatprep.subr.mxu0 0.0
  %2505 = vmatpush1.msra.mxu0 0.0
  %2506 = vmatprep.subr.mxu0 0.0
  %2507 = vmatpush1.msra.mxu0 0.0
  %2508 = vmatprep.subr.mxu0 0.0
  %2509 = vmatpush1.msra.mxu0 0.0
  %2510 = vmatprep.subr.mxu0 0.0
  %2511 = vmatpush1.msra.mxu0 0.0
  %2512 = vmatprep.mubr.f32.mxu0 0.0
  %2513 = vmatmul.mubr.f32.gmra.mrb[0].mxu0 %v2440
  %v2514 = vpop.f32.mrb[0].mxu0
  %v2515 = vadd.f32 0.0, %v2514
  %v2516 = vpop.f32.mrb[0].mxu0
  %v2517 = vadd.f32 0.0, %v2516
  %2518 = vdwg.mxu0
  %v2519 = vadd.f32 %v2427, %v2515
  %v2520 = vadd.f32 %v2428, %v2517
  %s2521 = scalar_lea.vmem %s6, 32
  %v2522 = vld [vmem:[%s2521] sm:$0xf]
  %2523 = vrot.lane.b32.xlu0 %v1796, 111
  %v2524 = vpop.permute.xlu0 %2523
  %2525 = vrot.lane.b32.xlu0 %v1797, 111
  %v2526 = vpop.permute.xlu0 %2525
  %v2527 = vsel %vm1596, %v2524, %v2526
  %v2528 = vsel %vm1596, %v2526, %v2524
  %v2529 = vmul.f32 %v2527, %v1605
  %v2530 = vmul.f32 %v2528, %v1609
  %v2532 = vsel %vm76, %v2522, 0
  %v2535 = vsel %vm80, %v2529, 0
  %v2538 = vsel %vm80, %v2530, 0
  %2540 = vmatprep.subr.mxu0 %v2538
  %2541 = vmatpush1.msra.mxu0 %v2535
  %2542 = vmatprep.subr.mxu0 0.0
  %2543 = vmatpush1.msra.mxu0 0.0
  %2544 = vmatprep.subr.mxu0 0.0
  %2545 = vmatpush1.msra.mxu0 0.0
  %2546 = vmatprep.subr.mxu0 0.0
  %2547 = vmatpush1.msra.mxu0 0.0
  %2548 = vmatprep.subr.mxu0 0.0
  %2549 = vmatpush1.msra.mxu0 0.0
  %2550 = vmatprep.subr.mxu0 0.0
  %2551 = vmatpush1.msra.mxu0 0.0
  %2552 = vmatprep.subr.mxu0 0.0
  %2553 = vmatpush1.msra.mxu0 0.0
  %2554 = vmatprep.subr.mxu0 0.0
  %2555 = vmatpush1.msra.mxu0 0.0
  %2556 = vmatprep.subr.mxu0 0.0
  %2557 = vmatpush1.msra.mxu0 0.0
  %2558 = vmatprep.subr.mxu0 0.0
  %2559 = vmatpush1.msra.mxu0 0.0
  %2560 = vmatprep.subr.mxu0 0.0
  %2561 = vmatpush1.msra.mxu0 0.0
  %2562 = vmatprep.subr.mxu0 0.0
  %2563 = vmatpush1.msra.mxu0 0.0
  %2564 = vmatprep.subr.mxu0 0.0
  %2565 = vmatpush1.msra.mxu0 0.0
  %2566 = vmatprep.subr.mxu0 0.0
  %2567 = vmatpush1.msra.mxu0 0.0
  %2568 = vmatprep.subr.mxu0 0.0
  %2569 = vmatpush1.msra.mxu0 0.0
  %2570 = vmatprep.subr.mxu0 0.0
  %2571 = vmatpush1.msra.mxu0 0.0
  %2572 = vmatprep.subr.mxu0 0.0
  %2573 = vmatpush1.msra.mxu0 0.0
  %2574 = vmatprep.subr.mxu0 0.0
  %2575 = vmatpush1.msra.mxu0 0.0
  %2576 = vmatprep.subr.mxu0 0.0
  %2577 = vmatpush1.msra.mxu0 0.0
  %2578 = vmatprep.subr.mxu0 0.0
  %2579 = vmatpush1.msra.mxu0 0.0
  %2580 = vmatprep.subr.mxu0 0.0
  %2581 = vmatpush1.msra.mxu0 0.0
  %2582 = vmatprep.subr.mxu0 0.0
  %2583 = vmatpush1.msra.mxu0 0.0
  %2584 = vmatprep.subr.mxu0 0.0
  %2585 = vmatpush1.msra.mxu0 0.0
  %2586 = vmatprep.subr.mxu0 0.0
  %2587 = vmatpush1.msra.mxu0 0.0
  %2588 = vmatprep.subr.mxu0 0.0
  %2589 = vmatpush1.msra.mxu0 0.0
  %2590 = vmatprep.subr.mxu0 0.0
  %2591 = vmatpush1.msra.mxu0 0.0
  %2592 = vmatprep.subr.mxu0 0.0
  %2593 = vmatpush1.msra.mxu0 0.0
  %2594 = vmatprep.subr.mxu0 0.0
  %2595 = vmatpush1.msra.mxu0 0.0
  %2596 = vmatprep.subr.mxu0 0.0
  %2597 = vmatpush1.msra.mxu0 0.0
  %2598 = vmatprep.subr.mxu0 0.0
  %2599 = vmatpush1.msra.mxu0 0.0
  %2600 = vmatprep.subr.mxu0 0.0
  %2601 = vmatpush1.msra.mxu0 0.0
  %2602 = vmatprep.subr.mxu0 0.0
  %2603 = vmatpush1.msra.mxu0 0.0
  %2604 = vmatprep.mubr.f32.mxu0 0.0
  %2605 = vmatmul.mubr.f32.gmra.mrb[0].mxu0 %v2532
  %v2606 = vpop.f32.mrb[0].mxu0
  %v2607 = vadd.f32 0.0, %v2606
  %v2608 = vpop.f32.mrb[0].mxu0
  %v2609 = vadd.f32 0.0, %v2608
  %2610 = vdwg.mxu0
  %v2611 = vadd.f32 %v2519, %v2607
  %v2612 = vadd.f32 %v2520, %v2609
  %v2613 = vld [vmem:[%s7] sm:$0xf]
  %2615 = vset.pattern.permute.xlu0 0
  %2616 = vperm.xlu0 %2615, %v2613
  %v2617 = vpop.permute.xlu0 %2616
  %v2619 = vadd.f32 %v2611, %v2617
  %v2620 = vadd.f32 %v2612, %v2617
  %v2621 = vmax.f32 %v2619, 0.0
  %v2622 = vmax.f32 %v2620, 0.0
  %v2623 = vld [vmem:[%s8] sm:$0x3]
  %v2624 = vld [vmem:[%s9] sm:$0x3]
  %2626 = vset.pattern.permute.xlu0 0
  %2627 = vperm.xlu0 %2626, %v2624
  %v2628 = vpop.permute.xlu0 %2627
  %v2631 = vsel %vm76, %v2623, 0
  %v2634 = vsel %vm80, %v2621, 0
  %v2637 = vsel %vm80, %v2622, 0
  %2639 = vmatprep.subr.mxu0 %v2637
  %2640 = vmatpush1.msra.mxu0 %v2634
  %2641 = vmatprep.subr.mxu0 0.0
  %2642 = vmatpush1.msra.mxu0 0.0
  %2643 = vmatprep.subr.mxu0 0.0
  %2644 = vmatpush1.msra.mxu0 0.0
  %2645 = vmatprep.subr.mxu0 0.0
  %2646 = vmatpush1.msra.mxu0 0.0
  %2647 = vmatprep.subr.mxu0 0.0
  %2648 = vmatpush1.msra.mxu0 0.0
  %2649 = vmatprep.subr.mxu0 0.0
  %2650 = vmatpush1.msra.mxu0 0.0
  %2651 = vmatprep.subr.mxu0 0.0
  %2652 = vmatpush1.msra.mxu0 0.0
  %2653 = vmatprep.subr.mxu0 0.0
  %2654 = vmatpush1.msra.mxu0 0.0
  %2655 = vmatprep.subr.mxu0 0.0
  %2656 = vmatpush1.msra.mxu0 0.0
  %2657 = vmatprep.subr.mxu0 0.0
  %2658 = vmatpush1.msra.mxu0 0.0
  %2659 = vmatprep.subr.mxu0 0.0
  %2660 = vmatpush1.msra.mxu0 0.0
  %2661 = vmatprep.subr.mxu0 0.0
  %2662 = vmatpush1.msra.mxu0 0.0
  %2663 = vmatprep.subr.mxu0 0.0
  %2664 = vmatpush1.msra.mxu0 0.0
  %2665 = vmatprep.subr.mxu0 0.0
  %2666 = vmatpush1.msra.mxu0 0.0
  %2667 = vmatprep.subr.mxu0 0.0
  %2668 = vmatpush1.msra.mxu0 0.0
  %2669 = vmatprep.subr.mxu0 0.0
  %2670 = vmatpush1.msra.mxu0 0.0
  %2671 = vmatprep.subr.mxu0 0.0
  %2672 = vmatpush1.msra.mxu0 0.0
  %2673 = vmatprep.subr.mxu0 0.0
  %2674 = vmatpush1.msra.mxu0 0.0
  %2675 = vmatprep.subr.mxu0 0.0
  %2676 = vmatpush1.msra.mxu0 0.0
  %2677 = vmatprep.subr.mxu0 0.0
  %2678 = vmatpush1.msra.mxu0 0.0
  %2679 = vmatprep.subr.mxu0 0.0
  %2680 = vmatpush1.msra.mxu0 0.0
  %2681 = vmatprep.subr.mxu0 0.0
  %2682 = vmatpush1.msra.mxu0 0.0
  %2683 = vmatprep.subr.mxu0 0.0
  %2684 = vmatpush1.msra.mxu0 0.0
  %2685 = vmatprep.subr.mxu0 0.0
  %2686 = vmatpush1.msra.mxu0 0.0
  %2687 = vmatprep.subr.mxu0 0.0
  %2688 = vmatpush1.msra.mxu0 0.0
  %2689 = vmatprep.subr.mxu0 0.0
  %2690 = vmatpush1.msra.mxu0 0.0
  %2691 = vmatprep.subr.mxu0 0.0
  %2692 = vmatpush1.msra.mxu0 0.0
  %2693 = vmatprep.subr.mxu0 0.0
  %2694 = vmatpush1.msra.mxu0 0.0
  %2695 = vmatprep.subr.mxu0 0.0
  %2696 = vmatpush1.msra.mxu0 0.0
  %2697 = vmatprep.subr.mxu0 0.0
  %2698 = vmatpush1.msra.mxu0 0.0
  %2699 = vmatprep.subr.mxu0 0.0
  %2700 = vmatpush1.msra.mxu0 0.0
  %2701 = vmatprep.subr.mxu0 0.0
  %2702 = vmatpush1.msra.mxu0 0.0
  %2703 = vmatprep.mubr.f32.mxu0 0.0
  %2704 = vmatmul.mubr.f32.gmra.mrb[0].mxu0 %v2631
  %v2705 = vpop.f32.mrb[0].mxu0
  %v2706 = vadd.f32 %v2628, %v2705
  %v2707 = vpop.f32.mrb[0].mxu0
  %v2708 = vadd.f32 %v2628, %v2707
  %2709 = vdwg.mxu0
  %v2712 = vcombine.low %v2706, %v2708
  %v2714 = vunpack.c.l.s4 1983009808
  %v2715 = vunpack.c.0.s8 %v2714
  %v2716 = vlaneseq
  %v2717 = vshrl.u32 %v2716, 7
  %v2718 = vsub.s32 %v2715, %v2717
  %v2719 = vrot.slane %v2712, %v2718
  %2721 = vst [vmem:[%s10] sm:$0xf] %v2719
  %s2722 = scalar_lea.vmem %s0, 8
  %v2723 = vld [vmem:[%s2722] sm:$0xff]
  %s2724 = scalar_lea.vmem %s1, 8
  %v2725 = vld [vmem:[%s2724] sm:$0xff]
  %v2726 = vld [vmem:[%s3] sm:$0xf]
  %v2728 = vcombine.high %v2725, %v2725
  %2730 = vrot.lane.b32.xlu0 %v2725, 17
  %v2731 = vpop.permute.xlu0 %2730
  %2732 = vrot.lane.b32.xlu0 %v2728, 17
  %v2733 = vpop.permute.xlu0 %2732
  %v2734 = vsel %vm47, %v2731, %v2733
  %v2735 = vsel %vm47, %v2733, %v2731
  %v2736 = vld [vmem:[%s2] sm:$0x3]
  %v2738 = vlaneseq
  %v2739 = vshrl.u32 %v2738, 7
  %v2740 = vsub.s32 0, %v2739
  %v2741 = vrot.slane %v2736, %v2740
  %v2742 = vlaneseq
  %v2743 = vshrl.u32 %v2742, 7
  %v2744 = vsub.s32 1, %v2743
  %v2745 = vrot.slane %v2736, %v2744
  %v2748 = vmul.f32 %v2735, %v2741
  %v2749 = vmul.f32 %v2734, %v2745
  %v2750 = vld [vmem:[%s4] sm:$0xf]
  %v2752 = vcombine.high %v2723, %v2723
  %2754 = vrot.lane.b32.xlu0 %v2723, 17
  %v2755 = vpop.permute.xlu0 %2754
  %2756 = vrot.lane.b32.xlu0 %v2752, 17
  %v2757 = vpop.permute.xlu0 %2756
  %v2758 = vsel %vm47, %v2755, %v2757
  %v2759 = vsel %vm47, %v2757, %v2755
  %v2760 = vmul.f32 %v2759, %v2741
  %v2761 = vmul.f32 %v2758, %v2745
  %v2763 = vsel %vm76, %v2750, 0
  %v2766 = vsel %vm80, %v2760, 0
  %v2769 = vsel %vm80, %v2761, 0
  %2771 = vmatprep.subr.mxu0 %v2769
  %2772 = vmatpush1.msra.mxu0 %v2766
  %2773 = vmatprep.subr.mxu0 0.0
  %2774 = vmatpush1.msra.mxu0 0.0
  %2775 = vmatprep.subr.mxu0 0.0
  %2776 = vmatpush1.msra.mxu0 0.0
  %2777 = vmatprep.subr.mxu0 0.0
  %2778 = vmatpush1.msra.mxu0 0.0
  %2779 = vmatprep.subr.mxu0 0.0
  %2780 = vmatpush1.msra.mxu0 0.0
  %2781 = vmatprep.subr.mxu0 0.0
  %2782 = vmatpush1.msra.mxu0 0.0
  %2783 = vmatprep.subr.mxu0 0.0
  %2784 = vmatpush1.msra.mxu0 0.0
  %2785 = vmatprep.subr.mxu0 0.0
  %2786 = vmatpush1.msra.mxu0 0.0
  %2787 = vmatprep.subr.mxu0 0.0
  %2788 = vmatpush1.msra.mxu0 0.0
  %2789 = vmatprep.subr.mxu0 0.0
  %2790 = vmatpush1.msra.mxu0 0.0
  %2791 = vmatprep.subr.mxu0 0.0
  %2792 = vmatpush1.msra.mxu0 0.0
  %2793 = vmatprep.subr.mxu0 0.0
  %2794 = vmatpush1.msra.mxu0 0.0
  %2795 = vmatprep.subr.mxu0 0.0
  %2796 = vmatpush1.msra.mxu0 0.0
  %2797 = vmatprep.subr.mxu0 0.0
  %2798 = vmatpush1.msra.mxu0 0.0
  %2799 = vmatprep.subr.mxu0 0.0
  %2800 = vmatpush1.msra.mxu0 0.0
  %2801 = vmatprep.subr.mxu0 0.0
  %2802 = vmatpush1.msra.mxu0 0.0
  %2803 = vmatprep.subr.mxu0 0.0
  %2804 = vmatpush1.msra.mxu0 0.0
  %2805 = vmatprep.subr.mxu0 0.0
  %2806 = vmatpush1.msra.mxu0 0.0
  %2807 = vmatprep.subr.mxu0 0.0
  %2808 = vmatpush1.msra.mxu0 0.0
  %2809 = vmatprep.subr.mxu0 0.0
  %2810 = vmatpush1.msra.mxu0 0.0
  %2811 = vmatprep.subr.mxu0 0.0
  %2812 = vmatpush1.msra.mxu0 0.0
  %2813 = vmatprep.subr.mxu0 0.0
  %2814 = vmatpush1.msra.mxu0 0.0
  %2815 = vmatprep.subr.mxu0 0.0
  %2816 = vmatpush1.msra.mxu0 0.0
  %2817 = vmatprep.subr.mxu0 0.0
  %2818 = vmatpush1.msra.mxu0 0.0
  %2819 = vmatprep.subr.mxu0 0.0
  %2820 = vmatpush1.msra.mxu0 0.0
  %2821 = vmatprep.subr.mxu0 0.0
  %2822 = vmatpush1.msra.mxu0 0.0
  %2823 = vmatprep.subr.mxu0 0.0
  %2824 = vmatpush1.msra.mxu0 0.0
  %2825 = vmatprep.subr.mxu0 0.0
  %2826 = vmatpush1.msra.mxu0 0.0
  %2827 = vmatprep.subr.mxu0 0.0
  %2828 = vmatpush1.msra.mxu0 0.0
  %2829 = vmatprep.subr.mxu0 0.0
  %2830 = vmatpush1.msra.mxu0 0.0
  %2831 = vmatprep.subr.mxu0 0.0
  %2832 = vmatpush1.msra.mxu0 0.0
  %2833 = vmatprep.subr.mxu0 0.0
  %2834 = vmatpush1.msra.mxu0 0.0
  %2835 = vmatprep.mubr.f32.mxu0 0.0
  %2836 = vmatmul.mubr.f32.gmra.mrb[0].mxu0 %v2763
  %v2837 = vpop.f32.mrb[0].mxu0
  %v2838 = vadd.f32 0.0, %v2837
  %v2839 = vpop.f32.mrb[0].mxu0
  %v2840 = vadd.f32 0.0, %v2839
  %2841 = vdwg.mxu0
  %v2843 = vsel %vm76, %v2726, 0
  %v2846 = vsel %vm80, %v2748, 0
  %v2849 = vsel %vm80, %v2749, 0
  %2851 = vmatprep.subr.mxu0 %v2849
  %2852 = vmatpush1.msra.mxu0 %v2846
  %2853 = vmatprep.subr.mxu0 0.0
  %2854 = vmatpush1.msra.mxu0 0.0
  %2855 = vmatprep.subr.mxu0 0.0
  %2856 = vmatpush1.msra.mxu0 0.0
  %2857 = vmatprep.subr.mxu0 0.0
  %2858 = vmatpush1.msra.mxu0 0.0
  %2859 = vmatprep.subr.mxu0 0.0
  %2860 = vmatpush1.msra.mxu0 0.0
  %2861 = vmatprep.subr.mxu0 0.0
  %2862 = vmatpush1.msra.mxu0 0.0
  %2863 = vmatprep.subr.mxu0 0.0
  %2864 = vmatpush1.msra.mxu0 0.0
  %2865 = vmatprep.subr.mxu0 0.0
  %2866 = vmatpush1.msra.mxu0 0.0
  %2867 = vmatprep.subr.mxu0 0.0
  %2868 = vmatpush1.msra.mxu0 0.0
  %2869 = vmatprep.subr.mxu0 0.0
  %2870 = vmatpush1.msra.mxu0 0.0
  %2871 = vmatprep.subr.mxu0 0.0
  %2872 = vmatpush1.msra.mxu0 0.0
  %2873 = vmatprep.subr.mxu0 0.0
  %2874 = vmatpush1.msra.mxu0 0.0
  %2875 = vmatprep.subr.mxu0 0.0
  %2876 = vmatpush1.msra.mxu0 0.0
  %2877 = vmatprep.subr.mxu0 0.0
  %2878 = vmatpush1.msra.mxu0 0.0
  %2879 = vmatprep.subr.mxu0 0.0
  %2880 = vmatpush1.msra.mxu0 0.0
  %2881 = vmatprep.subr.mxu0 0.0
  %2882 = vmatpush1.msra.mxu0 0.0
  %2883 = vmatprep.subr.mxu0 0.0
  %2884 = vmatpush1.msra.mxu0 0.0
  %2885 = vmatprep.subr.mxu0 0.0
  %2886 = vmatpush1.msra.mxu0 0.0
  %2887 = vmatprep.subr.mxu0 0.0
  %2888 = vmatpush1.msra.mxu0 0.0
  %2889 = vmatprep.subr.mxu0 0.0
  %2890 = vmatpush1.msra.mxu0 0.0
  %2891 = vmatprep.subr.mxu0 0.0
  %2892 = vmatpush1.msra.mxu0 0.0
  %2893 = vmatprep.subr.mxu0 0.0
  %2894 = vmatpush1.msra.mxu0 0.0
  %2895 = vmatprep.subr.mxu0 0.0
  %2896 = vmatpush1.msra.mxu0 0.0
  %2897 = vmatprep.subr.mxu0 0.0
  %2898 = vmatpush1.msra.mxu0 0.0
  %2899 = vmatprep.subr.mxu0 0.0
  %2900 = vmatpush1.msra.mxu0 0.0
  %2901 = vmatprep.subr.mxu0 0.0
  %2902 = vmatpush1.msra.mxu0 0.0
  %2903 = vmatprep.subr.mxu0 0.0
  %2904 = vmatpush1.msra.mxu0 0.0
  %2905 = vmatprep.subr.mxu0 0.0
  %2906 = vmatpush1.msra.mxu0 0.0
  %2907 = vmatprep.subr.mxu0 0.0
  %2908 = vmatpush1.msra.mxu0 0.0
  %2909 = vmatprep.subr.mxu0 0.0
  %2910 = vmatpush1.msra.mxu0 0.0
  %2911 = vmatprep.subr.mxu0 0.0
  %2912 = vmatpush1.msra.mxu0 0.0
  %2913 = vmatprep.subr.mxu0 0.0
  %2914 = vmatpush1.msra.mxu0 0.0
  %2915 = vmatprep.mubr.f32.mxu0 0.0
  %2916 = vmatmul.mubr.f32.gmra.mrb[0].mxu0 %v2843
  %v2917 = vpop.f32.mrb[0].mxu0
  %v2918 = vadd.f32 %v2838, %v2917
  %v2919 = vpop.f32.mrb[0].mxu0
  %v2920 = vadd.f32 %v2840, %v2919
  %2921 = vdwg.mxu0
  %v2922 = vld [vmem:[%s238] sm:$0xf]
  %2923 = vrot.lane.b32.xlu0 %v2725, 16
  %v2924 = vpop.permute.xlu0 %2923
  %2925 = vrot.lane.b32.xlu0 %v2728, 16
  %v2926 = vpop.permute.xlu0 %2925
  %v2927 = vsel %vm244, %v2924, %v2926
  %v2928 = vsel %vm244, %v2926, %v2924
  %v2929 = vld [vmem:[%s247] sm:$0x3]
  %v2931 = vlaneseq
  %v2932 = vshrl.u32 %v2931, 7
  %v2933 = vsub.s32 0, %v2932
  %v2934 = vrot.slane %v2929, %v2933
  %v2935 = vlaneseq
  %v2936 = vshrl.u32 %v2935, 7
  %v2937 = vsub.s32 1, %v2936
  %v2938 = vrot.slane %v2929, %v2937
  %v2941 = vmul.f32 %v2928, %v2934
  %v2942 = vmul.f32 %v2927, %v2938
  %v2944 = vsel %vm76, %v2922, 0
  %v2947 = vsel %vm80, %v2941, 0
  %v2950 = vsel %vm80, %v2942, 0
  %2952 = vmatprep.subr.mxu0 %v2950
  %2953 = vmatpush1.msra.mxu0 %v2947
  %2954 = vmatprep.subr.mxu0 0.0
  %2955 = vmatpush1.msra.mxu0 0.0
  %2956 = vmatprep.subr.mxu0 0.0
  %2957 = vmatpush1.msra.mxu0 0.0
  %2958 = vmatprep.subr.mxu0 0.0
  %2959 = vmatpush1.msra.mxu0 0.0
  %2960 = vmatprep.subr.mxu0 0.0
  %2961 = vmatpush1.msra.mxu0 0.0
  %2962 = vmatprep.subr.mxu0 0.0
  %2963 = vmatpush1.msra.mxu0 0.0
  %2964 = vmatprep.subr.mxu0 0.0
  %2965 = vmatpush1.msra.mxu0 0.0
  %2966 = vmatprep.subr.mxu0 0.0
  %2967 = vmatpush1.msra.mxu0 0.0
  %2968 = vmatprep.subr.mxu0 0.0
  %2969 = vmatpush1.msra.mxu0 0.0
  %2970 = vmatprep.subr.mxu0 0.0
  %2971 = vmatpush1.msra.mxu0 0.0
  %2972 = vmatprep.subr.mxu0 0.0
  %2973 = vmatpush1.msra.mxu0 0.0
  %2974 = vmatprep.subr.mxu0 0.0
  %2975 = vmatpush1.msra.mxu0 0.0
  %2976 = vmatprep.subr.mxu0 0.0
  %2977 = vmatpush1.msra.mxu0 0.0
  %2978 = vmatprep.subr.mxu0 0.0
  %2979 = vmatpush1.msra.mxu0 0.0
  %2980 = vmatprep.subr.mxu0 0.0
  %2981 = vmatpush1.msra.mxu0 0.0
  %2982 = vmatprep.subr.mxu0 0.0
  %2983 = vmatpush1.msra.mxu0 0.0
  %2984 = vmatprep.subr.mxu0 0.0
  %2985 = vmatpush1.msra.mxu0 0.0
  %2986 = vmatprep.subr.mxu0 0.0
  %2987 = vmatpush1.msra.mxu0 0.0
  %2988 = vmatprep.subr.mxu0 0.0
  %2989 = vmatpush1.msra.mxu0 0.0
  %2990 = vmatprep.subr.mxu0 0.0
  %2991 = vmatpush1.msra.mxu0 0.0
  %2992 = vmatprep.subr.mxu0 0.0
  %2993 = vmatpush1.msra.mxu0 0.0
  %2994 = vmatprep.subr.mxu0 0.0
  %2995 = vmatpush1.msra.mxu0 0.0
  %2996 = vmatprep.subr.mxu0 0.0
  %2997 = vmatpush1.msra.mxu0 0.0
  %2998 = vmatprep.subr.mxu0 0.0
  %2999 = vmatpush1.msra.mxu0 0.0
  %3000 = vmatprep.subr.mxu0 0.0
  %3001 = vmatpush1.msra.mxu0 0.0
  %3002 = vmatprep.subr.mxu0 0.0
  %3003 = vmatpush1.msra.mxu0 0.0
  %3004 = vmatprep.subr.mxu0 0.0
  %3005 = vmatpush1.msra.mxu0 0.0
  %3006 = vmatprep.subr.mxu0 0.0
  %3007 = vmatpush1.msra.mxu0 0.0
  %3008 = vmatprep.subr.mxu0 0.0
  %3009 = vmatpush1.msra.mxu0 0.0
  %3010 = vmatprep.subr.mxu0 0.0
  %3011 = vmatpush1.msra.mxu0 0.0
  %3012 = vmatprep.subr.mxu0 0.0
  %3013 = vmatpush1.msra.mxu0 0.0
  %3014 = vmatprep.subr.mxu0 0.0
  %3015 = vmatpush1.msra.mxu0 0.0
  %3016 = vmatprep.mubr.f32.mxu0 0.0
  %3017 = vmatmul.mubr.f32.gmra.mrb[0].mxu0 %v2944
  %v3018 = vpop.f32.mrb[0].mxu0
  %v3019 = vadd.f32 0.0, %v3018
  %v3020 = vpop.f32.mrb[0].mxu0
  %v3021 = vadd.f32 0.0, %v3020
  %3022 = vdwg.mxu0
  %v3023 = vadd.f32 %v2918, %v3019
  %v3024 = vadd.f32 %v2920, %v3021
  %v3025 = vld [vmem:[%s344] sm:$0xf]
  %3026 = vrot.lane.b32.xlu0 %v2723, 16
  %v3027 = vpop.permute.xlu0 %3026
  %3028 = vrot.lane.b32.xlu0 %v2752, 16
  %v3029 = vpop.permute.xlu0 %3028
  %v3030 = vsel %vm244, %v3027, %v3029
  %v3031 = vsel %vm244, %v3029, %v3027
  %v3032 = vmul.f32 %v3031, %v2934
  %v3033 = vmul.f32 %v3030, %v2938
  %v3035 = vsel %vm76, %v3025, 0
  %v3038 = vsel %vm80, %v3032, 0
  %v3041 = vsel %vm80, %v3033, 0
  %3043 = vmatprep.subr.mxu0 %v3041
  %3044 = vmatpush1.msra.mxu0 %v3038
  %3045 = vmatprep.subr.mxu0 0.0
  %3046 = vmatpush1.msra.mxu0 0.0
  %3047 = vmatprep.subr.mxu0 0.0
  %3048 = vmatpush1.msra.mxu0 0.0
  %3049 = vmatprep.subr.mxu0 0.0
  %3050 = vmatpush1.msra.mxu0 0.0
  %3051 = vmatprep.subr.mxu0 0.0
  %3052 = vmatpush1.msra.mxu0 0.0
  %3053 = vmatprep.subr.mxu0 0.0
  %3054 = vmatpush1.msra.mxu0 0.0
  %3055 = vmatprep.subr.mxu0 0.0
  %3056 = vmatpush1.msra.mxu0 0.0
  %3057 = vmatprep.subr.mxu0 0.0
  %3058 = vmatpush1.msra.mxu0 0.0
  %3059 = vmatprep.subr.mxu0 0.0
  %3060 = vmatpush1.msra.mxu0 0.0
  %3061 = vmatprep.subr.mxu0 0.0
  %3062 = vmatpush1.msra.mxu0 0.0
  %3063 = vmatprep.subr.mxu0 0.0
  %3064 = vmatpush1.msra.mxu0 0.0
  %3065 = vmatprep.subr.mxu0 0.0
  %3066 = vmatpush1.msra.mxu0 0.0
  %3067 = vmatprep.subr.mxu0 0.0
  %3068 = vmatpush1.msra.mxu0 0.0
  %3069 = vmatprep.subr.mxu0 0.0
  %3070 = vmatpush1.msra.mxu0 0.0
  %3071 = vmatprep.subr.mxu0 0.0
  %3072 = vmatpush1.msra.mxu0 0.0
  %3073 = vmatprep.subr.mxu0 0.0
  %3074 = vmatpush1.msra.mxu0 0.0
  %3075 = vmatprep.subr.mxu0 0.0
  %3076 = vmatpush1.msra.mxu0 0.0
  %3077 = vmatprep.subr.mxu0 0.0
  %3078 = vmatpush1.msra.mxu0 0.0
  %3079 = vmatprep.subr.mxu0 0.0
  %3080 = vmatpush1.msra.mxu0 0.0
  %3081 = vmatprep.subr.mxu0 0.0
  %3082 = vmatpush1.msra.mxu0 0.0
  %3083 = vmatprep.subr.mxu0 0.0
  %3084 = vmatpush1.msra.mxu0 0.0
  %3085 = vmatprep.subr.mxu0 0.0
  %3086 = vmatpush1.msra.mxu0 0.0
  %3087 = vmatprep.subr.mxu0 0.0
  %3088 = vmatpush1.msra.mxu0 0.0
  %3089 = vmatprep.subr.mxu0 0.0
  %3090 = vmatpush1.msra.mxu0 0.0
  %3091 = vmatprep.subr.mxu0 0.0
  %3092 = vmatpush1.msra.mxu0 0.0
  %3093 = vmatprep.subr.mxu0 0.0
  %3094 = vmatpush1.msra.mxu0 0.0
  %3095 = vmatprep.subr.mxu0 0.0
  %3096 = vmatpush1.msra.mxu0 0.0
  %3097 = vmatprep.subr.mxu0 0.0
  %3098 = vmatpush1.msra.mxu0 0.0
  %3099 = vmatprep.subr.mxu0 0.0
  %3100 = vmatpush1.msra.mxu0 0.0
  %3101 = vmatprep.subr.mxu0 0.0
  %3102 = vmatpush1.msra.mxu0 0.0
  %3103 = vmatprep.subr.mxu0 0.0
  %3104 = vmatpush1.msra.mxu0 0.0
  %3105 = vmatprep.subr.mxu0 0.0
  %3106 = vmatpush1.msra.mxu0 0.0
  %3107 = vmatprep.mubr.f32.mxu0 0.0
  %3108 = vmatmul.mubr.f32.gmra.mrb[0].mxu0 %v3035
  %v3109 = vpop.f32.mrb[0].mxu0
  %v3110 = vadd.f32 0.0, %v3109
  %v3111 = vpop.f32.mrb[0].mxu0
  %v3112 = vadd.f32 0.0, %v3111
  %3113 = vdwg.mxu0
  %v3114 = vadd.f32 %v3023, %v3110
  %v3115 = vadd.f32 %v3024, %v3112
  %v3116 = vld [vmem:[%s436] sm:$0xf]
  %3117 = vrot.lane.b32.xlu0 %v2725, 15
  %v3118 = vpop.permute.xlu0 %3117
  %3119 = vrot.lane.b32.xlu0 %v2728, 15
  %v3120 = vpop.permute.xlu0 %3119
  %v3121 = vsel %vm442, %v3118, %v3120
  %v3122 = vsel %vm442, %v3120, %v3118
  %v3123 = vld [vmem:[%s445] sm:$0x3]
  %v3125 = vlaneseq
  %v3126 = vshrl.u32 %v3125, 7
  %v3127 = vsub.s32 0, %v3126
  %v3128 = vrot.slane %v3123, %v3127
  %v3129 = vlaneseq
  %v3130 = vshrl.u32 %v3129, 7
  %v3131 = vsub.s32 1, %v3130
  %v3132 = vrot.slane %v3123, %v3131
  %v3135 = vmul.f32 %v3122, %v3128
  %v3136 = vmul.f32 %v3121, %v3132
  %v3138 = vsel %vm76, %v3116, 0
  %v3141 = vsel %vm80, %v3135, 0
  %v3144 = vsel %vm80, %v3136, 0
  %3146 = vmatprep.subr.mxu0 %v3144
  %3147 = vmatpush1.msra.mxu0 %v3141
  %3148 = vmatprep.subr.mxu0 0.0
  %3149 = vmatpush1.msra.mxu0 0.0
  %3150 = vmatprep.subr.mxu0 0.0
  %3151 = vmatpush1.msra.mxu0 0.0
  %3152 = vmatprep.subr.mxu0 0.0
  %3153 = vmatpush1.msra.mxu0 0.0
  %3154 = vmatprep.subr.mxu0 0.0
  %3155 = vmatpush1.msra.mxu0 0.0
  %3156 = vmatprep.subr.mxu0 0.0
  %3157 = vmatpush1.msra.mxu0 0.0
  %3158 = vmatprep.subr.mxu0 0.0
  %3159 = vmatpush1.msra.mxu0 0.0
  %3160 = vmatprep.subr.mxu0 0.0
  %3161 = vmatpush1.msra.mxu0 0.0
  %3162 = vmatprep.subr.mxu0 0.0
  %3163 = vmatpush1.msra.mxu0 0.0
  %3164 = vmatprep.subr.mxu0 0.0
  %3165 = vmatpush1.msra.mxu0 0.0
  %3166 = vmatprep.subr.mxu0 0.0
  %3167 = vmatpush1.msra.mxu0 0.0
  %3168 = vmatprep.subr.mxu0 0.0
  %3169 = vmatpush1.msra.mxu0 0.0
  %3170 = vmatprep.subr.mxu0 0.0
  %3171 = vmatpush1.msra.mxu0 0.0
  %3172 = vmatprep.subr.mxu0 0.0
  %3173 = vmatpush1.msra.mxu0 0.0
  %3174 = vmatprep.subr.mxu0 0.0
  %3175 = vmatpush1.msra.mxu0 0.0
  %3176 = vmatprep.subr.mxu0 0.0
  %3177 = vmatpush1.msra.mxu0 0.0
  %3178 = vmatprep.subr.mxu0 0.0
  %3179 = vmatpush1.msra.mxu0 0.0
  %3180 = vmatprep.subr.mxu0 0.0
  %3181 = vmatpush1.msra.mxu0 0.0
  %3182 = vmatprep.subr.mxu0 0.0
  %3183 = vmatpush1.msra.mxu0 0.0
  %3184 = vmatprep.subr.mxu0 0.0
  %3185 = vmatpush1.msra.mxu0 0.0
  %3186 = vmatprep.subr.mxu0 0.0
  %3187 = vmatpush1.msra.mxu0 0.0
  %3188 = vmatprep.subr.mxu0 0.0
  %3189 = vmatpush1.msra.mxu0 0.0
  %3190 = vmatprep.subr.mxu0 0.0
  %3191 = vmatpush1.msra.mxu0 0.0
  %3192 = vmatprep.subr.mxu0 0.0
  %3193 = vmatpush1.msra.mxu0 0.0
  %3194 = vmatprep.subr.mxu0 0.0
  %3195 = vmatpush1.msra.mxu0 0.0
  %3196 = vmatprep.subr.mxu0 0.0
  %3197 = vmatpush1.msra.mxu0 0.0
  %3198 = vmatprep.subr.mxu0 0.0
  %3199 = vmatpush1.msra.mxu0 0.0
  %3200 = vmatprep.subr.mxu0 0.0
  %3201 = vmatpush1.msra.mxu0 0.0
  %3202 = vmatprep.subr.mxu0 0.0
  %3203 = vmatpush1.msra.mxu0 0.0
  %3204 = vmatprep.subr.mxu0 0.0
  %3205 = vmatpush1.msra.mxu0 0.0
  %3206 = vmatprep.subr.mxu0 0.0
  %3207 = vmatpush1.msra.mxu0 0.0
  %3208 = vmatprep.subr.mxu0 0.0
  %3209 = vmatpush1.msra.mxu0 0.0
  %3210 = vmatprep.mubr.f32.mxu0 0.0
  %3211 = vmatmul.mubr.f32.gmra.mrb[0].mxu0 %v3138
  %v3212 = vpop.f32.mrb[0].mxu0
  %v3213 = vadd.f32 0.0, %v3212
  %v3214 = vpop.f32.mrb[0].mxu0
  %v3215 = vadd.f32 0.0, %v3214
  %3216 = vdwg.mxu0
  %v3217 = vadd.f32 %v3114, %v3213
  %v3218 = vadd.f32 %v3115, %v3215
  %v3219 = vld [vmem:[%s542] sm:$0xf]
  %3220 = vrot.lane.b32.xlu0 %v2723, 15
  %v3221 = vpop.permute.xlu0 %3220
  %3222 = vrot.lane.b32.xlu0 %v2752, 15
  %v3223 = vpop.permute.xlu0 %3222
  %v3224 = vsel %vm442, %v3221, %v3223
  %v3225 = vsel %vm442, %v3223, %v3221
  %v3226 = vmul.f32 %v3225, %v3128
  %v3227 = vmul.f32 %v3224, %v3132
  %v3229 = vsel %vm76, %v3219, 0
  %v3232 = vsel %vm80, %v3226, 0
  %v3235 = vsel %vm80, %v3227, 0
  %3237 = vmatprep.subr.mxu0 %v3235
  %3238 = vmatpush1.msra.mxu0 %v3232
  %3239 = vmatprep.subr.mxu0 0.0
  %3240 = vmatpush1.msra.mxu0 0.0
  %3241 = vmatprep.subr.mxu0 0.0
  %3242 = vmatpush1.msra.mxu0 0.0
  %3243 = vmatprep.subr.mxu0 0.0
  %3244 = vmatpush1.msra.mxu0 0.0
  %3245 = vmatprep.subr.mxu0 0.0
  %3246 = vmatpush1.msra.mxu0 0.0
  %3247 = vmatprep.subr.mxu0 0.0
  %3248 = vmatpush1.msra.mxu0 0.0
  %3249 = vmatprep.subr.mxu0 0.0
  %3250 = vmatpush1.msra.mxu0 0.0
  %3251 = vmatprep.subr.mxu0 0.0
  %3252 = vmatpush1.msra.mxu0 0.0
  %3253 = vmatprep.subr.mxu0 0.0
  %3254 = vmatpush1.msra.mxu0 0.0
  %3255 = vmatprep.subr.mxu0 0.0
  %3256 = vmatpush1.msra.mxu0 0.0
  %3257 = vmatprep.subr.mxu0 0.0
  %3258 = vmatpush1.msra.mxu0 0.0
  %3259 = vmatprep.subr.mxu0 0.0
  %3260 = vmatpush1.msra.mxu0 0.0
  %3261 = vmatprep.subr.mxu0 0.0
  %3262 = vmatpush1.msra.mxu0 0.0
  %3263 = vmatprep.subr.mxu0 0.0
  %3264 = vmatpush1.msra.mxu0 0.0
  %3265 = vmatprep.subr.mxu0 0.0
  %3266 = vmatpush1.msra.mxu0 0.0
  %3267 = vmatprep.subr.mxu0 0.0
  %3268 = vmatpush1.msra.mxu0 0.0
  %3269 = vmatprep.subr.mxu0 0.0
  %3270 = vmatpush1.msra.mxu0 0.0
  %3271 = vmatprep.subr.mxu0 0.0
  %3272 = vmatpush1.msra.mxu0 0.0
  %3273 = vmatprep.subr.mxu0 0.0
  %3274 = vmatpush1.msra.mxu0 0.0
  %3275 = vmatprep.subr.mxu0 0.0
  %3276 = vmatpush1.msra.mxu0 0.0
  %3277 = vmatprep.subr.mxu0 0.0
  %3278 = vmatpush1.msra.mxu0 0.0
  %3279 = vmatprep.subr.mxu0 0.0
  %3280 = vmatpush1.msra.mxu0 0.0
  %3281 = vmatprep.subr.mxu0 0.0
  %3282 = vmatpush1.msra.mxu0 0.0
  %3283 = vmatprep.subr.mxu0 0.0
  %3284 = vmatpush1.msra.mxu0 0.0
  %3285 = vmatprep.subr.mxu0 0.0
  %3286 = vmatpush1.msra.mxu0 0.0
  %3287 = vmatprep.subr.mxu0 0.0
  %3288 = vmatpush1.msra.mxu0 0.0
  %3289 = vmatprep.subr.mxu0 0.0
  %3290 = vmatpush1.msra.mxu0 0.0
  %3291 = vmatprep.subr.mxu0 0.0
  %3292 = vmatpush1.msra.mxu0 0.0
  %3293 = vmatprep.subr.mxu0 0.0
  %3294 = vmatpush1.msra.mxu0 0.0
  %3295 = vmatprep.subr.mxu0 0.0
  %3296 = vmatpush1.msra.mxu0 0.0
  %3297 = vmatprep.subr.mxu0 0.0
  %3298 = vmatpush1.msra.mxu0 0.0
  %3299 = vmatprep.subr.mxu0 0.0
  %3300 = vmatpush1.msra.mxu0 0.0
  %3301 = vmatprep.mubr.f32.mxu0 0.0
  %3302 = vmatmul.mubr.f32.gmra.mrb[0].mxu0 %v3229
  %v3303 = vpop.f32.mrb[0].mxu0
  %v3304 = vadd.f32 0.0, %v3303
  %v3305 = vpop.f32.mrb[0].mxu0
  %v3306 = vadd.f32 0.0, %v3305
  %3307 = vdwg.mxu0
  %v3308 = vadd.f32 %v3217, %v3304
  %v3309 = vadd.f32 %v3218, %v3306
  %v3310 = vld [vmem:[%s634] sm:$0xf]
  %3311 = vrot.lane.b32.xlu0 %v2725, 1
  %v3312 = vpop.permute.xlu0 %3311
  %3313 = vrot.lane.b32.xlu0 %v2728, 1
  %v3314 = vpop.permute.xlu0 %3313
  %v3315 = vsel %vm640, %v3312, %v3314
  %v3316 = vsel %vm640, %v3314, %v3312
  %v3317 = vld [vmem:[%s643] sm:$0x3]
  %v3319 = vlaneseq
  %v3320 = vshrl.u32 %v3319, 7
  %v3321 = vsub.s32 0, %v3320
  %v3322 = vrot.slane %v3317, %v3321
  %v3323 = vlaneseq
  %v3324 = vshrl.u32 %v3323, 7
  %v3325 = vsub.s32 1, %v3324
  %v3326 = vrot.slane %v3317, %v3325
  %v3329 = vmul.f32 %v3316, %v3322
  %v3330 = vmul.f32 %v3315, %v3326
  %v3332 = vsel %vm76, %v3310, 0
  %v3335 = vsel %vm80, %v3329, 0
  %v3338 = vsel %vm80, %v3330, 0
  %3340 = vmatprep.subr.mxu0 %v3338
  %3341 = vmatpush1.msra.mxu0 %v3335
  %3342 = vmatprep.subr.mxu0 0.0
  %3343 = vmatpush1.msra.mxu0 0.0
  %3344 = vmatprep.subr.mxu0 0.0
  %3345 = vmatpush1.msra.mxu0 0.0
  %3346 = vmatprep.subr.mxu0 0.0
  %3347 = vmatpush1.msra.mxu0 0.0
  %3348 = vmatprep.subr.mxu0 0.0
  %3349 = vmatpush1.msra.mxu0 0.0
  %3350 = vmatprep.subr.mxu0 0.0
  %3351 = vmatpush1.msra.mxu0 0.0
  %3352 = vmatprep.subr.mxu0 0.0
  %3353 = vmatpush1.msra.mxu0 0.0
  %3354 = vmatprep.subr.mxu0 0.0
  %3355 = vmatpush1.msra.mxu0 0.0
  %3356 = vmatprep.subr.mxu0 0.0
  %3357 = vmatpush1.msra.mxu0 0.0
  %3358 = vmatprep.subr.mxu0 0.0
  %3359 = vmatpush1.msra.mxu0 0.0
  %3360 = vmatprep.subr.mxu0 0.0
  %3361 = vmatpush1.msra.mxu0 0.0
  %3362 = vmatprep.subr.mxu0 0.0
  %3363 = vmatpush1.msra.mxu0 0.0
  %3364 = vmatprep.subr.mxu0 0.0
  %3365 = vmatpush1.msra.mxu0 0.0
  %3366 = vmatprep.subr.mxu0 0.0
  %3367 = vmatpush1.msra.mxu0 0.0
  %3368 = vmatprep.subr.mxu0 0.0
  %3369 = vmatpush1.msra.mxu0 0.0
  %3370 = vmatprep.subr.mxu0 0.0
  %3371 = vmatpush1.msra.mxu0 0.0
  %3372 = vmatprep.subr.mxu0 0.0
  %3373 = vmatpush1.msra.mxu0 0.0
  %3374 = vmatprep.subr.mxu0 0.0
  %3375 = vmatpush1.msra.mxu0 0.0
  %3376 = vmatprep.subr.mxu0 0.0
  %3377 = vmatpush1.msra.mxu0 0.0
  %3378 = vmatprep.subr.mxu0 0.0
  %3379 = vmatpush1.msra.mxu0 0.0
  %3380 = vmatprep.subr.mxu0 0.0
  %3381 = vmatpush1.msra.mxu0 0.0
  %3382 = vmatprep.subr.mxu0 0.0
  %3383 = vmatpush1.msra.mxu0 0.0
  %3384 = vmatprep.subr.mxu0 0.0
  %3385 = vmatpush1.msra.mxu0 0.0
  %3386 = vmatprep.subr.mxu0 0.0
  %3387 = vmatpush1.msra.mxu0 0.0
  %3388 = vmatprep.subr.mxu0 0.0
  %3389 = vmatpush1.msra.mxu0 0.0
  %3390 = vmatprep.subr.mxu0 0.0
  %3391 = vmatpush1.msra.mxu0 0.0
  %3392 = vmatprep.subr.mxu0 0.0
  %3393 = vmatpush1.msra.mxu0 0.0
  %3394 = vmatprep.subr.mxu0 0.0
  %3395 = vmatpush1.msra.mxu0 0.0
  %3396 = vmatprep.subr.mxu0 0.0
  %3397 = vmatpush1.msra.mxu0 0.0
  %3398 = vmatprep.subr.mxu0 0.0
  %3399 = vmatpush1.msra.mxu0 0.0
  %3400 = vmatprep.subr.mxu0 0.0
  %3401 = vmatpush1.msra.mxu0 0.0
  %3402 = vmatprep.subr.mxu0 0.0
  %3403 = vmatpush1.msra.mxu0 0.0
  %3404 = vmatprep.mubr.f32.mxu0 0.0
  %3405 = vmatmul.mubr.f32.gmra.mrb[0].mxu0 %v3332
  %v3406 = vpop.f32.mrb[0].mxu0
  %v3407 = vadd.f32 0.0, %v3406
  %v3408 = vpop.f32.mrb[0].mxu0
  %v3409 = vadd.f32 0.0, %v3408
  %3410 = vdwg.mxu0
  %v3411 = vadd.f32 %v3308, %v3407
  %v3412 = vadd.f32 %v3309, %v3409
  %v3413 = vld [vmem:[%s740] sm:$0xf]
  %3414 = vrot.lane.b32.xlu0 %v2723, 1
  %v3415 = vpop.permute.xlu0 %3414
  %3416 = vrot.lane.b32.xlu0 %v2752, 1
  %v3417 = vpop.permute.xlu0 %3416
  %v3418 = vsel %vm640, %v3415, %v3417
  %v3419 = vsel %vm640, %v3417, %v3415
  %v3420 = vmul.f32 %v3419, %v3322
  %v3421 = vmul.f32 %v3418, %v3326
  %v3423 = vsel %vm76, %v3413, 0
  %v3426 = vsel %vm80, %v3420, 0
  %v3429 = vsel %vm80, %v3421, 0
  %3431 = vmatprep.subr.mxu0 %v3429
  %3432 = vmatpush1.msra.mxu0 %v3426
  %3433 = vmatprep.subr.mxu0 0.0
  %3434 = vmatpush1.msra.mxu0 0.0
  %3435 = vmatprep.subr.mxu0 0.0
  %3436 = vmatpush1.msra.mxu0 0.0
  %3437 = vmatprep.subr.mxu0 0.0
  %3438 = vmatpush1.msra.mxu0 0.0
  %3439 = vmatprep.subr.mxu0 0.0
  %3440 = vmatpush1.msra.mxu0 0.0
  %3441 = vmatprep.subr.mxu0 0.0
  %3442 = vmatpush1.msra.mxu0 0.0
  %3443 = vmatprep.subr.mxu0 0.0
  %3444 = vmatpush1.msra.mxu0 0.0
  %3445 = vmatprep.subr.mxu0 0.0
  %3446 = vmatpush1.msra.mxu0 0.0
  %3447 = vmatprep.subr.mxu0 0.0
  %3448 = vmatpush1.msra.mxu0 0.0
  %3449 = vmatprep.subr.mxu0 0.0
  %3450 = vmatpush1.msra.mxu0 0.0
  %3451 = vmatprep.subr.mxu0 0.0
  %3452 = vmatpush1.msra.mxu0 0.0
  %3453 = vmatprep.subr.mxu0 0.0
  %3454 = vmatpush1.msra.mxu0 0.0
  %3455 = vmatprep.subr.mxu0 0.0
  %3456 = vmatpush1.msra.mxu0 0.0
  %3457 = vmatprep.subr.mxu0 0.0
  %3458 = vmatpush1.msra.mxu0 0.0
  %3459 = vmatprep.subr.mxu0 0.0
  %3460 = vmatpush1.msra.mxu0 0.0
  %3461 = vmatprep.subr.mxu0 0.0
  %3462 = vmatpush1.msra.mxu0 0.0
  %3463 = vmatprep.subr.mxu0 0.0
  %3464 = vmatpush1.msra.mxu0 0.0
  %3465 = vmatprep.subr.mxu0 0.0
  %3466 = vmatpush1.msra.mxu0 0.0
  %3467 = vmatprep.subr.mxu0 0.0
  %3468 = vmatpush1.msra.mxu0 0.0
  %3469 = vmatprep.subr.mxu0 0.0
  %3470 = vmatpush1.msra.mxu0 0.0
  %3471 = vmatprep.subr.mxu0 0.0
  %3472 = vmatpush1.msra.mxu0 0.0
  %3473 = vmatprep.subr.mxu0 0.0
  %3474 = vmatpush1.msra.mxu0 0.0
  %3475 = vmatprep.subr.mxu0 0.0
  %3476 = vmatpush1.msra.mxu0 0.0
  %3477 = vmatprep.subr.mxu0 0.0
  %3478 = vmatpush1.msra.mxu0 0.0
  %3479 = vmatprep.subr.mxu0 0.0
  %3480 = vmatpush1.msra.mxu0 0.0
  %3481 = vmatprep.subr.mxu0 0.0
  %3482 = vmatpush1.msra.mxu0 0.0
  %3483 = vmatprep.subr.mxu0 0.0
  %3484 = vmatpush1.msra.mxu0 0.0
  %3485 = vmatprep.subr.mxu0 0.0
  %3486 = vmatpush1.msra.mxu0 0.0
  %3487 = vmatprep.subr.mxu0 0.0
  %3488 = vmatpush1.msra.mxu0 0.0
  %3489 = vmatprep.subr.mxu0 0.0
  %3490 = vmatpush1.msra.mxu0 0.0
  %3491 = vmatprep.subr.mxu0 0.0
  %3492 = vmatpush1.msra.mxu0 0.0
  %3493 = vmatprep.subr.mxu0 0.0
  %3494 = vmatpush1.msra.mxu0 0.0
  %3495 = vmatprep.mubr.f32.mxu0 0.0
  %3496 = vmatmul.mubr.f32.gmra.mrb[0].mxu0 %v3423
  %v3497 = vpop.f32.mrb[0].mxu0
  %v3498 = vadd.f32 0.0, %v3497
  %v3499 = vpop.f32.mrb[0].mxu0
  %v3500 = vadd.f32 0.0, %v3499
  %3501 = vdwg.mxu0
  %v3502 = vadd.f32 %v3411, %v3498
  %v3503 = vadd.f32 %v3412, %v3500
  %v3504 = vld [vmem:[%s832] sm:$0xf]
  %v3506 = vsel %vm76, %v3504, 0
  %v3508 = vsel %vm80, %v2725, 0
  %v3510 = vsel %vm80, %v2728, 0
  %3512 = vmatprep.subr.mxu0 %v3510
  %3513 = vmatpush1.msra.mxu0 %v3508
  %3514 = vmatprep.subr.mxu0 0.0
  %3515 = vmatpush1.msra.mxu0 0.0
  %3516 = vmatprep.subr.mxu0 0.0
  %3517 = vmatpush1.msra.mxu0 0.0
  %3518 = vmatprep.subr.mxu0 0.0
  %3519 = vmatpush1.msra.mxu0 0.0
  %3520 = vmatprep.subr.mxu0 0.0
  %3521 = vmatpush1.msra.mxu0 0.0
  %3522 = vmatprep.subr.mxu0 0.0
  %3523 = vmatpush1.msra.mxu0 0.0
  %3524 = vmatprep.subr.mxu0 0.0
  %3525 = vmatpush1.msra.mxu0 0.0
  %3526 = vmatprep.subr.mxu0 0.0
  %3527 = vmatpush1.msra.mxu0 0.0
  %3528 = vmatprep.subr.mxu0 0.0
  %3529 = vmatpush1.msra.mxu0 0.0
  %3530 = vmatprep.subr.mxu0 0.0
  %3531 = vmatpush1.msra.mxu0 0.0
  %3532 = vmatprep.subr.mxu0 0.0
  %3533 = vmatpush1.msra.mxu0 0.0
  %3534 = vmatprep.subr.mxu0 0.0
  %3535 = vmatpush1.msra.mxu0 0.0
  %3536 = vmatprep.subr.mxu0 0.0
  %3537 = vmatpush1.msra.mxu0 0.0
  %3538 = vmatprep.subr.mxu0 0.0
  %3539 = vmatpush1.msra.mxu0 0.0
  %3540 = vmatprep.subr.mxu0 0.0
  %3541 = vmatpush1.msra.mxu0 0.0
  %3542 = vmatprep.subr.mxu0 0.0
  %3543 = vmatpush1.msra.mxu0 0.0
  %3544 = vmatprep.subr.mxu0 0.0
  %3545 = vmatpush1.msra.mxu0 0.0
  %3546 = vmatprep.subr.mxu0 0.0
  %3547 = vmatpush1.msra.mxu0 0.0
  %3548 = vmatprep.subr.mxu0 0.0
  %3549 = vmatpush1.msra.mxu0 0.0
  %3550 = vmatprep.subr.mxu0 0.0
  %3551 = vmatpush1.msra.mxu0 0.0
  %3552 = vmatprep.subr.mxu0 0.0
  %3553 = vmatpush1.msra.mxu0 0.0
  %3554 = vmatprep.subr.mxu0 0.0
  %3555 = vmatpush1.msra.mxu0 0.0
  %3556 = vmatprep.subr.mxu0 0.0
  %3557 = vmatpush1.msra.mxu0 0.0
  %3558 = vmatprep.subr.mxu0 0.0
  %3559 = vmatpush1.msra.mxu0 0.0
  %3560 = vmatprep.subr.mxu0 0.0
  %3561 = vmatpush1.msra.mxu0 0.0
  %3562 = vmatprep.subr.mxu0 0.0
  %3563 = vmatpush1.msra.mxu0 0.0
  %3564 = vmatprep.subr.mxu0 0.0
  %3565 = vmatpush1.msra.mxu0 0.0
  %3566 = vmatprep.subr.mxu0 0.0
  %3567 = vmatpush1.msra.mxu0 0.0
  %3568 = vmatprep.subr.mxu0 0.0
  %3569 = vmatpush1.msra.mxu0 0.0
  %3570 = vmatprep.subr.mxu0 0.0
  %3571 = vmatpush1.msra.mxu0 0.0
  %3572 = vmatprep.subr.mxu0 0.0
  %3573 = vmatpush1.msra.mxu0 0.0
  %3574 = vmatprep.subr.mxu0 0.0
  %3575 = vmatpush1.msra.mxu0 0.0
  %3576 = vmatprep.mubr.f32.mxu0 0.0
  %3577 = vmatmul.mubr.f32.gmra.mrb[0].mxu0 %v3506
  %v3578 = vpop.f32.mrb[0].mxu0
  %v3579 = vadd.f32 0.0, %v3578
  %v3580 = vpop.f32.mrb[0].mxu0
  %v3581 = vadd.f32 0.0, %v3580
  %3582 = vdwg.mxu0
  %v3583 = vadd.f32 %v3502, %v3579
  %v3584 = vadd.f32 %v3503, %v3581
  %v3585 = vld [vmem:[%s914] sm:$0xf]
  %v3587 = vsel %vm76, %v3585, 0
  %v3589 = vsel %vm80, %v2723, 0
  %v3591 = vsel %vm80, %v2752, 0
  %3593 = vmatprep.subr.mxu0 %v3591
  %3594 = vmatpush1.msra.mxu0 %v3589
  %3595 = vmatprep.subr.mxu0 0.0
  %3596 = vmatpush1.msra.mxu0 0.0
  %3597 = vmatprep.subr.mxu0 0.0
  %3598 = vmatpush1.msra.mxu0 0.0
  %3599 = vmatprep.subr.mxu0 0.0
  %3600 = vmatpush1.msra.mxu0 0.0
  %3601 = vmatprep.subr.mxu0 0.0
  %3602 = vmatpush1.msra.mxu0 0.0
  %3603 = vmatprep.subr.mxu0 0.0
  %3604 = vmatpush1.msra.mxu0 0.0
  %3605 = vmatprep.subr.mxu0 0.0
  %3606 = vmatpush1.msra.mxu0 0.0
  %3607 = vmatprep.subr.mxu0 0.0
  %3608 = vmatpush1.msra.mxu0 0.0
  %3609 = vmatprep.subr.mxu0 0.0
  %3610 = vmatpush1.msra.mxu0 0.0
  %3611 = vmatprep.subr.mxu0 0.0
  %3612 = vmatpush1.msra.mxu0 0.0
  %3613 = vmatprep.subr.mxu0 0.0
  %3614 = vmatpush1.msra.mxu0 0.0
  %3615 = vmatprep.subr.mxu0 0.0
  %3616 = vmatpush1.msra.mxu0 0.0
  %3617 = vmatprep.subr.mxu0 0.0
  %3618 = vmatpush1.msra.mxu0 0.0
  %3619 = vmatprep.subr.mxu0 0.0
  %3620 = vmatpush1.msra.mxu0 0.0
  %3621 = vmatprep.subr.mxu0 0.0
  %3622 = vmatpush1.msra.mxu0 0.0
  %3623 = vmatprep.subr.mxu0 0.0
  %3624 = vmatpush1.msra.mxu0 0.0
  %3625 = vmatprep.subr.mxu0 0.0
  %3626 = vmatpush1.msra.mxu0 0.0
  %3627 = vmatprep.subr.mxu0 0.0
  %3628 = vmatpush1.msra.mxu0 0.0
  %3629 = vmatprep.subr.mxu0 0.0
  %3630 = vmatpush1.msra.mxu0 0.0
  %3631 = vmatprep.subr.mxu0 0.0
  %3632 = vmatpush1.msra.mxu0 0.0
  %3633 = vmatprep.subr.mxu0 0.0
  %3634 = vmatpush1.msra.mxu0 0.0
  %3635 = vmatprep.subr.mxu0 0.0
  %3636 = vmatpush1.msra.mxu0 0.0
  %3637 = vmatprep.subr.mxu0 0.0
  %3638 = vmatpush1.msra.mxu0 0.0
  %3639 = vmatprep.subr.mxu0 0.0
  %3640 = vmatpush1.msra.mxu0 0.0
  %3641 = vmatprep.subr.mxu0 0.0
  %3642 = vmatpush1.msra.mxu0 0.0
  %3643 = vmatprep.subr.mxu0 0.0
  %3644 = vmatpush1.msra.mxu0 0.0
  %3645 = vmatprep.subr.mxu0 0.0
  %3646 = vmatpush1.msra.mxu0 0.0
  %3647 = vmatprep.subr.mxu0 0.0
  %3648 = vmatpush1.msra.mxu0 0.0
  %3649 = vmatprep.subr.mxu0 0.0
  %3650 = vmatpush1.msra.mxu0 0.0
  %3651 = vmatprep.subr.mxu0 0.0
  %3652 = vmatpush1.msra.mxu0 0.0
  %3653 = vmatprep.subr.mxu0 0.0
  %3654 = vmatpush1.msra.mxu0 0.0
  %3655 = vmatprep.subr.mxu0 0.0
  %3656 = vmatpush1.msra.mxu0 0.0
  %3657 = vmatprep.mubr.f32.mxu0 0.0
  %3658 = vmatmul.mubr.f32.gmra.mrb[0].mxu0 %v3587
  %v3659 = vpop.f32.mrb[0].mxu0
  %v3660 = vadd.f32 0.0, %v3659
  %v3661 = vpop.f32.mrb[0].mxu0
  %v3662 = vadd.f32 0.0, %v3661
  %3663 = vdwg.mxu0
  %v3664 = vadd.f32 %v3583, %v3660
  %v3665 = vadd.f32 %v3584, %v3662
  %v3666 = vld [vmem:[%s996] sm:$0xf]
  %3667 = vrot.lane.b32.xlu0 %v2725, 127
  %v3668 = vpop.permute.xlu0 %3667
  %3669 = vrot.lane.b32.xlu0 %v2728, 127
  %v3670 = vpop.permute.xlu0 %3669
  %v3671 = vsel %vm1002, %v3668, %v3670
  %v3672 = vsel %vm1002, %v3670, %v3668
  %v3673 = vld [vmem:[%s1005] sm:$0x3]
  %v3675 = vlaneseq
  %v3676 = vshrl.u32 %v3675, 7
  %v3677 = vsub.s32 0, %v3676
  %v3678 = vrot.slane %v3673, %v3677
  %v3679 = vlaneseq
  %v3680 = vshrl.u32 %v3679, 7
  %v3681 = vsub.s32 1, %v3680
  %v3682 = vrot.slane %v3673, %v3681
  %v3685 = vmul.f32 %v3671, %v3678
  %v3686 = vmul.f32 %v3672, %v3682
  %v3688 = vsel %vm76, %v3666, 0
  %v3691 = vsel %vm80, %v3685, 0
  %v3694 = vsel %vm80, %v3686, 0
  %3696 = vmatprep.subr.mxu0 %v3694
  %3697 = vmatpush1.msra.mxu0 %v3691
  %3698 = vmatprep.subr.mxu0 0.0
  %3699 = vmatpush1.msra.mxu0 0.0
  %3700 = vmatprep.subr.mxu0 0.0
  %3701 = vmatpush1.msra.mxu0 0.0
  %3702 = vmatprep.subr.mxu0 0.0
  %3703 = vmatpush1.msra.mxu0 0.0
  %3704 = vmatprep.subr.mxu0 0.0
  %3705 = vmatpush1.msra.mxu0 0.0
  %3706 = vmatprep.subr.mxu0 0.0
  %3707 = vmatpush1.msra.mxu0 0.0
  %3708 = vmatprep.subr.mxu0 0.0
  %3709 = vmatpush1.msra.mxu0 0.0
  %3710 = vmatprep.subr.mxu0 0.0
  %3711 = vmatpush1.msra.mxu0 0.0
  %3712 = vmatprep.subr.mxu0 0.0
  %3713 = vmatpush1.msra.mxu0 0.0
  %3714 = vmatprep.subr.mxu0 0.0
  %3715 = vmatpush1.msra.mxu0 0.0
  %3716 = vmatprep.subr.mxu0 0.0
  %3717 = vmatpush1.msra.mxu0 0.0
  %3718 = vmatprep.subr.mxu0 0.0
  %3719 = vmatpush1.msra.mxu0 0.0
  %3720 = vmatprep.subr.mxu0 0.0
  %3721 = vmatpush1.msra.mxu0 0.0
  %3722 = vmatprep.subr.mxu0 0.0
  %3723 = vmatpush1.msra.mxu0 0.0
  %3724 = vmatprep.subr.mxu0 0.0
  %3725 = vmatpush1.msra.mxu0 0.0
  %3726 = vmatprep.subr.mxu0 0.0
  %3727 = vmatpush1.msra.mxu0 0.0
  %3728 = vmatprep.subr.mxu0 0.0
  %3729 = vmatpush1.msra.mxu0 0.0
  %3730 = vmatprep.subr.mxu0 0.0
  %3731 = vmatpush1.msra.mxu0 0.0
  %3732 = vmatprep.subr.mxu0 0.0
  %3733 = vmatpush1.msra.mxu0 0.0
  %3734 = vmatprep.subr.mxu0 0.0
  %3735 = vmatpush1.msra.mxu0 0.0
  %3736 = vmatprep.subr.mxu0 0.0
  %3737 = vmatpush1.msra.mxu0 0.0
  %3738 = vmatprep.subr.mxu0 0.0
  %3739 = vmatpush1.msra.mxu0 0.0
  %3740 = vmatprep.subr.mxu0 0.0
  %3741 = vmatpush1.msra.mxu0 0.0
  %3742 = vmatprep.subr.mxu0 0.0
  %3743 = vmatpush1.msra.mxu0 0.0
  %3744 = vmatprep.subr.mxu0 0.0
  %3745 = vmatpush1.msra.mxu0 0.0
  %3746 = vmatprep.subr.mxu0 0.0
  %3747 = vmatpush1.msra.mxu0 0.0
  %3748 = vmatprep.subr.mxu0 0.0
  %3749 = vmatpush1.msra.mxu0 0.0
  %3750 = vmatprep.subr.mxu0 0.0
  %3751 = vmatpush1.msra.mxu0 0.0
  %3752 = vmatprep.subr.mxu0 0.0
  %3753 = vmatpush1.msra.mxu0 0.0
  %3754 = vmatprep.subr.mxu0 0.0
  %3755 = vmatpush1.msra.mxu0 0.0
  %3756 = vmatprep.subr.mxu0 0.0
  %3757 = vmatpush1.msra.mxu0 0.0
  %3758 = vmatprep.subr.mxu0 0.0
  %3759 = vmatpush1.msra.mxu0 0.0
  %3760 = vmatprep.mubr.f32.mxu0 0.0
  %3761 = vmatmul.mubr.f32.gmra.mrb[0].mxu0 %v3688
  %v3762 = vpop.f32.mrb[0].mxu0
  %v3763 = vadd.f32 0.0, %v3762
  %v3764 = vpop.f32.mrb[0].mxu0
  %v3765 = vadd.f32 0.0, %v3764
  %3766 = vdwg.mxu0
  %v3767 = vadd.f32 %v3664, %v3763
  %v3768 = vadd.f32 %v3665, %v3765
  %v3769 = vld [vmem:[%s1102] sm:$0xf]
  %3770 = vrot.lane.b32.xlu0 %v2723, 127
  %v3771 = vpop.permute.xlu0 %3770
  %3772 = vrot.lane.b32.xlu0 %v2752, 127
  %v3773 = vpop.permute.xlu0 %3772
  %v3774 = vsel %vm1002, %v3771, %v3773
  %v3775 = vsel %vm1002, %v3773, %v3771
  %v3776 = vmul.f32 %v3774, %v3678
  %v3777 = vmul.f32 %v3775, %v3682
  %v3779 = vsel %vm76, %v3769, 0
  %v3782 = vsel %vm80, %v3776, 0
  %v3785 = vsel %vm80, %v3777, 0
  %3787 = vmatprep.subr.mxu0 %v3785
  %3788 = vmatpush1.msra.mxu0 %v3782
  %3789 = vmatprep.subr.mxu0 0.0
  %3790 = vmatpush1.msra.mxu0 0.0
  %3791 = vmatprep.subr.mxu0 0.0
  %3792 = vmatpush1.msra.mxu0 0.0
  %3793 = vmatprep.subr.mxu0 0.0
  %3794 = vmatpush1.msra.mxu0 0.0
  %3795 = vmatprep.subr.mxu0 0.0
  %3796 = vmatpush1.msra.mxu0 0.0
  %3797 = vmatprep.subr.mxu0 0.0
  %3798 = vmatpush1.msra.mxu0 0.0
  %3799 = vmatprep.subr.mxu0 0.0
  %3800 = vmatpush1.msra.mxu0 0.0
  %3801 = vmatprep.subr.mxu0 0.0
  %3802 = vmatpush1.msra.mxu0 0.0
  %3803 = vmatprep.subr.mxu0 0.0
  %3804 = vmatpush1.msra.mxu0 0.0
  %3805 = vmatprep.subr.mxu0 0.0
  %3806 = vmatpush1.msra.mxu0 0.0
  %3807 = vmatprep.subr.mxu0 0.0
  %3808 = vmatpush1.msra.mxu0 0.0
  %3809 = vmatprep.subr.mxu0 0.0
  %3810 = vmatpush1.msra.mxu0 0.0
  %3811 = vmatprep.subr.mxu0 0.0
  %3812 = vmatpush1.msra.mxu0 0.0
  %3813 = vmatprep.subr.mxu0 0.0
  %3814 = vmatpush1.msra.mxu0 0.0
  %3815 = vmatprep.subr.mxu0 0.0
  %3816 = vmatpush1.msra.mxu0 0.0
  %3817 = vmatprep.subr.mxu0 0.0
  %3818 = vmatpush1.msra.mxu0 0.0
  %3819 = vmatprep.subr.mxu0 0.0
  %3820 = vmatpush1.msra.mxu0 0.0
  %3821 = vmatprep.subr.mxu0 0.0
  %3822 = vmatpush1.msra.mxu0 0.0
  %3823 = vmatprep.subr.mxu0 0.0
  %3824 = vmatpush1.msra.mxu0 0.0
  %3825 = vmatprep.subr.mxu0 0.0
  %3826 = vmatpush1.msra.mxu0 0.0
  %3827 = vmatprep.subr.mxu0 0.0
  %3828 = vmatpush1.msra.mxu0 0.0
  %3829 = vmatprep.subr.mxu0 0.0
  %3830 = vmatpush1.msra.mxu0 0.0
  %3831 = vmatprep.subr.mxu0 0.0
  %3832 = vmatpush1.msra.mxu0 0.0
  %3833 = vmatprep.subr.mxu0 0.0
  %3834 = vmatpush1.msra.mxu0 0.0
  %3835 = vmatprep.subr.mxu0 0.0
  %3836 = vmatpush1.msra.mxu0 0.0
  %3837 = vmatprep.subr.mxu0 0.0
  %3838 = vmatpush1.msra.mxu0 0.0
  %3839 = vmatprep.subr.mxu0 0.0
  %3840 = vmatpush1.msra.mxu0 0.0
  %3841 = vmatprep.subr.mxu0 0.0
  %3842 = vmatpush1.msra.mxu0 0.0
  %3843 = vmatprep.subr.mxu0 0.0
  %3844 = vmatpush1.msra.mxu0 0.0
  %3845 = vmatprep.subr.mxu0 0.0
  %3846 = vmatpush1.msra.mxu0 0.0
  %3847 = vmatprep.subr.mxu0 0.0
  %3848 = vmatpush1.msra.mxu0 0.0
  %3849 = vmatprep.subr.mxu0 0.0
  %3850 = vmatpush1.msra.mxu0 0.0
  %3851 = vmatprep.mubr.f32.mxu0 0.0
  %3852 = vmatmul.mubr.f32.gmra.mrb[0].mxu0 %v3779
  %v3853 = vpop.f32.mrb[0].mxu0
  %v3854 = vadd.f32 0.0, %v3853
  %v3855 = vpop.f32.mrb[0].mxu0
  %v3856 = vadd.f32 0.0, %v3855
  %3857 = vdwg.mxu0
  %v3858 = vadd.f32 %v3767, %v3854
  %v3859 = vadd.f32 %v3768, %v3856
  %v3860 = vld [vmem:[%s1194] sm:$0xf]
  %3861 = vrot.lane.b32.xlu0 %v2725, 113
  %v3862 = vpop.permute.xlu0 %3861
  %3863 = vrot.lane.b32.xlu0 %v2728, 113
  %v3864 = vpop.permute.xlu0 %3863
  %v3865 = vsel %vm1200, %v3862, %v3864
  %v3866 = vsel %vm1200, %v3864, %v3862
  %v3867 = vld [vmem:[%s1203] sm:$0x3]
  %v3869 = vlaneseq
  %v3870 = vshrl.u32 %v3869, 7
  %v3871 = vsub.s32 0, %v3870
  %v3872 = vrot.slane %v3867, %v3871
  %v3873 = vlaneseq
  %v3874 = vshrl.u32 %v3873, 7
  %v3875 = vsub.s32 1, %v3874
  %v3876 = vrot.slane %v3867, %v3875
  %v3879 = vmul.f32 %v3865, %v3872
  %v3880 = vmul.f32 %v3866, %v3876
  %v3882 = vsel %vm76, %v3860, 0
  %v3885 = vsel %vm80, %v3879, 0
  %v3888 = vsel %vm80, %v3880, 0
  %3890 = vmatprep.subr.mxu0 %v3888
  %3891 = vmatpush1.msra.mxu0 %v3885
  %3892 = vmatprep.subr.mxu0 0.0
  %3893 = vmatpush1.msra.mxu0 0.0
  %3894 = vmatprep.subr.mxu0 0.0
  %3895 = vmatpush1.msra.mxu0 0.0
  %3896 = vmatprep.subr.mxu0 0.0
  %3897 = vmatpush1.msra.mxu0 0.0
  %3898 = vmatprep.subr.mxu0 0.0
  %3899 = vmatpush1.msra.mxu0 0.0
  %3900 = vmatprep.subr.mxu0 0.0
  %3901 = vmatpush1.msra.mxu0 0.0
  %3902 = vmatprep.subr.mxu0 0.0
  %3903 = vmatpush1.msra.mxu0 0.0
  %3904 = vmatprep.subr.mxu0 0.0
  %3905 = vmatpush1.msra.mxu0 0.0
  %3906 = vmatprep.subr.mxu0 0.0
  %3907 = vmatpush1.msra.mxu0 0.0
  %3908 = vmatprep.subr.mxu0 0.0
  %3909 = vmatpush1.msra.mxu0 0.0
  %3910 = vmatprep.subr.mxu0 0.0
  %3911 = vmatpush1.msra.mxu0 0.0
  %3912 = vmatprep.subr.mxu0 0.0
  %3913 = vmatpush1.msra.mxu0 0.0
  %3914 = vmatprep.subr.mxu0 0.0
  %3915 = vmatpush1.msra.mxu0 0.0
  %3916 = vmatprep.subr.mxu0 0.0
  %3917 = vmatpush1.msra.mxu0 0.0
  %3918 = vmatprep.subr.mxu0 0.0
  %3919 = vmatpush1.msra.mxu0 0.0
  %3920 = vmatprep.subr.mxu0 0.0
  %3921 = vmatpush1.msra.mxu0 0.0
  %3922 = vmatprep.subr.mxu0 0.0
  %3923 = vmatpush1.msra.mxu0 0.0
  %3924 = vmatprep.subr.mxu0 0.0
  %3925 = vmatpush1.msra.mxu0 0.0
  %3926 = vmatprep.subr.mxu0 0.0
  %3927 = vmatpush1.msra.mxu0 0.0
  %3928 = vmatprep.subr.mxu0 0.0
  %3929 = vmatpush1.msra.mxu0 0.0
  %3930 = vmatprep.subr.mxu0 0.0
  %3931 = vmatpush1.msra.mxu0 0.0
  %3932 = vmatprep.subr.mxu0 0.0
  %3933 = vmatpush1.msra.mxu0 0.0
  %3934 = vmatprep.subr.mxu0 0.0
  %3935 = vmatpush1.msra.mxu0 0.0
  %3936 = vmatprep.subr.mxu0 0.0
  %3937 = vmatpush1.msra.mxu0 0.0
  %3938 = vmatprep.subr.mxu0 0.0
  %3939 = vmatpush1.msra.mxu0 0.0
  %3940 = vmatprep.subr.mxu0 0.0
  %3941 = vmatpush1.msra.mxu0 0.0
  %3942 = vmatprep.subr.mxu0 0.0
  %3943 = vmatpush1.msra.mxu0 0.0
  %3944 = vmatprep.subr.mxu0 0.0
  %3945 = vmatpush1.msra.mxu0 0.0
  %3946 = vmatprep.subr.mxu0 0.0
  %3947 = vmatpush1.msra.mxu0 0.0
  %3948 = vmatprep.subr.mxu0 0.0
  %3949 = vmatpush1.msra.mxu0 0.0
  %3950 = vmatprep.subr.mxu0 0.0
  %3951 = vmatpush1.msra.mxu0 0.0
  %3952 = vmatprep.subr.mxu0 0.0
  %3953 = vmatpush1.msra.mxu0 0.0
  %3954 = vmatprep.mubr.f32.mxu0 0.0
  %3955 = vmatmul.mubr.f32.gmra.mrb[0].mxu0 %v3882
  %v3956 = vpop.f32.mrb[0].mxu0
  %v3957 = vadd.f32 0.0, %v3956
  %v3958 = vpop.f32.mrb[0].mxu0
  %v3959 = vadd.f32 0.0, %v3958
  %3960 = vdwg.mxu0
  %v3961 = vadd.f32 %v3858, %v3957
  %v3962 = vadd.f32 %v3859, %v3959
  %v3963 = vld [vmem:[%s1300] sm:$0xf]
  %3964 = vrot.lane.b32.xlu0 %v2723, 113
  %v3965 = vpop.permute.xlu0 %3964
  %3966 = vrot.lane.b32.xlu0 %v2752, 113
  %v3967 = vpop.permute.xlu0 %3966
  %v3968 = vsel %vm1200, %v3965, %v3967
  %v3969 = vsel %vm1200, %v3967, %v3965
  %v3970 = vmul.f32 %v3968, %v3872
  %v3971 = vmul.f32 %v3969, %v3876
  %v3973 = vsel %vm76, %v3963, 0
  %v3976 = vsel %vm80, %v3970, 0
  %v3979 = vsel %vm80, %v3971, 0
  %3981 = vmatprep.subr.mxu0 %v3979
  %3982 = vmatpush1.msra.mxu0 %v3976
  %3983 = vmatprep.subr.mxu0 0.0
  %3984 = vmatpush1.msra.mxu0 0.0
  %3985 = vmatprep.subr.mxu0 0.0
  %3986 = vmatpush1.msra.mxu0 0.0
  %3987 = vmatprep.subr.mxu0 0.0
  %3988 = vmatpush1.msra.mxu0 0.0
  %3989 = vmatprep.subr.mxu0 0.0
  %3990 = vmatpush1.msra.mxu0 0.0
  %3991 = vmatprep.subr.mxu0 0.0
  %3992 = vmatpush1.msra.mxu0 0.0
  %3993 = vmatprep.subr.mxu0 0.0
  %3994 = vmatpush1.msra.mxu0 0.0
  %3995 = vmatprep.subr.mxu0 0.0
  %3996 = vmatpush1.msra.mxu0 0.0
  %3997 = vmatprep.subr.mxu0 0.0
  %3998 = vmatpush1.msra.mxu0 0.0
  %3999 = vmatprep.subr.mxu0 0.0
  %4000 = vmatpush1.msra.mxu0 0.0
  %4001 = vmatprep.subr.mxu0 0.0
  %4002 = vmatpush1.msra.mxu0 0.0
  %4003 = vmatprep.subr.mxu0 0.0
  %4004 = vmatpush1.msra.mxu0 0.0
  %4005 = vmatprep.subr.mxu0 0.0
  %4006 = vmatpush1.msra.mxu0 0.0
  %4007 = vmatprep.subr.mxu0 0.0
  %4008 = vmatpush1.msra.mxu0 0.0
  %4009 = vmatprep.subr.mxu0 0.0
  %4010 = vmatpush1.msra.mxu0 0.0
  %4011 = vmatprep.subr.mxu0 0.0
  %4012 = vmatpush1.msra.mxu0 0.0
  %4013 = vmatprep.subr.mxu0 0.0
  %4014 = vmatpush1.msra.mxu0 0.0
  %4015 = vmatprep.subr.mxu0 0.0
  %4016 = vmatpush1.msra.mxu0 0.0
  %4017 = vmatprep.subr.mxu0 0.0
  %4018 = vmatpush1.msra.mxu0 0.0
  %4019 = vmatprep.subr.mxu0 0.0
  %4020 = vmatpush1.msra.mxu0 0.0
  %4021 = vmatprep.subr.mxu0 0.0
  %4022 = vmatpush1.msra.mxu0 0.0
  %4023 = vmatprep.subr.mxu0 0.0
  %4024 = vmatpush1.msra.mxu0 0.0
  %4025 = vmatprep.subr.mxu0 0.0
  %4026 = vmatpush1.msra.mxu0 0.0
  %4027 = vmatprep.subr.mxu0 0.0
  %4028 = vmatpush1.msra.mxu0 0.0
  %4029 = vmatprep.subr.mxu0 0.0
  %4030 = vmatpush1.msra.mxu0 0.0
  %4031 = vmatprep.subr.mxu0 0.0
  %4032 = vmatpush1.msra.mxu0 0.0
  %4033 = vmatprep.subr.mxu0 0.0
  %4034 = vmatpush1.msra.mxu0 0.0
  %4035 = vmatprep.subr.mxu0 0.0
  %4036 = vmatpush1.msra.mxu0 0.0
  %4037 = vmatprep.subr.mxu0 0.0
  %4038 = vmatpush1.msra.mxu0 0.0
  %4039 = vmatprep.subr.mxu0 0.0
  %4040 = vmatpush1.msra.mxu0 0.0
  %4041 = vmatprep.subr.mxu0 0.0
  %4042 = vmatpush1.msra.mxu0 0.0
  %4043 = vmatprep.subr.mxu0 0.0
  %4044 = vmatpush1.msra.mxu0 0.0
  %4045 = vmatprep.mubr.f32.mxu0 0.0
  %4046 = vmatmul.mubr.f32.gmra.mrb[0].mxu0 %v3973
  %v4047 = vpop.f32.mrb[0].mxu0
  %v4048 = vadd.f32 0.0, %v4047
  %v4049 = vpop.f32.mrb[0].mxu0
  %v4050 = vadd.f32 0.0, %v4049
  %4051 = vdwg.mxu0
  %v4052 = vadd.f32 %v3961, %v4048
  %v4053 = vadd.f32 %v3962, %v4050
  %v4054 = vld [vmem:[%s1392] sm:$0xf]
  %4055 = vrot.lane.b32.xlu0 %v2725, 112
  %v4056 = vpop.permute.xlu0 %4055
  %4057 = vrot.lane.b32.xlu0 %v2728, 112
  %v4058 = vpop.permute.xlu0 %4057
  %v4059 = vsel %vm1398, %v4056, %v4058
  %v4060 = vsel %vm1398, %v4058, %v4056
  %v4061 = vld [vmem:[%s1401] sm:$0x3]
  %v4063 = vlaneseq
  %v4064 = vshrl.u32 %v4063, 7
  %v4065 = vsub.s32 0, %v4064
  %v4066 = vrot.slane %v4061, %v4065
  %v4067 = vlaneseq
  %v4068 = vshrl.u32 %v4067, 7
  %v4069 = vsub.s32 1, %v4068
  %v4070 = vrot.slane %v4061, %v4069
  %v4073 = vmul.f32 %v4059, %v4066
  %v4074 = vmul.f32 %v4060, %v4070
  %v4076 = vsel %vm76, %v4054, 0
  %v4079 = vsel %vm80, %v4073, 0
  %v4082 = vsel %vm80, %v4074, 0
  %4084 = vmatprep.subr.mxu0 %v4082
  %4085 = vmatpush1.msra.mxu0 %v4079
  %4086 = vmatprep.subr.mxu0 0.0
  %4087 = vmatpush1.msra.mxu0 0.0
  %4088 = vmatprep.subr.mxu0 0.0
  %4089 = vmatpush1.msra.mxu0 0.0
  %4090 = vmatprep.subr.mxu0 0.0
  %4091 = vmatpush1.msra.mxu0 0.0
  %4092 = vmatprep.subr.mxu0 0.0
  %4093 = vmatpush1.msra.mxu0 0.0
  %4094 = vmatprep.subr.mxu0 0.0
  %4095 = vmatpush1.msra.mxu0 0.0
  %4096 = vmatprep.subr.mxu0 0.0
  %4097 = vmatpush1.msra.mxu0 0.0
  %4098 = vmatprep.subr.mxu0 0.0
  %4099 = vmatpush1.msra.mxu0 0.0
  %4100 = vmatprep.subr.mxu0 0.0
  %4101 = vmatpush1.msra.mxu0 0.0
  %4102 = vmatprep.subr.mxu0 0.0
  %4103 = vmatpush1.msra.mxu0 0.0
  %4104 = vmatprep.subr.mxu0 0.0
  %4105 = vmatpush1.msra.mxu0 0.0
  %4106 = vmatprep.subr.mxu0 0.0
  %4107 = vmatpush1.msra.mxu0 0.0
  %4108 = vmatprep.subr.mxu0 0.0
  %4109 = vmatpush1.msra.mxu0 0.0
  %4110 = vmatprep.subr.mxu0 0.0
  %4111 = vmatpush1.msra.mxu0 0.0
  %4112 = vmatprep.subr.mxu0 0.0
  %4113 = vmatpush1.msra.mxu0 0.0
  %4114 = vmatprep.subr.mxu0 0.0
  %4115 = vmatpush1.msra.mxu0 0.0
  %4116 = vmatprep.subr.mxu0 0.0
  %4117 = vmatpush1.msra.mxu0 0.0
  %4118 = vmatprep.subr.mxu0 0.0
  %4119 = vmatpush1.msra.mxu0 0.0
  %4120 = vmatprep.subr.mxu0 0.0
  %4121 = vmatpush1.msra.mxu0 0.0
  %4122 = vmatprep.subr.mxu0 0.0
  %4123 = vmatpush1.msra.mxu0 0.0
  %4124 = vmatprep.subr.mxu0 0.0
  %4125 = vmatpush1.msra.mxu0 0.0
  %4126 = vmatprep.subr.mxu0 0.0
  %4127 = vmatpush1.msra.mxu0 0.0
  %4128 = vmatprep.subr.mxu0 0.0
  %4129 = vmatpush1.msra.mxu0 0.0
  %4130 = vmatprep.subr.mxu0 0.0
  %4131 = vmatpush1.msra.mxu0 0.0
  %4132 = vmatprep.subr.mxu0 0.0
  %4133 = vmatpush1.msra.mxu0 0.0
  %4134 = vmatprep.subr.mxu0 0.0
  %4135 = vmatpush1.msra.mxu0 0.0
  %4136 = vmatprep.subr.mxu0 0.0
  %4137 = vmatpush1.msra.mxu0 0.0
  %4138 = vmatprep.subr.mxu0 0.0
  %4139 = vmatpush1.msra.mxu0 0.0
  %4140 = vmatprep.subr.mxu0 0.0
  %4141 = vmatpush1.msra.mxu0 0.0
  %4142 = vmatprep.subr.mxu0 0.0
  %4143 = vmatpush1.msra.mxu0 0.0
  %4144 = vmatprep.subr.mxu0 0.0
  %4145 = vmatpush1.msra.mxu0 0.0
  %4146 = vmatprep.subr.mxu0 0.0
  %4147 = vmatpush1.msra.mxu0 0.0
  %4148 = vmatprep.mubr.f32.mxu0 0.0
  %4149 = vmatmul.mubr.f32.gmra.mrb[0].mxu0 %v4076
  %v4150 = vpop.f32.mrb[0].mxu0
  %v4151 = vadd.f32 0.0, %v4150
  %v4152 = vpop.f32.mrb[0].mxu0
  %v4153 = vadd.f32 0.0, %v4152
  %4154 = vdwg.mxu0
  %v4155 = vadd.f32 %v4052, %v4151
  %v4156 = vadd.f32 %v4053, %v4153
  %v4157 = vld [vmem:[%s1498] sm:$0xf]
  %4158 = vrot.lane.b32.xlu0 %v2723, 112
  %v4159 = vpop.permute.xlu0 %4158
  %4160 = vrot.lane.b32.xlu0 %v2752, 112
  %v4161 = vpop.permute.xlu0 %4160
  %v4162 = vsel %vm1398, %v4159, %v4161
  %v4163 = vsel %vm1398, %v4161, %v4159
  %v4164 = vmul.f32 %v4162, %v4066
  %v4165 = vmul.f32 %v4163, %v4070
  %v4167 = vsel %vm76, %v4157, 0
  %v4170 = vsel %vm80, %v4164, 0
  %v4173 = vsel %vm80, %v4165, 0
  %4175 = vmatprep.subr.mxu0 %v4173
  %4176 = vmatpush1.msra.mxu0 %v4170
  %4177 = vmatprep.subr.mxu0 0.0
  %4178 = vmatpush1.msra.mxu0 0.0
  %4179 = vmatprep.subr.mxu0 0.0
  %4180 = vmatpush1.msra.mxu0 0.0
  %4181 = vmatprep.subr.mxu0 0.0
  %4182 = vmatpush1.msra.mxu0 0.0
  %4183 = vmatprep.subr.mxu0 0.0
  %4184 = vmatpush1.msra.mxu0 0.0
  %4185 = vmatprep.subr.mxu0 0.0
  %4186 = vmatpush1.msra.mxu0 0.0
  %4187 = vmatprep.subr.mxu0 0.0
  %4188 = vmatpush1.msra.mxu0 0.0
  %4189 = vmatprep.subr.mxu0 0.0
  %4190 = vmatpush1.msra.mxu0 0.0
  %4191 = vmatprep.subr.mxu0 0.0
  %4192 = vmatpush1.msra.mxu0 0.0
  %4193 = vmatprep.subr.mxu0 0.0
  %4194 = vmatpush1.msra.mxu0 0.0
  %4195 = vmatprep.subr.mxu0 0.0
  %4196 = vmatpush1.msra.mxu0 0.0
  %4197 = vmatprep.subr.mxu0 0.0
  %4198 = vmatpush1.msra.mxu0 0.0
  %4199 = vmatprep.subr.mxu0 0.0
  %4200 = vmatpush1.msra.mxu0 0.0
  %4201 = vmatprep.subr.mxu0 0.0
  %4202 = vmatpush1.msra.mxu0 0.0
  %4203 = vmatprep.subr.mxu0 0.0
  %4204 = vmatpush1.msra.mxu0 0.0
  %4205 = vmatprep.subr.mxu0 0.0
  %4206 = vmatpush1.msra.mxu0 0.0
  %4207 = vmatprep.subr.mxu0 0.0
  %4208 = vmatpush1.msra.mxu0 0.0
  %4209 = vmatprep.subr.mxu0 0.0
  %4210 = vmatpush1.msra.mxu0 0.0
  %4211 = vmatprep.subr.mxu0 0.0
  %4212 = vmatpush1.msra.mxu0 0.0
  %4213 = vmatprep.subr.mxu0 0.0
  %4214 = vmatpush1.msra.mxu0 0.0
  %4215 = vmatprep.subr.mxu0 0.0
  %4216 = vmatpush1.msra.mxu0 0.0
  %4217 = vmatprep.subr.mxu0 0.0
  %4218 = vmatpush1.msra.mxu0 0.0
  %4219 = vmatprep.subr.mxu0 0.0
  %4220 = vmatpush1.msra.mxu0 0.0
  %4221 = vmatprep.subr.mxu0 0.0
  %4222 = vmatpush1.msra.mxu0 0.0
  %4223 = vmatprep.subr.mxu0 0.0
  %4224 = vmatpush1.msra.mxu0 0.0
  %4225 = vmatprep.subr.mxu0 0.0
  %4226 = vmatpush1.msra.mxu0 0.0
  %4227 = vmatprep.subr.mxu0 0.0
  %4228 = vmatpush1.msra.mxu0 0.0
  %4229 = vmatprep.subr.mxu0 0.0
  %4230 = vmatpush1.msra.mxu0 0.0
  %4231 = vmatprep.subr.mxu0 0.0
  %4232 = vmatpush1.msra.mxu0 0.0
  %4233 = vmatprep.subr.mxu0 0.0
  %4234 = vmatpush1.msra.mxu0 0.0
  %4235 = vmatprep.subr.mxu0 0.0
  %4236 = vmatpush1.msra.mxu0 0.0
  %4237 = vmatprep.subr.mxu0 0.0
  %4238 = vmatpush1.msra.mxu0 0.0
  %4239 = vmatprep.mubr.f32.mxu0 0.0
  %4240 = vmatmul.mubr.f32.gmra.mrb[0].mxu0 %v4167
  %v4241 = vpop.f32.mrb[0].mxu0
  %v4242 = vadd.f32 0.0, %v4241
  %v4243 = vpop.f32.mrb[0].mxu0
  %v4244 = vadd.f32 0.0, %v4243
  %4245 = vdwg.mxu0
  %v4246 = vadd.f32 %v4155, %v4242
  %v4247 = vadd.f32 %v4156, %v4244
  %v4248 = vld [vmem:[%s1590] sm:$0xf]
  %4249 = vrot.lane.b32.xlu0 %v2725, 111
  %v4250 = vpop.permute.xlu0 %4249
  %4251 = vrot.lane.b32.xlu0 %v2728, 111
  %v4252 = vpop.permute.xlu0 %4251
  %v4253 = vsel %vm1596, %v4250, %v4252
  %v4254 = vsel %vm1596, %v4252, %v4250
  %v4255 = vld [vmem:[%s1599] sm:$0x3]
  %v4257 = vlaneseq
  %v4258 = vshrl.u32 %v4257, 7
  %v4259 = vsub.s32 0, %v4258
  %v4260 = vrot.slane %v4255, %v4259
  %v4261 = vlaneseq
  %v4262 = vshrl.u32 %v4261, 7
  %v4263 = vsub.s32 1, %v4262
  %v4264 = vrot.slane %v4255, %v4263
  %v4267 = vmul.f32 %v4253, %v4260
  %v4268 = vmul.f32 %v4254, %v4264
  %v4270 = vsel %vm76, %v4248, 0
  %v4273 = vsel %vm80, %v4267, 0
  %v4276 = vsel %vm80, %v4268, 0
  %4278 = vmatprep.subr.mxu0 %v4276
  %4279 = vmatpush1.msra.mxu0 %v4273
  %4280 = vmatprep.subr.mxu0 0.0
  %4281 = vmatpush1.msra.mxu0 0.0
  %4282 = vmatprep.subr.mxu0 0.0
  %4283 = vmatpush1.msra.mxu0 0.0
  %4284 = vmatprep.subr.mxu0 0.0
  %4285 = vmatpush1.msra.mxu0 0.0
  %4286 = vmatprep.subr.mxu0 0.0
  %4287 = vmatpush1.msra.mxu0 0.0
  %4288 = vmatprep.subr.mxu0 0.0
  %4289 = vmatpush1.msra.mxu0 0.0
  %4290 = vmatprep.subr.mxu0 0.0
  %4291 = vmatpush1.msra.mxu0 0.0
  %4292 = vmatprep.subr.mxu0 0.0
  %4293 = vmatpush1.msra.mxu0 0.0
  %4294 = vmatprep.subr.mxu0 0.0
  %4295 = vmatpush1.msra.mxu0 0.0
  %4296 = vmatprep.subr.mxu0 0.0
  %4297 = vmatpush1.msra.mxu0 0.0
  %4298 = vmatprep.subr.mxu0 0.0
  %4299 = vmatpush1.msra.mxu0 0.0
  %4300 = vmatprep.subr.mxu0 0.0
  %4301 = vmatpush1.msra.mxu0 0.0
  %4302 = vmatprep.subr.mxu0 0.0
  %4303 = vmatpush1.msra.mxu0 0.0
  %4304 = vmatprep.subr.mxu0 0.0
  %4305 = vmatpush1.msra.mxu0 0.0
  %4306 = vmatprep.subr.mxu0 0.0
  %4307 = vmatpush1.msra.mxu0 0.0
  %4308 = vmatprep.subr.mxu0 0.0
  %4309 = vmatpush1.msra.mxu0 0.0
  %4310 = vmatprep.subr.mxu0 0.0
  %4311 = vmatpush1.msra.mxu0 0.0
  %4312 = vmatprep.subr.mxu0 0.0
  %4313 = vmatpush1.msra.mxu0 0.0
  %4314 = vmatprep.subr.mxu0 0.0
  %4315 = vmatpush1.msra.mxu0 0.0
  %4316 = vmatprep.subr.mxu0 0.0
  %4317 = vmatpush1.msra.mxu0 0.0
  %4318 = vmatprep.subr.mxu0 0.0
  %4319 = vmatpush1.msra.mxu0 0.0
  %4320 = vmatprep.subr.mxu0 0.0
  %4321 = vmatpush1.msra.mxu0 0.0
  %4322 = vmatprep.subr.mxu0 0.0
  %4323 = vmatpush1.msra.mxu0 0.0
  %4324 = vmatprep.subr.mxu0 0.0
  %4325 = vmatpush1.msra.mxu0 0.0
  %4326 = vmatprep.subr.mxu0 0.0
  %4327 = vmatpush1.msra.mxu0 0.0
  %4328 = vmatprep.subr.mxu0 0.0
  %4329 = vmatpush1.msra.mxu0 0.0
  %4330 = vmatprep.subr.mxu0 0.0
  %4331 = vmatpush1.msra.mxu0 0.0
  %4332 = vmatprep.subr.mxu0 0.0
  %4333 = vmatpush1.msra.mxu0 0.0
  %4334 = vmatprep.subr.mxu0 0.0
  %4335 = vmatpush1.msra.mxu0 0.0
  %4336 = vmatprep.subr.mxu0 0.0
  %4337 = vmatpush1.msra.mxu0 0.0
  %4338 = vmatprep.subr.mxu0 0.0
  %4339 = vmatpush1.msra.mxu0 0.0
  %4340 = vmatprep.subr.mxu0 0.0
  %4341 = vmatpush1.msra.mxu0 0.0
  %4342 = vmatprep.mubr.f32.mxu0 0.0
  %4343 = vmatmul.mubr.f32.gmra.mrb[0].mxu0 %v4270
  %v4344 = vpop.f32.mrb[0].mxu0
  %v4345 = vadd.f32 0.0, %v4344
  %v4346 = vpop.f32.mrb[0].mxu0
  %v4347 = vadd.f32 0.0, %v4346
  %4348 = vdwg.mxu0
  %v4349 = vadd.f32 %v4246, %v4345
  %v4350 = vadd.f32 %v4247, %v4347
  %v4351 = vld [vmem:[%s1696] sm:$0xf]
  %4352 = vrot.lane.b32.xlu0 %v2723, 111
  %v4353 = vpop.permute.xlu0 %4352
  %4354 = vrot.lane.b32.xlu0 %v2752, 111
  %v4355 = vpop.permute.xlu0 %4354
  %v4356 = vsel %vm1596, %v4353, %v4355
  %v4357 = vsel %vm1596, %v4355, %v4353
  %v4358 = vmul.f32 %v4356, %v4260
  %v4359 = vmul.f32 %v4357, %v4264
  %v4361 = vsel %vm76, %v4351, 0
  %v4364 = vsel %vm80, %v4358, 0
  %v4367 = vsel %vm80, %v4359, 0
  %4369 = vmatprep.subr.mxu0 %v4367
  %4370 = vmatpush1.msra.mxu0 %v4364
  %4371 = vmatprep.subr.mxu0 0.0
  %4372 = vmatpush1.msra.mxu0 0.0
  %4373 = vmatprep.subr.mxu0 0.0
  %4374 = vmatpush1.msra.mxu0 0.0
  %4375 = vmatprep.subr.mxu0 0.0
  %4376 = vmatpush1.msra.mxu0 0.0
  %4377 = vmatprep.subr.mxu0 0.0
  %4378 = vmatpush1.msra.mxu0 0.0
  %4379 = vmatprep.subr.mxu0 0.0
  %4380 = vmatpush1.msra.mxu0 0.0
  %4381 = vmatprep.subr.mxu0 0.0
  %4382 = vmatpush1.msra.mxu0 0.0
  %4383 = vmatprep.subr.mxu0 0.0
  %4384 = vmatpush1.msra.mxu0 0.0
  %4385 = vmatprep.subr.mxu0 0.0
  %4386 = vmatpush1.msra.mxu0 0.0
  %4387 = vmatprep.subr.mxu0 0.0
  %4388 = vmatpush1.msra.mxu0 0.0
  %4389 = vmatprep.subr.mxu0 0.0
  %4390 = vmatpush1.msra.mxu0 0.0
  %4391 = vmatprep.subr.mxu0 0.0
  %4392 = vmatpush1.msra.mxu0 0.0
  %4393 = vmatprep.subr.mxu0 0.0
  %4394 = vmatpush1.msra.mxu0 0.0
  %4395 = vmatprep.subr.mxu0 0.0
  %4396 = vmatpush1.msra.mxu0 0.0
  %4397 = vmatprep.subr.mxu0 0.0
  %4398 = vmatpush1.msra.mxu0 0.0
  %4399 = vmatprep.subr.mxu0 0.0
  %4400 = vmatpush1.msra.mxu0 0.0
  %4401 = vmatprep.subr.mxu0 0.0
  %4402 = vmatpush1.msra.mxu0 0.0
  %4403 = vmatprep.subr.mxu0 0.0
  %4404 = vmatpush1.msra.mxu0 0.0
  %4405 = vmatprep.subr.mxu0 0.0
  %4406 = vmatpush1.msra.mxu0 0.0
  %4407 = vmatprep.subr.mxu0 0.0
  %4408 = vmatpush1.msra.mxu0 0.0
  %4409 = vmatprep.subr.mxu0 0.0
  %4410 = vmatpush1.msra.mxu0 0.0
  %4411 = vmatprep.subr.mxu0 0.0
  %4412 = vmatpush1.msra.mxu0 0.0
  %4413 = vmatprep.subr.mxu0 0.0
  %4414 = vmatpush1.msra.mxu0 0.0
  %4415 = vmatprep.subr.mxu0 0.0
  %4416 = vmatpush1.msra.mxu0 0.0
  %4417 = vmatprep.subr.mxu0 0.0
  %4418 = vmatpush1.msra.mxu0 0.0
  %4419 = vmatprep.subr.mxu0 0.0
  %4420 = vmatpush1.msra.mxu0 0.0
  %4421 = vmatprep.subr.mxu0 0.0
  %4422 = vmatpush1.msra.mxu0 0.0
  %4423 = vmatprep.subr.mxu0 0.0
  %4424 = vmatpush1.msra.mxu0 0.0
  %4425 = vmatprep.subr.mxu0 0.0
  %4426 = vmatpush1.msra.mxu0 0.0
  %4427 = vmatprep.subr.mxu0 0.0
  %4428 = vmatpush1.msra.mxu0 0.0
  %4429 = vmatprep.subr.mxu0 0.0
  %4430 = vmatpush1.msra.mxu0 0.0
  %4431 = vmatprep.subr.mxu0 0.0
  %4432 = vmatpush1.msra.mxu0 0.0
  %4433 = vmatprep.mubr.f32.mxu0 0.0
  %4434 = vmatmul.mubr.f32.gmra.mrb[0].mxu0 %v4361
  %v4435 = vpop.f32.mrb[0].mxu0
  %v4436 = vadd.f32 0.0, %v4435
  %v4437 = vpop.f32.mrb[0].mxu0
  %v4438 = vadd.f32 0.0, %v4437
  %4439 = vdwg.mxu0
  %v4440 = vadd.f32 %v4349, %v4436
  %v4441 = vadd.f32 %v4350, %v4438
  %v4442 = vld [vmem:[%s5] sm:$0xf]
  %4444 = vset.pattern.permute.xlu0 0
  %4445 = vperm.xlu0 %4444, %v4442
  %v4446 = vpop.permute.xlu0 %4445
  %v4448 = vadd.f32 %v4440, %v4446
  %v4449 = vadd.f32 %v4441, %v4446
  %v4450 = vmax.f32 %v4448, 0.0
  %v4451 = vmax.f32 %v4449, 0.0
  %v4452 = vld [vmem:[%s6] sm:$0xf]
  %4453 = vrot.lane.b32.xlu0 %v4450, 17
  %v4454 = vpop.permute.xlu0 %4453
  %4455 = vrot.lane.b32.xlu0 %v4451, 17
  %v4456 = vpop.permute.xlu0 %4455
  %v4457 = vsel %vm47, %v4454, %v4456
  %v4458 = vsel %vm47, %v4456, %v4454
  %v4459 = vmul.f32 %v4458, %v2741
  %v4460 = vmul.f32 %v4457, %v2745
  %v4461 = vld [vmem:[%s1807] sm:$0xf]
  %4462 = vrot.lane.b32.xlu0 %v4450, 16
  %v4463 = vpop.permute.xlu0 %4462
  %4464 = vrot.lane.b32.xlu0 %v4451, 16
  %v4465 = vpop.permute.xlu0 %4464
  %v4466 = vsel %vm244, %v4463, %v4465
  %v4467 = vsel %vm244, %v4465, %v4463
  %v4468 = vmul.f32 %v4467, %v2934
  %v4469 = vmul.f32 %v4466, %v2938
  %v4471 = vsel %vm76, %v4461, 0
  %v4474 = vsel %vm80, %v4468, 0
  %v4477 = vsel %vm80, %v4469, 0
  %4479 = vmatprep.subr.mxu0 %v4477
  %4480 = vmatpush1.msra.mxu0 %v4474
  %4481 = vmatprep.subr.mxu0 0.0
  %4482 = vmatpush1.msra.mxu0 0.0
  %4483 = vmatprep.subr.mxu0 0.0
  %4484 = vmatpush1.msra.mxu0 0.0
  %4485 = vmatprep.subr.mxu0 0.0
  %4486 = vmatpush1.msra.mxu0 0.0
  %4487 = vmatprep.subr.mxu0 0.0
  %4488 = vmatpush1.msra.mxu0 0.0
  %4489 = vmatprep.subr.mxu0 0.0
  %4490 = vmatpush1.msra.mxu0 0.0
  %4491 = vmatprep.subr.mxu0 0.0
  %4492 = vmatpush1.msra.mxu0 0.0
  %4493 = vmatprep.subr.mxu0 0.0
  %4494 = vmatpush1.msra.mxu0 0.0
  %4495 = vmatprep.subr.mxu0 0.0
  %4496 = vmatpush1.msra.mxu0 0.0
  %4497 = vmatprep.subr.mxu0 0.0
  %4498 = vmatpush1.msra.mxu0 0.0
  %4499 = vmatprep.subr.mxu0 0.0
  %4500 = vmatpush1.msra.mxu0 0.0
  %4501 = vmatprep.subr.mxu0 0.0
  %4502 = vmatpush1.msra.mxu0 0.0
  %4503 = vmatprep.subr.mxu0 0.0
  %4504 = vmatpush1.msra.mxu0 0.0
  %4505 = vmatprep.subr.mxu0 0.0
  %4506 = vmatpush1.msra.mxu0 0.0
  %4507 = vmatprep.subr.mxu0 0.0
  %4508 = vmatpush1.msra.mxu0 0.0
  %4509 = vmatprep.subr.mxu0 0.0
  %4510 = vmatpush1.msra.mxu0 0.0
  %4511 = vmatprep.subr.mxu0 0.0
  %4512 = vmatpush1.msra.mxu0 0.0
  %4513 = vmatprep.subr.mxu0 0.0
  %4514 = vmatpush1.msra.mxu0 0.0
  %4515 = vmatprep.subr.mxu0 0.0
  %4516 = vmatpush1.msra.mxu0 0.0
  %4517 = vmatprep.subr.mxu0 0.0
  %4518 = vmatpush1.msra.mxu0 0.0
  %4519 = vmatprep.subr.mxu0 0.0
  %4520 = vmatpush1.msra.mxu0 0.0
  %4521 = vmatprep.subr.mxu0 0.0
  %4522 = vmatpush1.msra.mxu0 0.0
  %4523 = vmatprep.subr.mxu0 0.0
  %4524 = vmatpush1.msra.mxu0 0.0
  %4525 = vmatprep.subr.mxu0 0.0
  %4526 = vmatpush1.msra.mxu0 0.0
  %4527 = vmatprep.subr.mxu0 0.0
  %4528 = vmatpush1.msra.mxu0 0.0
  %4529 = vmatprep.subr.mxu0 0.0
  %4530 = vmatpush1.msra.mxu0 0.0
  %4531 = vmatprep.subr.mxu0 0.0
  %4532 = vmatpush1.msra.mxu0 0.0
  %4533 = vmatprep.subr.mxu0 0.0
  %4534 = vmatpush1.msra.mxu0 0.0
  %4535 = vmatprep.subr.mxu0 0.0
  %4536 = vmatpush1.msra.mxu0 0.0
  %4537 = vmatprep.subr.mxu0 0.0
  %4538 = vmatpush1.msra.mxu0 0.0
  %4539 = vmatprep.subr.mxu0 0.0
  %4540 = vmatpush1.msra.mxu0 0.0
  %4541 = vmatprep.subr.mxu0 0.0
  %4542 = vmatpush1.msra.mxu0 0.0
  %4543 = vmatprep.mubr.f32.mxu0 0.0
  %4544 = vmatmul.mubr.f32.gmra.mrb[0].mxu0 %v4471
  %v4545 = vpop.f32.mrb[0].mxu0
  %v4546 = vadd.f32 0.0, %v4545
  %v4547 = vpop.f32.mrb[0].mxu0
  %v4548 = vadd.f32 0.0, %v4547
  %4549 = vdwg.mxu0
  %v4551 = vsel %vm76, %v4452, 0
  %v4554 = vsel %vm80, %v4459, 0
  %v4557 = vsel %vm80, %v4460, 0
  %4559 = vmatprep.subr.mxu0 %v4557
  %4560 = vmatpush1.msra.mxu0 %v4554
  %4561 = vmatprep.subr.mxu0 0.0
  %4562 = vmatpush1.msra.mxu0 0.0
  %4563 = vmatprep.subr.mxu0 0.0
  %4564 = vmatpush1.msra.mxu0 0.0
  %4565 = vmatprep.subr.mxu0 0.0
  %4566 = vmatpush1.msra.mxu0 0.0
  %4567 = vmatprep.subr.mxu0 0.0
  %4568 = vmatpush1.msra.mxu0 0.0
  %4569 = vmatprep.subr.mxu0 0.0
  %4570 = vmatpush1.msra.mxu0 0.0
  %4571 = vmatprep.subr.mxu0 0.0
  %4572 = vmatpush1.msra.mxu0 0.0
  %4573 = vmatprep.subr.mxu0 0.0
  %4574 = vmatpush1.msra.mxu0 0.0
  %4575 = vmatprep.subr.mxu0 0.0
  %4576 = vmatpush1.msra.mxu0 0.0
  %4577 = vmatprep.subr.mxu0 0.0
  %4578 = vmatpush1.msra.mxu0 0.0
  %4579 = vmatprep.subr.mxu0 0.0
  %4580 = vmatpush1.msra.mxu0 0.0
  %4581 = vmatprep.subr.mxu0 0.0
  %4582 = vmatpush1.msra.mxu0 0.0
  %4583 = vmatprep.subr.mxu0 0.0
  %4584 = vmatpush1.msra.mxu0 0.0
  %4585 = vmatprep.subr.mxu0 0.0
  %4586 = vmatpush1.msra.mxu0 0.0
  %4587 = vmatprep.subr.mxu0 0.0
  %4588 = vmatpush1.msra.mxu0 0.0
  %4589 = vmatprep.subr.mxu0 0.0
  %4590 = vmatpush1.msra.mxu0 0.0
  %4591 = vmatprep.subr.mxu0 0.0
  %4592 = vmatpush1.msra.mxu0 0.0
  %4593 = vmatprep.subr.mxu0 0.0
  %4594 = vmatpush1.msra.mxu0 0.0
  %4595 = vmatprep.subr.mxu0 0.0
  %4596 = vmatpush1.msra.mxu0 0.0
  %4597 = vmatprep.subr.mxu0 0.0
  %4598 = vmatpush1.msra.mxu0 0.0
  %4599 = vmatprep.subr.mxu0 0.0
  %4600 = vmatpush1.msra.mxu0 0.0
  %4601 = vmatprep.subr.mxu0 0.0
  %4602 = vmatpush1.msra.mxu0 0.0
  %4603 = vmatprep.subr.mxu0 0.0
  %4604 = vmatpush1.msra.mxu0 0.0
  %4605 = vmatprep.subr.mxu0 0.0
  %4606 = vmatpush1.msra.mxu0 0.0
  %4607 = vmatprep.subr.mxu0 0.0
  %4608 = vmatpush1.msra.mxu0 0.0
  %4609 = vmatprep.subr.mxu0 0.0
  %4610 = vmatpush1.msra.mxu0 0.0
  %4611 = vmatprep.subr.mxu0 0.0
  %4612 = vmatpush1.msra.mxu0 0.0
  %4613 = vmatprep.subr.mxu0 0.0
  %4614 = vmatpush1.msra.mxu0 0.0
  %4615 = vmatprep.subr.mxu0 0.0
  %4616 = vmatpush1.msra.mxu0 0.0
  %4617 = vmatprep.subr.mxu0 0.0
  %4618 = vmatpush1.msra.mxu0 0.0
  %4619 = vmatprep.subr.mxu0 0.0
  %4620 = vmatpush1.msra.mxu0 0.0
  %4621 = vmatprep.subr.mxu0 0.0
  %4622 = vmatpush1.msra.mxu0 0.0
  %4623 = vmatprep.mubr.f32.mxu0 0.0
  %4624 = vmatmul.mubr.f32.gmra.mrb[0].mxu0 %v4551
  %v4625 = vpop.f32.mrb[0].mxu0
  %v4626 = vadd.f32 %v4546, %v4625
  %v4627 = vpop.f32.mrb[0].mxu0
  %v4628 = vadd.f32 %v4548, %v4627
  %4629 = vdwg.mxu0
  %v4630 = vld [vmem:[%s1977] sm:$0xf]
  %4631 = vrot.lane.b32.xlu0 %v4450, 15
  %v4632 = vpop.permute.xlu0 %4631
  %4633 = vrot.lane.b32.xlu0 %v4451, 15
  %v4634 = vpop.permute.xlu0 %4633
  %v4635 = vsel %vm442, %v4632, %v4634
  %v4636 = vsel %vm442, %v4634, %v4632
  %v4637 = vmul.f32 %v4636, %v3128
  %v4638 = vmul.f32 %v4635, %v3132
  %v4640 = vsel %vm76, %v4630, 0
  %v4643 = vsel %vm80, %v4637, 0
  %v4646 = vsel %vm80, %v4638, 0
  %4648 = vmatprep.subr.mxu0 %v4646
  %4649 = vmatpush1.msra.mxu0 %v4643
  %4650 = vmatprep.subr.mxu0 0.0
  %4651 = vmatpush1.msra.mxu0 0.0
  %4652 = vmatprep.subr.mxu0 0.0
  %4653 = vmatpush1.msra.mxu0 0.0
  %4654 = vmatprep.subr.mxu0 0.0
  %4655 = vmatpush1.msra.mxu0 0.0
  %4656 = vmatprep.subr.mxu0 0.0
  %4657 = vmatpush1.msra.mxu0 0.0
  %4658 = vmatprep.subr.mxu0 0.0
  %4659 = vmatpush1.msra.mxu0 0.0
  %4660 = vmatprep.subr.mxu0 0.0
  %4661 = vmatpush1.msra.mxu0 0.0
  %4662 = vmatprep.subr.mxu0 0.0
  %4663 = vmatpush1.msra.mxu0 0.0
  %4664 = vmatprep.subr.mxu0 0.0
  %4665 = vmatpush1.msra.mxu0 0.0
  %4666 = vmatprep.subr.mxu0 0.0
  %4667 = vmatpush1.msra.mxu0 0.0
  %4668 = vmatprep.subr.mxu0 0.0
  %4669 = vmatpush1.msra.mxu0 0.0
  %4670 = vmatprep.subr.mxu0 0.0
  %4671 = vmatpush1.msra.mxu0 0.0
  %4672 = vmatprep.subr.mxu0 0.0
  %4673 = vmatpush1.msra.mxu0 0.0
  %4674 = vmatprep.subr.mxu0 0.0
  %4675 = vmatpush1.msra.mxu0 0.0
  %4676 = vmatprep.subr.mxu0 0.0
  %4677 = vmatpush1.msra.mxu0 0.0
  %4678 = vmatprep.subr.mxu0 0.0
  %4679 = vmatpush1.msra.mxu0 0.0
  %4680 = vmatprep.subr.mxu0 0.0
  %4681 = vmatpush1.msra.mxu0 0.0
  %4682 = vmatprep.subr.mxu0 0.0
  %4683 = vmatpush1.msra.mxu0 0.0
  %4684 = vmatprep.subr.mxu0 0.0
  %4685 = vmatpush1.msra.mxu0 0.0
  %4686 = vmatprep.subr.mxu0 0.0
  %4687 = vmatpush1.msra.mxu0 0.0
  %4688 = vmatprep.subr.mxu0 0.0
  %4689 = vmatpush1.msra.mxu0 0.0
  %4690 = vmatprep.subr.mxu0 0.0
  %4691 = vmatpush1.msra.mxu0 0.0
  %4692 = vmatprep.subr.mxu0 0.0
  %4693 = vmatpush1.msra.mxu0 0.0
  %4694 = vmatprep.subr.mxu0 0.0
  %4695 = vmatpush1.msra.mxu0 0.0
  %4696 = vmatprep.subr.mxu0 0.0
  %4697 = vmatpush1.msra.mxu0 0.0
  %4698 = vmatprep.subr.mxu0 0.0
  %4699 = vmatpush1.msra.mxu0 0.0
  %4700 = vmatprep.subr.mxu0 0.0
  %4701 = vmatpush1.msra.mxu0 0.0
  %4702 = vmatprep.subr.mxu0 0.0
  %4703 = vmatpush1.msra.mxu0 0.0
  %4704 = vmatprep.subr.mxu0 0.0
  %4705 = vmatpush1.msra.mxu0 0.0
  %4706 = vmatprep.subr.mxu0 0.0
  %4707 = vmatpush1.msra.mxu0 0.0
  %4708 = vmatprep.subr.mxu0 0.0
  %4709 = vmatpush1.msra.mxu0 0.0
  %4710 = vmatprep.subr.mxu0 0.0
  %4711 = vmatpush1.msra.mxu0 0.0
  %4712 = vmatprep.mubr.f32.mxu0 0.0
  %4713 = vmatmul.mubr.f32.gmra.mrb[0].mxu0 %v4640
  %v4714 = vpop.f32.mrb[0].mxu0
  %v4715 = vadd.f32 0.0, %v4714
  %v4716 = vpop.f32.mrb[0].mxu0
  %v4717 = vadd.f32 0.0, %v4716
  %4718 = vdwg.mxu0
  %v4719 = vadd.f32 %v4626, %v4715
  %v4720 = vadd.f32 %v4628, %v4717
  %v4721 = vld [vmem:[%s2069] sm:$0xf]
  %4722 = vrot.lane.b32.xlu0 %v4450, 1
  %v4723 = vpop.permute.xlu0 %4722
  %4724 = vrot.lane.b32.xlu0 %v4451, 1
  %v4725 = vpop.permute.xlu0 %4724
  %v4726 = vsel %vm640, %v4723, %v4725
  %v4727 = vsel %vm640, %v4725, %v4723
  %v4728 = vmul.f32 %v4727, %v3322
  %v4729 = vmul.f32 %v4726, %v3326
  %v4731 = vsel %vm76, %v4721, 0
  %v4734 = vsel %vm80, %v4728, 0
  %v4737 = vsel %vm80, %v4729, 0
  %4739 = vmatprep.subr.mxu0 %v4737
  %4740 = vmatpush1.msra.mxu0 %v4734
  %4741 = vmatprep.subr.mxu0 0.0
  %4742 = vmatpush1.msra.mxu0 0.0
  %4743 = vmatprep.subr.mxu0 0.0
  %4744 = vmatpush1.msra.mxu0 0.0
  %4745 = vmatprep.subr.mxu0 0.0
  %4746 = vmatpush1.msra.mxu0 0.0
  %4747 = vmatprep.subr.mxu0 0.0
  %4748 = vmatpush1.msra.mxu0 0.0
  %4749 = vmatprep.subr.mxu0 0.0
  %4750 = vmatpush1.msra.mxu0 0.0
  %4751 = vmatprep.subr.mxu0 0.0
  %4752 = vmatpush1.msra.mxu0 0.0
  %4753 = vmatprep.subr.mxu0 0.0
  %4754 = vmatpush1.msra.mxu0 0.0
  %4755 = vmatprep.subr.mxu0 0.0
  %4756 = vmatpush1.msra.mxu0 0.0
  %4757 = vmatprep.subr.mxu0 0.0
  %4758 = vmatpush1.msra.mxu0 0.0
  %4759 = vmatprep.subr.mxu0 0.0
  %4760 = vmatpush1.msra.mxu0 0.0
  %4761 = vmatprep.subr.mxu0 0.0
  %4762 = vmatpush1.msra.mxu0 0.0
  %4763 = vmatprep.subr.mxu0 0.0
  %4764 = vmatpush1.msra.mxu0 0.0
  %4765 = vmatprep.subr.mxu0 0.0
  %4766 = vmatpush1.msra.mxu0 0.0
  %4767 = vmatprep.subr.mxu0 0.0
  %4768 = vmatpush1.msra.mxu0 0.0
  %4769 = vmatprep.subr.mxu0 0.0
  %4770 = vmatpush1.msra.mxu0 0.0
  %4771 = vmatprep.subr.mxu0 0.0
  %4772 = vmatpush1.msra.mxu0 0.0
  %4773 = vmatprep.subr.mxu0 0.0
  %4774 = vmatpush1.msra.mxu0 0.0
  %4775 = vmatprep.subr.mxu0 0.0
  %4776 = vmatpush1.msra.mxu0 0.0
  %4777 = vmatprep.subr.mxu0 0.0
  %4778 = vmatpush1.msra.mxu0 0.0
  %4779 = vmatprep.subr.mxu0 0.0
  %4780 = vmatpush1.msra.mxu0 0.0
  %4781 = vmatprep.subr.mxu0 0.0
  %4782 = vmatpush1.msra.mxu0 0.0
  %4783 = vmatprep.subr.mxu0 0.0
  %4784 = vmatpush1.msra.mxu0 0.0
  %4785 = vmatprep.subr.mxu0 0.0
  %4786 = vmatpush1.msra.mxu0 0.0
  %4787 = vmatprep.subr.mxu0 0.0
  %4788 = vmatpush1.msra.mxu0 0.0
  %4789 = vmatprep.subr.mxu0 0.0
  %4790 = vmatpush1.msra.mxu0 0.0
  %4791 = vmatprep.subr.mxu0 0.0
  %4792 = vmatpush1.msra.mxu0 0.0
  %4793 = vmatprep.subr.mxu0 0.0
  %4794 = vmatpush1.msra.mxu0 0.0
  %4795 = vmatprep.subr.mxu0 0.0
  %4796 = vmatpush1.msra.mxu0 0.0
  %4797 = vmatprep.subr.mxu0 0.0
  %4798 = vmatpush1.msra.mxu0 0.0
  %4799 = vmatprep.subr.mxu0 0.0
  %4800 = vmatpush1.msra.mxu0 0.0
  %4801 = vmatprep.subr.mxu0 0.0
  %4802 = vmatpush1.msra.mxu0 0.0
  %4803 = vmatprep.mubr.f32.mxu0 0.0
  %4804 = vmatmul.mubr.f32.gmra.mrb[0].mxu0 %v4731
  %v4805 = vpop.f32.mrb[0].mxu0
  %v4806 = vadd.f32 0.0, %v4805
  %v4807 = vpop.f32.mrb[0].mxu0
  %v4808 = vadd.f32 0.0, %v4807
  %4809 = vdwg.mxu0
  %v4810 = vadd.f32 %v4719, %v4806
  %v4811 = vadd.f32 %v4720, %v4808
  %v4812 = vld [vmem:[%s2161] sm:$0xf]
  %v4814 = vsel %vm76, %v4812, 0
  %v4817 = vsel %vm80, %v4450, 0
  %v4820 = vsel %vm80, %v4451, 0
  %4822 = vmatprep.subr.mxu0 %v4820
  %4823 = vmatpush1.msra.mxu0 %v4817
  %4824 = vmatprep.subr.mxu0 0.0
  %4825 = vmatpush1.msra.mxu0 0.0
  %4826 = vmatprep.subr.mxu0 0.0
  %4827 = vmatpush1.msra.mxu0 0.0
  %4828 = vmatprep.subr.mxu0 0.0
  %4829 = vmatpush1.msra.mxu0 0.0
  %4830 = vmatprep.subr.mxu0 0.0
  %4831 = vmatpush1.msra.mxu0 0.0
  %4832 = vmatprep.subr.mxu0 0.0
  %4833 = vmatpush1.msra.mxu0 0.0
  %4834 = vmatprep.subr.mxu0 0.0
  %4835 = vmatpush1.msra.mxu0 0.0
  %4836 = vmatprep.subr.mxu0 0.0
  %4837 = vmatpush1.msra.mxu0 0.0
  %4838 = vmatprep.subr.mxu0 0.0
  %4839 = vmatpush1.msra.mxu0 0.0
  %4840 = vmatprep.subr.mxu0 0.0
  %4841 = vmatpush1.msra.mxu0 0.0
  %4842 = vmatprep.subr.mxu0 0.0
  %4843 = vmatpush1.msra.mxu0 0.0
  %4844 = vmatprep.subr.mxu0 0.0
  %4845 = vmatpush1.msra.mxu0 0.0
  %4846 = vmatprep.subr.mxu0 0.0
  %4847 = vmatpush1.msra.mxu0 0.0
  %4848 = vmatprep.subr.mxu0 0.0
  %4849 = vmatpush1.msra.mxu0 0.0
  %4850 = vmatprep.subr.mxu0 0.0
  %4851 = vmatpush1.msra.mxu0 0.0
  %4852 = vmatprep.subr.mxu0 0.0
  %4853 = vmatpush1.msra.mxu0 0.0
  %4854 = vmatprep.subr.mxu0 0.0
  %4855 = vmatpush1.msra.mxu0 0.0
  %4856 = vmatprep.subr.mxu0 0.0
  %4857 = vmatpush1.msra.mxu0 0.0
  %4858 = vmatprep.subr.mxu0 0.0
  %4859 = vmatpush1.msra.mxu0 0.0
  %4860 = vmatprep.subr.mxu0 0.0
  %4861 = vmatpush1.msra.mxu0 0.0
  %4862 = vmatprep.subr.mxu0 0.0
  %4863 = vmatpush1.msra.mxu0 0.0
  %4864 = vmatprep.subr.mxu0 0.0
  %4865 = vmatpush1.msra.mxu0 0.0
  %4866 = vmatprep.subr.mxu0 0.0
  %4867 = vmatpush1.msra.mxu0 0.0
  %4868 = vmatprep.subr.mxu0 0.0
  %4869 = vmatpush1.msra.mxu0 0.0
  %4870 = vmatprep.subr.mxu0 0.0
  %4871 = vmatpush1.msra.mxu0 0.0
  %4872 = vmatprep.subr.mxu0 0.0
  %4873 = vmatpush1.msra.mxu0 0.0
  %4874 = vmatprep.subr.mxu0 0.0
  %4875 = vmatpush1.msra.mxu0 0.0
  %4876 = vmatprep.subr.mxu0 0.0
  %4877 = vmatpush1.msra.mxu0 0.0
  %4878 = vmatprep.subr.mxu0 0.0
  %4879 = vmatpush1.msra.mxu0 0.0
  %4880 = vmatprep.subr.mxu0 0.0
  %4881 = vmatpush1.msra.mxu0 0.0
  %4882 = vmatprep.subr.mxu0 0.0
  %4883 = vmatpush1.msra.mxu0 0.0
  %4884 = vmatprep.subr.mxu0 0.0
  %4885 = vmatpush1.msra.mxu0 0.0
  %4886 = vmatprep.mubr.f32.mxu0 0.0
  %4887 = vmatmul.mubr.f32.gmra.mrb[0].mxu0 %v4814
  %v4888 = vpop.f32.mrb[0].mxu0
  %v4889 = vadd.f32 0.0, %v4888
  %v4890 = vpop.f32.mrb[0].mxu0
  %v4891 = vadd.f32 0.0, %v4890
  %4892 = vdwg.mxu0
  %v4893 = vadd.f32 %v4810, %v4889
  %v4894 = vadd.f32 %v4811, %v4891
  %v4895 = vld [vmem:[%s2245] sm:$0xf]
  %4896 = vrot.lane.b32.xlu0 %v4450, 127
  %v4897 = vpop.permute.xlu0 %4896
  %4898 = vrot.lane.b32.xlu0 %v4451, 127
  %v4899 = vpop.permute.xlu0 %4898
  %v4900 = vsel %vm1002, %v4897, %v4899
  %v4901 = vsel %vm1002, %v4899, %v4897
  %v4902 = vmul.f32 %v4900, %v3678
  %v4903 = vmul.f32 %v4901, %v3682
  %v4905 = vsel %vm76, %v4895, 0
  %v4908 = vsel %vm80, %v4902, 0
  %v4911 = vsel %vm80, %v4903, 0
  %4913 = vmatprep.subr.mxu0 %v4911
  %4914 = vmatpush1.msra.mxu0 %v4908
  %4915 = vmatprep.subr.mxu0 0.0
  %4916 = vmatpush1.msra.mxu0 0.0
  %4917 = vmatprep.subr.mxu0 0.0
  %4918 = vmatpush1.msra.mxu0 0.0
  %4919 = vmatprep.subr.mxu0 0.0
  %4920 = vmatpush1.msra.mxu0 0.0
  %4921 = vmatprep.subr.mxu0 0.0
  %4922 = vmatpush1.msra.mxu0 0.0
  %4923 = vmatprep.subr.mxu0 0.0
  %4924 = vmatpush1.msra.mxu0 0.0
  %4925 = vmatprep.subr.mxu0 0.0
  %4926 = vmatpush1.msra.mxu0 0.0
  %4927 = vmatprep.subr.mxu0 0.0
  %4928 = vmatpush1.msra.mxu0 0.0
  %4929 = vmatprep.subr.mxu0 0.0
  %4930 = vmatpush1.msra.mxu0 0.0
  %4931 = vmatprep.subr.mxu0 0.0
  %4932 = vmatpush1.msra.mxu0 0.0
  %4933 = vmatprep.subr.mxu0 0.0
  %4934 = vmatpush1.msra.mxu0 0.0
  %4935 = vmatprep.subr.mxu0 0.0
  %4936 = vmatpush1.msra.mxu0 0.0
  %4937 = vmatprep.subr.mxu0 0.0
  %4938 = vmatpush1.msra.mxu0 0.0
  %4939 = vmatprep.subr.mxu0 0.0
  %4940 = vmatpush1.msra.mxu0 0.0
  %4941 = vmatprep.subr.mxu0 0.0
  %4942 = vmatpush1.msra.mxu0 0.0
  %4943 = vmatprep.subr.mxu0 0.0
  %4944 = vmatpush1.msra.mxu0 0.0
  %4945 = vmatprep.subr.mxu0 0.0
  %4946 = vmatpush1.msra.mxu0 0.0
  %4947 = vmatprep.subr.mxu0 0.0
  %4948 = vmatpush1.msra.mxu0 0.0
  %4949 = vmatprep.subr.mxu0 0.0
  %4950 = vmatpush1.msra.mxu0 0.0
  %4951 = vmatprep.subr.mxu0 0.0
  %4952 = vmatpush1.msra.mxu0 0.0
  %4953 = vmatprep.subr.mxu0 0.0
  %4954 = vmatpush1.msra.mxu0 0.0
  %4955 = vmatprep.subr.mxu0 0.0
  %4956 = vmatpush1.msra.mxu0 0.0
  %4957 = vmatprep.subr.mxu0 0.0
  %4958 = vmatpush1.msra.mxu0 0.0
  %4959 = vmatprep.subr.mxu0 0.0
  %4960 = vmatpush1.msra.mxu0 0.0
  %4961 = vmatprep.subr.mxu0 0.0
  %4962 = vmatpush1.msra.mxu0 0.0
  %4963 = vmatprep.subr.mxu0 0.0
  %4964 = vmatpush1.msra.mxu0 0.0
  %4965 = vmatprep.subr.mxu0 0.0
  %4966 = vmatpush1.msra.mxu0 0.0
  %4967 = vmatprep.subr.mxu0 0.0
  %4968 = vmatpush1.msra.mxu0 0.0
  %4969 = vmatprep.subr.mxu0 0.0
  %4970 = vmatpush1.msra.mxu0 0.0
  %4971 = vmatprep.subr.mxu0 0.0
  %4972 = vmatpush1.msra.mxu0 0.0
  %4973 = vmatprep.subr.mxu0 0.0
  %4974 = vmatpush1.msra.mxu0 0.0
  %4975 = vmatprep.subr.mxu0 0.0
  %4976 = vmatpush1.msra.mxu0 0.0
  %4977 = vmatprep.mubr.f32.mxu0 0.0
  %4978 = vmatmul.mubr.f32.gmra.mrb[0].mxu0 %v4905
  %v4979 = vpop.f32.mrb[0].mxu0
  %v4980 = vadd.f32 0.0, %v4979
  %v4981 = vpop.f32.mrb[0].mxu0
  %v4982 = vadd.f32 0.0, %v4981
  %4983 = vdwg.mxu0
  %v4984 = vadd.f32 %v4893, %v4980
  %v4985 = vadd.f32 %v4894, %v4982
  %v4986 = vld [vmem:[%s2337] sm:$0xf]
  %4987 = vrot.lane.b32.xlu0 %v4450, 113
  %v4988 = vpop.permute.xlu0 %4987
  %4989 = vrot.lane.b32.xlu0 %v4451, 113
  %v4990 = vpop.permute.xlu0 %4989
  %v4991 = vsel %vm1200, %v4988, %v4990
  %v4992 = vsel %vm1200, %v4990, %v4988
  %v4993 = vmul.f32 %v4991, %v3872
  %v4994 = vmul.f32 %v4992, %v3876
  %v4996 = vsel %vm76, %v4986, 0
  %v4999 = vsel %vm80, %v4993, 0
  %v5002 = vsel %vm80, %v4994, 0
  %5004 = vmatprep.subr.mxu0 %v5002
  %5005 = vmatpush1.msra.mxu0 %v4999
  %5006 = vmatprep.subr.mxu0 0.0
  %5007 = vmatpush1.msra.mxu0 0.0
  %5008 = vmatprep.subr.mxu0 0.0
  %5009 = vmatpush1.msra.mxu0 0.0
  %5010 = vmatprep.subr.mxu0 0.0
  %5011 = vmatpush1.msra.mxu0 0.0
  %5012 = vmatprep.subr.mxu0 0.0
  %5013 = vmatpush1.msra.mxu0 0.0
  %5014 = vmatprep.subr.mxu0 0.0
  %5015 = vmatpush1.msra.mxu0 0.0
  %5016 = vmatprep.subr.mxu0 0.0
  %5017 = vmatpush1.msra.mxu0 0.0
  %5018 = vmatprep.subr.mxu0 0.0
  %5019 = vmatpush1.msra.mxu0 0.0
  %5020 = vmatprep.subr.mxu0 0.0
  %5021 = vmatpush1.msra.mxu0 0.0
  %5022 = vmatprep.subr.mxu0 0.0
  %5023 = vmatpush1.msra.mxu0 0.0
  %5024 = vmatprep.subr.mxu0 0.0
  %5025 = vmatpush1.msra.mxu0 0.0
  %5026 = vmatprep.subr.mxu0 0.0
  %5027 = vmatpush1.msra.mxu0 0.0
  %5028 = vmatprep.subr.mxu0 0.0
  %5029 = vmatpush1.msra.mxu0 0.0
  %5030 = vmatprep.subr.mxu0 0.0
  %5031 = vmatpush1.msra.mxu0 0.0
  %5032 = vmatprep.subr.mxu0 0.0
  %5033 = vmatpush1.msra.mxu0 0.0
  %5034 = vmatprep.subr.mxu0 0.0
  %5035 = vmatpush1.msra.mxu0 0.0
  %5036 = vmatprep.subr.mxu0 0.0
  %5037 = vmatpush1.msra.mxu0 0.0
  %5038 = vmatprep.subr.mxu0 0.0
  %5039 = vmatpush1.msra.mxu0 0.0
  %5040 = vmatprep.subr.mxu0 0.0
  %5041 = vmatpush1.msra.mxu0 0.0
  %5042 = vmatprep.subr.mxu0 0.0
  %5043 = vmatpush1.msra.mxu0 0.0
  %5044 = vmatprep.subr.mxu0 0.0
  %5045 = vmatpush1.msra.mxu0 0.0
  %5046 = vmatprep.subr.mxu0 0.0
  %5047 = vmatpush1.msra.mxu0 0.0
  %5048 = vmatprep.subr.mxu0 0.0
  %5049 = vmatpush1.msra.mxu0 0.0
  %5050 = vmatprep.subr.mxu0 0.0
  %5051 = vmatpush1.msra.mxu0 0.0
  %5052 = vmatprep.subr.mxu0 0.0
  %5053 = vmatpush1.msra.mxu0 0.0
  %5054 = vmatprep.subr.mxu0 0.0
  %5055 = vmatpush1.msra.mxu0 0.0
  %5056 = vmatprep.subr.mxu0 0.0
  %5057 = vmatpush1.msra.mxu0 0.0
  %5058 = vmatprep.subr.mxu0 0.0
  %5059 = vmatpush1.msra.mxu0 0.0
  %5060 = vmatprep.subr.mxu0 0.0
  %5061 = vmatpush1.msra.mxu0 0.0
  %5062 = vmatprep.subr.mxu0 0.0
  %5063 = vmatpush1.msra.mxu0 0.0
  %5064 = vmatprep.subr.mxu0 0.0
  %5065 = vmatpush1.msra.mxu0 0.0
  %5066 = vmatprep.subr.mxu0 0.0
  %5067 = vmatpush1.msra.mxu0 0.0
  %5068 = vmatprep.mubr.f32.mxu0 0.0
  %5069 = vmatmul.mubr.f32.gmra.mrb[0].mxu0 %v4996
  %v5070 = vpop.f32.mrb[0].mxu0
  %v5071 = vadd.f32 0.0, %v5070
  %v5072 = vpop.f32.mrb[0].mxu0
  %v5073 = vadd.f32 0.0, %v5072
  %5074 = vdwg.mxu0
  %v5075 = vadd.f32 %v4984, %v5071
  %v5076 = vadd.f32 %v4985, %v5073
  %v5077 = vld [vmem:[%s2429] sm:$0xf]
  %5078 = vrot.lane.b32.xlu0 %v4450, 112
  %v5079 = vpop.permute.xlu0 %5078
  %5080 = vrot.lane.b32.xlu0 %v4451, 112
  %v5081 = vpop.permute.xlu0 %5080
  %v5082 = vsel %vm1398, %v5079, %v5081
  %v5083 = vsel %vm1398, %v5081, %v5079
  %v5084 = vmul.f32 %v5082, %v4066
  %v5085 = vmul.f32 %v5083, %v4070
  %v5087 = vsel %vm76, %v5077, 0
  %v5090 = vsel %vm80, %v5084, 0
  %v5093 = vsel %vm80, %v5085, 0
  %5095 = vmatprep.subr.mxu0 %v5093
  %5096 = vmatpush1.msra.mxu0 %v5090
  %5097 = vmatprep.subr.mxu0 0.0
  %5098 = vmatpush1.msra.mxu0 0.0
  %5099 = vmatprep.subr.mxu0 0.0
  %5100 = vmatpush1.msra.mxu0 0.0
  %5101 = vmatprep.subr.mxu0 0.0
  %5102 = vmatpush1.msra.mxu0 0.0
  %5103 = vmatprep.subr.mxu0 0.0
  %5104 = vmatpush1.msra.mxu0 0.0
  %5105 = vmatprep.subr.mxu0 0.0
  %5106 = vmatpush1.msra.mxu0 0.0
  %5107 = vmatprep.subr.mxu0 0.0
  %5108 = vmatpush1.msra.mxu0 0.0
  %5109 = vmatprep.subr.mxu0 0.0
  %5110 = vmatpush1.msra.mxu0 0.0
  %5111 = vmatprep.subr.mxu0 0.0
  %5112 = vmatpush1.msra.mxu0 0.0
  %5113 = vmatprep.subr.mxu0 0.0
  %5114 = vmatpush1.msra.mxu0 0.0
  %5115 = vmatprep.subr.mxu0 0.0
  %5116 = vmatpush1.msra.mxu0 0.0
  %5117 = vmatprep.subr.mxu0 0.0
  %5118 = vmatpush1.msra.mxu0 0.0
  %5119 = vmatprep.subr.mxu0 0.0
  %5120 = vmatpush1.msra.mxu0 0.0
  %5121 = vmatprep.subr.mxu0 0.0
  %5122 = vmatpush1.msra.mxu0 0.0
  %5123 = vmatprep.subr.mxu0 0.0
  %5124 = vmatpush1.msra.mxu0 0.0
  %5125 = vmatprep.subr.mxu0 0.0
  %5126 = vmatpush1.msra.mxu0 0.0
  %5127 = vmatprep.subr.mxu0 0.0
  %5128 = vmatpush1.msra.mxu0 0.0
  %5129 = vmatprep.subr.mxu0 0.0
  %5130 = vmatpush1.msra.mxu0 0.0
  %5131 = vmatprep.subr.mxu0 0.0
  %5132 = vmatpush1.msra.mxu0 0.0
  %5133 = vmatprep.subr.mxu0 0.0
  %5134 = vmatpush1.msra.mxu0 0.0
  %5135 = vmatprep.subr.mxu0 0.0
  %5136 = vmatpush1.msra.mxu0 0.0
  %5137 = vmatprep.subr.mxu0 0.0
  %5138 = vmatpush1.msra.mxu0 0.0
  %5139 = vmatprep.subr.mxu0 0.0
  %5140 = vmatpush1.msra.mxu0 0.0
  %5141 = vmatprep.subr.mxu0 0.0
  %5142 = vmatpush1.msra.mxu0 0.0
  %5143 = vmatprep.subr.mxu0 0.0
  %5144 = vmatpush1.msra.mxu0 0.0
  %5145 = vmatprep.subr.mxu0 0.0
  %5146 = vmatpush1.msra.mxu0 0.0
  %5147 = vmatprep.subr.mxu0 0.0
  %5148 = vmatpush1.msra.mxu0 0.0
  %5149 = vmatprep.subr.mxu0 0.0
  %5150 = vmatpush1.msra.mxu0 0.0
  %5151 = vmatprep.subr.mxu0 0.0
  %5152 = vmatpush1.msra.mxu0 0.0
  %5153 = vmatprep.subr.mxu0 0.0
  %5154 = vmatpush1.msra.mxu0 0.0
  %5155 = vmatprep.subr.mxu0 0.0
  %5156 = vmatpush1.msra.mxu0 0.0
  %5157 = vmatprep.subr.mxu0 0.0
  %5158 = vmatpush1.msra.mxu0 0.0
  %5159 = vmatprep.mubr.f32.mxu0 0.0
  %5160 = vmatmul.mubr.f32.gmra.mrb[0].mxu0 %v5087
  %v5161 = vpop.f32.mrb[0].mxu0
  %v5162 = vadd.f32 0.0, %v5161
  %v5163 = vpop.f32.mrb[0].mxu0
  %v5164 = vadd.f32 0.0, %v5163
  %5165 = vdwg.mxu0
  %v5166 = vadd.f32 %v5075, %v5162
  %v5167 = vadd.f32 %v5076, %v5164
  %v5168 = vld [vmem:[%s2521] sm:$0xf]
  %5169 = vrot.lane.b32.xlu0 %v4450, 111
  %v5170 = vpop.permute.xlu0 %5169
  %5171 = vrot.lane.b32.xlu0 %v4451, 111
  %v5172 = vpop.permute.xlu0 %5171
  %v5173 = vsel %vm1596, %v5170, %v5172
  %v5174 = vsel %vm1596, %v5172, %v5170
  %v5175 = vmul.f32 %v5173, %v4260
  %v5176 = vmul.f32 %v5174, %v4264
  %v5178 = vsel %vm76, %v5168, 0
  %v5181 = vsel %vm80, %v5175, 0
  %v5184 = vsel %vm80, %v5176, 0
  %5186 = vmatprep.subr.mxu0 %v5184
  %5187 = vmatpush1.msra.mxu0 %v5181
  %5188 = vmatprep.subr.mxu0 0.0
  %5189 = vmatpush1.msra.mxu0 0.0
  %5190 = vmatprep.subr.mxu0 0.0
  %5191 = vmatpush1.msra.mxu0 0.0
  %5192 = vmatprep.subr.mxu0 0.0
  %5193 = vmatpush1.msra.mxu0 0.0
  %5194 = vmatprep.subr.mxu0 0.0
  %5195 = vmatpush1.msra.mxu0 0.0
  %5196 = vmatprep.subr.mxu0 0.0
  %5197 = vmatpush1.msra.mxu0 0.0
  %5198 = vmatprep.subr.mxu0 0.0
  %5199 = vmatpush1.msra.mxu0 0.0
  %5200 = vmatprep.subr.mxu0 0.0
  %5201 = vmatpush1.msra.mxu0 0.0
  %5202 = vmatprep.subr.mxu0 0.0
  %5203 = vmatpush1.msra.mxu0 0.0
  %5204 = vmatprep.subr.mxu0 0.0
  %5205 = vmatpush1.msra.mxu0 0.0
  %5206 = vmatprep.subr.mxu0 0.0
  %5207 = vmatpush1.msra.mxu0 0.0
  %5208 = vmatprep.subr.mxu0 0.0
  %5209 = vmatpush1.msra.mxu0 0.0
  %5210 = vmatprep.subr.mxu0 0.0
  %5211 = vmatpush1.msra.mxu0 0.0
  %5212 = vmatprep.subr.mxu0 0.0
  %5213 = vmatpush1.msra.mxu0 0.0
  %5214 = vmatprep.subr.mxu0 0.0
  %5215 = vmatpush1.msra.mxu0 0.0
  %5216 = vmatprep.subr.mxu0 0.0
  %5217 = vmatpush1.msra.mxu0 0.0
  %5218 = vmatprep.subr.mxu0 0.0
  %5219 = vmatpush1.msra.mxu0 0.0
  %5220 = vmatprep.subr.mxu0 0.0
  %5221 = vmatpush1.msra.mxu0 0.0
  %5222 = vmatprep.subr.mxu0 0.0
  %5223 = vmatpush1.msra.mxu0 0.0
  %5224 = vmatprep.subr.mxu0 0.0
  %5225 = vmatpush1.msra.mxu0 0.0
  %5226 = vmatprep.subr.mxu0 0.0
  %5227 = vmatpush1.msra.mxu0 0.0
  %5228 = vmatprep.subr.mxu0 0.0
  %5229 = vmatpush1.msra.mxu0 0.0
  %5230 = vmatprep.subr.mxu0 0.0
  %5231 = vmatpush1.msra.mxu0 0.0
  %5232 = vmatprep.subr.mxu0 0.0
  %5233 = vmatpush1.msra.mxu0 0.0
  %5234 = vmatprep.subr.mxu0 0.0
  %5235 = vmatpush1.msra.mxu0 0.0
  %5236 = vmatprep.subr.mxu0 0.0
  %5237 = vmatpush1.msra.mxu0 0.0
  %5238 = vmatprep.subr.mxu0 0.0
  %5239 = vmatpush1.msra.mxu0 0.0
  %5240 = vmatprep.subr.mxu0 0.0
  %5241 = vmatpush1.msra.mxu0 0.0
  %5242 = vmatprep.subr.mxu0 0.0
  %5243 = vmatpush1.msra.mxu0 0.0
  %5244 = vmatprep.subr.mxu0 0.0
  %5245 = vmatpush1.msra.mxu0 0.0
  %5246 = vmatprep.subr.mxu0 0.0
  %5247 = vmatpush1.msra.mxu0 0.0
  %5248 = vmatprep.subr.mxu0 0.0
  %5249 = vmatpush1.msra.mxu0 0.0
  %5250 = vmatprep.mubr.f32.mxu0 0.0
  %5251 = vmatmul.mubr.f32.gmra.mrb[0].mxu0 %v5178
  %v5252 = vpop.f32.mrb[0].mxu0
  %v5253 = vadd.f32 0.0, %v5252
  %v5254 = vpop.f32.mrb[0].mxu0
  %v5255 = vadd.f32 0.0, %v5254
  %5256 = vdwg.mxu0
  %v5257 = vadd.f32 %v5166, %v5253
  %v5258 = vadd.f32 %v5167, %v5255
  %v5259 = vld [vmem:[%s7] sm:$0xf]
  %5261 = vset.pattern.permute.xlu0 0
  %5262 = vperm.xlu0 %5261, %v5259
  %v5263 = vpop.permute.xlu0 %5262
  %v5265 = vadd.f32 %v5257, %v5263
  %v5266 = vadd.f32 %v5258, %v5263
  %v5267 = vmax.f32 %v5265, 0.0
  %v5268 = vmax.f32 %v5266, 0.0
  %v5269 = vld [vmem:[%s8] sm:$0x3]
  %v5270 = vld [vmem:[%s9] sm:$0x3]
  %5272 = vset.pattern.permute.xlu0 0
  %5273 = vperm.xlu0 %5272, %v5270
  %v5274 = vpop.permute.xlu0 %5273
  %v5277 = vsel %vm76, %v5269, 0
  %v5280 = vsel %vm80, %v5267, 0
  %v5283 = vsel %vm80, %v5268, 0
  %5285 = vmatprep.subr.mxu0 %v5283
  %5286 = vmatpush1.msra.mxu0 %v5280
  %5287 = vmatprep.subr.mxu0 0.0
  %5288 = vmatpush1.msra.mxu0 0.0
  %5289 = vmatprep.subr.mxu0 0.0
  %5290 = vmatpush1.msra.mxu0 0.0
  %5291 = vmatprep.subr.mxu0 0.0
  %5292 = vmatpush1.msra.mxu0 0.0
  %5293 = vmatprep.subr.mxu0 0.0
  %5294 = vmatpush1.msra.mxu0 0.0
  %5295 = vmatprep.subr.mxu0 0.0
  %5296 = vmatpush1.msra.mxu0 0.0
  %5297 = vmatprep.subr.mxu0 0.0
  %5298 = vmatpush1.msra.mxu0 0.0
  %5299 = vmatprep.subr.mxu0 0.0
  %5300 = vmatpush1.msra.mxu0 0.0
  %5301 = vmatprep.subr.mxu0 0.0
  %5302 = vmatpush1.msra.mxu0 0.0
  %5303 = vmatprep.subr.mxu0 0.0
  %5304 = vmatpush1.msra.mxu0 0.0
  %5305 = vmatprep.subr.mxu0 0.0
  %5306 = vmatpush1.msra.mxu0 0.0
  %5307 = vmatprep.subr.mxu0 0.0
  %5308 = vmatpush1.msra.mxu0 0.0
  %5309 = vmatprep.subr.mxu0 0.0
  %5310 = vmatpush1.msra.mxu0 0.0
  %5311 = vmatprep.subr.mxu0 0.0
  %5312 = vmatpush1.msra.mxu0 0.0
  %5313 = vmatprep.subr.mxu0 0.0
  %5314 = vmatpush1.msra.mxu0 0.0
  %5315 = vmatprep.subr.mxu0 0.0
  %5316 = vmatpush1.msra.mxu0 0.0
  %5317 = vmatprep.subr.mxu0 0.0
  %5318 = vmatpush1.msra.mxu0 0.0
  %5319 = vmatprep.subr.mxu0 0.0
  %5320 = vmatpush1.msra.mxu0 0.0
  %5321 = vmatprep.subr.mxu0 0.0
  %5322 = vmatpush1.msra.mxu0 0.0
  %5323 = vmatprep.subr.mxu0 0.0
  %5324 = vmatpush1.msra.mxu0 0.0
  %5325 = vmatprep.subr.mxu0 0.0
  %5326 = vmatpush1.msra.mxu0 0.0
  %5327 = vmatprep.subr.mxu0 0.0
  %5328 = vmatpush1.msra.mxu0 0.0
  %5329 = vmatprep.subr.mxu0 0.0
  %5330 = vmatpush1.msra.mxu0 0.0
  %5331 = vmatprep.subr.mxu0 0.0
  %5332 = vmatpush1.msra.mxu0 0.0
  %5333 = vmatprep.subr.mxu0 0.0
  %5334 = vmatpush1.msra.mxu0 0.0
  %5335 = vmatprep.subr.mxu0 0.0
  %5336 = vmatpush1.msra.mxu0 0.0
  %5337 = vmatprep.subr.mxu0 0.0
  %5338 = vmatpush1.msra.mxu0 0.0
  %5339 = vmatprep.subr.mxu0 0.0
  %5340 = vmatpush1.msra.mxu0 0.0
  %5341 = vmatprep.subr.mxu0 0.0
  %5342 = vmatpush1.msra.mxu0 0.0
  %5343 = vmatprep.subr.mxu0 0.0
  %5344 = vmatpush1.msra.mxu0 0.0
  %5345 = vmatprep.subr.mxu0 0.0
  %5346 = vmatpush1.msra.mxu0 0.0
  %5347 = vmatprep.subr.mxu0 0.0
  %5348 = vmatpush1.msra.mxu0 0.0
  %5349 = vmatprep.mubr.f32.mxu0 0.0
  %5350 = vmatmul.mubr.f32.gmra.mrb[0].mxu0 %v5277
  %v5351 = vpop.f32.mrb[0].mxu0
  %v5352 = vadd.f32 %v5274, %v5351
  %v5353 = vpop.f32.mrb[0].mxu0
  %v5354 = vadd.f32 %v5274, %v5353
  %5355 = vdwg.mxu0
  %v5358 = vcombine.low %v5352, %v5354
  %v5360 = vunpack.c.l.s4 1983009808
  %v5361 = vunpack.c.0.s8 %v5360
  %v5362 = vlaneseq
  %v5363 = vshrl.u32 %v5362, 7
  %v5364 = vsub.s32 %v5361, %v5363
  %v5365 = vrot.slane %v5358, %v5364
  %s5367 = scalar_lea.vmem %s10, 4
  %5368 = vst [vmem:[%s5367] sm:$0xf] %v5365
  // Predicated region
  $region42: #{output_block.1} parent=0 // pred_check
    _
  $region43: #{output_block.1} parent=0 // pred_check_branch
    %5370 = sbr.rel (0) target = $region45
  $region44: #{output_block.1} parent=0 // pred_region
    _
  $region45: #{output_block.1} parent=0 // pred_fallthru
    _
  // Predicated region
  $region46: #{output_block.1} parent=0 // pred_check
    _
  $region47: #{output_block.1} parent=0 // pred_check_branch
    %5372 = sbr.rel (0) target = $region49
  $region48: #{output_block.1} parent=0 // pred_region
    _
  $region49: #{output_block.1} parent=0 // pred_fallthru
    _

</llo_original>
